<compile_context>
chip_gen: v7x
topology: tpu7x:2x2x1
jax: 0.10.0
libtpu: 0.0.40
codegen_flags: <defaults>
</compile_context>

<pallas_src>
import functools

import jax
import jax.numpy as jnp
from jax import lax
from jax.experimental import pallas as pl
from jax.experimental.pallas import tpu as pltpu


MATMUL_DTYPE = jnp.bfloat16


def _spatial_tile(hw, cap=1024):
    """Largest spatial tile <= cap dividing hw; prefer multiples of 128 (lane-dense)."""
    if hw <= cap:
        return hw
    for t in range(cap, 127, -128):
        if hw % t == 0:
            return t
    for t in range(cap, 7, -8):
        if hw % t == 0:
            return t
    return hw


# ---------------------------------------------------------------------------
# Kernel 1: SparseConv (k x k, 'same'), single K = k*k*Cin matmul, fused
# mask-count normalization + bias + mask binarization.  Optional fused 1x1 conv.
# ---------------------------------------------------------------------------
def _sparse_conv_kernel(xs_ref, ms_ref, w_ref, b_ref, xo_ref, mo_ref):
    acc = jnp.dot(w_ref[...], xs_ref[0], preferred_element_type=jnp.float32)  # (Cout, T)
    msum = jnp.sum(ms_ref[0], axis=0, keepdims=True)          # ones(k,k) mask conv (1,T)
    mc = 1.0 / jnp.maximum(msum, 1e-5)
    x = acc * mc + b_ref[...]                                  # (Cout,1) lane-broadcast
    xo_ref[0] = x.astype(xo_ref.dtype)
    mo_ref[0] = (msum > 0).astype(mo_ref.dtype)


def _sparse_conv_fused_kernel(xs_ref, ms_ref, w_ref, b_ref, w2_ref, b2_ref,
                              xo_ref, mo_ref, yo_ref):
    acc = jnp.dot(w_ref[...], xs_ref[0], preferred_element_type=jnp.float32)
    msum = jnp.sum(ms_ref[0], axis=0, keepdims=True)
    mc = 1.0 / jnp.maximum(msum, 1e-5)
    x = acc * mc + b_ref[...]
    xo_ref[0] = x.astype(xo_ref.dtype)
    mo_ref[0] = (msum > 0).astype(mo_ref.dtype)
    # fused plain 1x1 Conv2d (Conv1 / Conv2) on the SparseConv output
    y = jnp.dot(w2_ref[...], x.astype(w2_ref.dtype),
                preferred_element_type=jnp.float32) + b2_ref[...]
    yo_ref[0] = y.astype(yo_ref.dtype)


def sparse_conv(x, m, w_flat, bias, k, conv_w=None, conv_b=None):
    """SparseConv (NCHW), optionally fused with a trailing 1x1 Conv2d.

    x: (N,Cin,H,W), m: (N,1,H,W), w_flat: (Cout, k*k*Cin) ordered (dh,dw,cin),
    bias: (Cout,), conv_w: (C2, Cout), conv_b: (C2,).
    """
    N, Cin, H, W = x.shape
    Cout = w_flat.shape[0]
    KK = k * k
    pad = (k - 1) // 2
    xm = x * m                                   # SparseConv multiplies x by m first
    xp = jnp.pad(xm, ((0, 0), (0, 0), (pad, pad), (pad, pad)))
    mp = jnp.pad(m, ((0, 0), (0, 0), (pad, pad), (pad, pad)))
    # TODO(synk): im2col slab built wrapper-side (k*k HBM expansion of the input);
    # building it in-kernel from a resident padded tile would remove that traffic.
    xs = jnp.concatenate([xp[:, :, dh:dh + H, dw:dw + W]
                          for dh in range(k) for dw in range(k)], axis=1)
    ms = jnp.concatenate([mp[:, :, dh:dh + H, dw:dw + W]
                          for dh in range(k) for dw in range(k)], axis=1)
    HW = H * W
    xs = xs.reshape(N, KK * Cin, HW).astype(MATMUL_DTYPE)
    ms = ms.reshape(N, KK, HW)
    wq = w_flat.astype(MATMUL_DTYPE)
    bq = bias.reshape(Cout, 1)

    T = _spatial_tile(HW)
    NT = HW // T
    fused = conv_w is not None

    in_specs = [
        pl.BlockSpec((1, KK * Cin, T), lambda n, t: (n, 0, t)),
        pl.BlockSpec((1, KK, T), lambda n, t: (n, 0, t)),
        pl.BlockSpec((Cout, KK * Cin), lambda n, t: (0, 0)),
        pl.BlockSpec((Cout, 1), lambda n, t: (0, 0)),
    ]
    out_shapes = [jax.ShapeDtypeStruct((N, Cout, HW), jnp.float32),
                  jax.ShapeDtypeStruct((N, 1, HW), jnp.float32)]
    out_specs = [pl.BlockSpec((1, Cout, T), lambda n, t: (n, 0, t)),
                 pl.BlockSpec((1, 1, T), lambda n, t: (n, 0, t))]
    args = [xs, ms, wq, bq]

    if fused:
        C2 = conv_w.shape[0]
        in_specs += [pl.BlockSpec((C2, Cout), lambda n, t: (0, 0)),
                     pl.BlockSpec((C2, 1), lambda n, t: (0, 0))]
        out_shapes.append(jax.ShapeDtypeStruct((N, C2, HW), jnp.float32))
        out_specs.append(pl.BlockSpec((1, C2, T), lambda n, t: (n, 0, t)))
        args += [conv_w.astype(MATMUL_DTYPE), conv_b.reshape(C2, 1)]
        kernel = _sparse_conv_fused_kernel
    else:
        kernel = _sparse_conv_kernel

    outs = pl.pallas_call(
        kernel,
        out_shape=tuple(out_shapes),
        grid_spec=pltpu.PrefetchScalarGridSpec(
            num_scalar_prefetch=0,
            grid=(N, NT),
            in_specs=in_specs,
            out_specs=out_specs),
        compiler_params=pltpu.CompilerParams(
            dimension_semantics=("parallel", "parallel")),
    )(*args)

    out_x = outs[0].reshape(N, Cout, H, W)
    out_m = outs[1].reshape(N, 1, H, W)
    if fused:
        return out_x, out_m, outs[2].reshape(N, outs[2].shape[1], H, W)
    return out_x, out_m


# ---------------------------------------------------------------------------
# Kernel 2: SparseConcatConv -- one matmul against the row-stacked (3C, 2C)
# weight, gating on sublane slices of the (3C, T) result, fused mask merge.
# ---------------------------------------------------------------------------
def _concat_conv_kernel(xc_ref, m1_ref, m2_ref, w_ref, xo_ref, mo_ref):
    c = xo_ref.shape[-2]
    y = jnp.dot(w_ref[...], xc_ref[0], preferred_element_type=jnp.float32)  # (3C, T)
    m1 = m1_ref[0]                                                          # (1, T)
    m2 = m2_ref[0]
    p1 = (m1 > 0).astype(jnp.float32)
    p2 = (m2 > 0).astype(jnp.float32)
    z1 = (m1 == 0).astype(jnp.float32)
    z2 = (m2 == 0).astype(jnp.float32)
    out = (p1 * z2 * y[0:c]
           + z1 * p2 * y[c:2 * c]
           + p1 * p2 * y[2 * c:3 * c])          # bias param unused in torch forward
    xo_ref[0] = out.astype(xo_ref.dtype)
    mo_ref[0] = ((m1 + m2) > 0).astype(mo_ref.dtype)


def sparse_concat_conv(x1, m1, x2, m2, w_cat):
    """x1,x2: (N,C,H,W); m1,m2: (N,1,H,W); w_cat: (3C, 2C) = [Conv1; Conv2; Conv3]."""
    N, C, H, W = x1.shape
    HW = H * W
    xc = jnp.concatenate([x1, x2], axis=1).reshape(N, 2 * C, HW).astype(MATMUL_DTYPE)
    m1f = m1.reshape(N, 1, HW)
    m2f = m2.reshape(N, 1, HW)
    T = _spatial_tile(HW)
    NT = HW // T
    out_x, out_m = pl.pallas_call(
        _concat_conv_kernel,
        out_shape=(jax.ShapeDtypeStruct((N, C, HW), jnp.float32),
                   jax.ShapeDtypeStruct((N, 1, HW), jnp.float32)),
        grid_spec=pltpu.PrefetchScalarGridSpec(
            num_scalar_prefetch=0,
            grid=(N, NT),
            in_specs=[
                pl.BlockSpec((1, 2 * C, T), lambda n, t: (n, 0, t)),
                pl.BlockSpec((1, 1, T), lambda n, t: (n, 0, t)),
                pl.BlockSpec((1, 1, T), lambda n, t: (n, 0, t)),
                pl.BlockSpec((3 * C, 2 * C), lambda n, t: (0, 0)),
            ],
            out_specs=[pl.BlockSpec((1, C, T), lambda n, t: (n, 0, t)),
                       pl.BlockSpec((1, 1, T), lambda n, t: (n, 0, t))]),
        compiler_params=pltpu.CompilerParams(
            dimension_semantics=("parallel", "parallel")),
    )(xc, m1f, m2f, w_cat.astype(MATMUL_DTYPE))
    return out_x.reshape(N, C, H, W), out_m.reshape(N, 1, H, W)


# ---------------------------------------------------------------------------
# Kernel 3: fused SparseUpsample normalization (both scales) + the two chained
# SparseSum ops.  Inputs xu*/mu* are the RAW bilinear resizes of x*m and m;
# the kernel applies the exact sequential formula of the reference module.
# ---------------------------------------------------------------------------
def _upsum_kernel(x0_ref, m0_ref, xu1_ref, mu1_ref, xu2_ref, mu2_ref,
                  xo_ref, mo_ref):
    m0 = m0_ref[0]                                       # (1, T)
    mu1 = mu1_ref[0]
    mu2 = mu2_ref[0]
    # SparseUpsample finalize (exactly: x = Up(x*m)/clamp(Up(m)); m = (Up(m)>0))
    x1 = xu1_ref[0] * (1.0 / jnp.maximum(mu1, 1e-5))
    m1 = (mu1 > 0).astype(jnp.float32)
    x2 = xu2_ref[0] * (1.0 / jnp.maximum(mu2, 1e-5))
    m2 = (mu2 > 0).astype(jnp.float32)
    # Sum #1
    d1 = m0 + m1
    s1 = (x0_ref[0] * m0 + x1 * m1) * (1.0 / jnp.maximum(d1, 1e-5))
    ms1 = (d1 > 0).astype(jnp.float32)
    # Sum #2
    d2 = ms1 + m2
    out = (s1 * ms1 + x2 * m2) * (1.0 / jnp.maximum(d2, 1e-5))
    xo_ref[0] = out.astype(xo_ref.dtype)
    mo_ref[0] = (d2 > 0).astype(mo_ref.dtype)


def sparse_upsum(x0, m0, xu1, mu1, xu2, mu2):
    N, C, H, W = x0.shape
    HW = H * W
    T = _spatial_tile(HW)
    NT = HW // T
    fx = lambda a: a.reshape(N, a.shape[1], HW)
    xspec = pl.BlockSpec((1, C, T), lambda n, t: (n, 0, t))
    mspec = pl.BlockSpec((1, 1, T), lambda n, t: (n, 0, t))
    out_x, out_m = pl.pallas_call(
        _upsum_kernel,
        out_shape=(jax.ShapeDtypeStruct((N, C, HW), jnp.float32),
                   jax.ShapeDtypeStruct((N, 1, HW), jnp.float32)),
        grid_spec=pltpu.PrefetchScalarGridSpec(
            num_scalar_prefetch=0,
            grid=(N, NT),
            in_specs=[xspec, mspec, xspec, mspec, xspec, mspec],
            out_specs=[xspec, mspec]),
        compiler_params=pltpu.CompilerParams(
            dimension_semantics=("parallel", "parallel")),
    )(fx(x0), fx(m0), fx(xu1), fx(mu1), fx(xu2), fx(mu2))
    return out_x.reshape(N, C, H, W), out_m.reshape(N, 1, H, W)


# ---------------------------------------------------------------------------
# Plain-JAX glue: SparseMaxPool and the raw bilinear resize (data movement).
# ---------------------------------------------------------------------------
def sparse_maxpool(x, m, ks):
    # TODO(synk): 2x2/4x4 max-pool kept in plain JAX (tiny reduce_window op).
    xm = x * m
    win = (1, 1, ks, ks)
    xp = lax.reduce_window(xm, -jnp.inf, lax.max, win, win, "VALID")
    mp = lax.reduce_window(m, -jnp.inf, lax.max, win, win, "VALID")
    return xp * (1.0 / jnp.maximum(mp, 1e-5)), mp


def upsample_raw(x, m, scale):
    # TODO(synk): bilinear resize kept in plain JAX (jax.image.resize matches the
    # torch Upsample(align_corners=False) half-pixel convention); the sparse
    # normalization / binarization is fused into the sum kernel above.
    N, C, H, W = x.shape
    xu = jax.image.resize(x * m, (N, C, H * scale, W * scale), method="bilinear")
    mu = jax.image.resize(m, (N, 1, H * scale, W * scale), method="bilinear")
    return xu, mu


# ---------------------------------------------------------------------------
# ThreeScaleBlock forward (accepts / returns NCHW like the PyTorch module).
# ---------------------------------------------------------------------------
def three_scale_block_forward(params, x_low, m_low, x_mid, m_mid, x_high, m_high):
    k = params["k"]
    ms_scale = params["mid_scale"]
    hs_scale = params["high_scale"]

    # SConv1
    x_low, m_low = sparse_conv(x_low, m_low, params["sconv1_w"], params["sconv1_b"], k)
    # MaxPool_M + CC1
    xm_, mm_ = sparse_maxpool(x_low, m_low, ms_scale)
    x_mid, m_mid = sparse_concat_conv(xm_, mm_, x_mid, m_mid, params["cc1_w"])
    # MaxPool_H + CC2
    xh_, mh_ = sparse_maxpool(x_low, m_low, hs_scale)
    x_high, m_high = sparse_concat_conv(xh_, mh_, x_high, m_high, params["cc2_w"])
    # SConv2 fused with Conv1 (middle scale)
    x_mid, m_mid, xm_ = sparse_conv(x_mid, m_mid, params["sconv2_w"], params["sconv2_b"],
                                    k, conv_w=params["conv1_w"], conv_b=params["conv1_b"])
    # SConv3 fused with Conv2 (high scale)
    x_high, m_high, xh_ = sparse_conv(x_high, m_high, params["sconv3_w"], params["sconv3_b"],
                                      k, conv_w=params["conv2_w"], conv_b=params["conv2_b"])
    # Raw bilinear upsamples back to the low scale (normalization fused below)
    xu_m, mu_m = upsample_raw(xm_, m_mid, ms_scale)
    xu_h, mu_h = upsample_raw(xh_, m_high, hs_scale)
    # Fused Upsample-finalize + chained SparseSum:
    #   Sum(Sum(x_low, m_low, Up_M(...)), Up_H(...))
    x_low, m_low = sparse_upsum(x_low, m_low, xu_m, mu_m, xu_h, mu_h)

    return x_low, m_low, x_mid, m_mid, x_high, m_high


# ---------------------------------------------------------------------------
# Deterministic parameter init (matching the PyTorch __init__ statistics).
# ---------------------------------------------------------------------------
def init_params(key, k=5, c=16, mid_scale=2, high_scale=4):
    keys = jax.random.split(key, 9)
    kk = k * k
    # kaiming_normal_(mode='fan_out', relu): std = sqrt(2 / (Cout * kh * kw))
    std_k = (2.0 / (c * kk)) ** 0.5
    std_1 = (2.0 / (c * 1 * 1)) ** 0.5

    def sconv_w(kx):
        # (Cout, K) with K ordered (dh, dw, cin) to match the im2col slab.
        return std_k * jax.random.normal(kx, (c, kk * c), jnp.float32)

    # nn.Conv2d default init (kaiming_uniform a=sqrt(5)) -> U(-1/sqrt(fan_in), .)
    bound = 1.0 / (c ** 0.5)
    return dict(
        k=k, mid_scale=mid_scale, high_scale=high_scale,
        sconv1_w=sconv_w(keys[0]), sconv1_b=jnp.zeros((c,), jnp.float32),
        sconv2_w=sconv_w(keys[1]), sconv2_b=jnp.zeros((c,), jnp.float32),
        sconv3_w=sconv_w(keys[2]), sconv3_b=jnp.zeros((c,), jnp.float32),
        # (3C, 2C) = rows [Conv1; Conv2; Conv3]
        cc1_w=std_1 * jax.random.normal(keys[3], (3 * c, 2 * c), jnp.float32),
        cc2_w=std_1 * jax.random.normal(keys[4], (3 * c, 2 * c), jnp.float32),
        # plain 1x1 convs: (Cout, Cin)
        conv1_w=jax.random.uniform(keys[5], (c, c), jnp.float32, -bound, bound),
        conv1_b=jax.random.uniform(keys[6], (c,), jnp.float32, -bound, bound),
        conv2_w=jax.random.uniform(keys[7], (c, c), jnp.float32, -bound, bound),
        conv2_b=jax.random.uniform(keys[8], (c,), jnp.float32, -bound, bound),
    )


if __name__ == "__main__":
    key = jax.random.PRNGKey(0)
    pkey, k1, k2, k3, k4, k5, k6 = jax.random.split(key, 7)
    params = init_params(pkey, k=5, c=16)

    N, C, H, W = 2, 16, 16, 16
    Hm, Wm = H // 2, W // 2
    Hh, Wh = H // 4, W // 4
    x_low = jax.random.normal(k1, (N, C, H, W), jnp.float32)
    m_low = (jax.random.uniform(k2, (N, 1, H, W)) > 0.3).astype(jnp.float32)
    x_mid = jax.random.normal(k3, (N, C, Hm, Wm), jnp.float32)
    m_mid = (jax.random.uniform(k4, (N, 1, Hm, Wm)) > 0.3).astype(jnp.float32)
    x_high = jax.random.normal(k5, (N, C, Hh, Wh), jnp.float32)
    m_high = (jax.random.uniform(k6, (N, 1, Hh, Wh)) > 0.3).astype(jnp.float32)

    fwd = jax.jit(functools.partial(three_scale_block_forward, params))
    outs = fwd(x_low, m_low, x_mid, m_mid, x_high, m_high)
    jax.block_until_ready(outs)
    print("KERNEL_OK")
</pallas_src>

<mosaic_0001>
module attributes {stable_mosaic.version = 11 : i64} {
  func.func @_sparse_conv_kernel(%arg0: i32, %arg1: i32, %arg2: memref<1x400x256xbf16, #tpu.memory_space<vmem>>, %arg3: memref<1x25x256xf32, #tpu.memory_space<vmem>>, %arg4: memref<16x400xbf16, #tpu.memory_space<vmem>>, %arg5: memref<16x1xf32, #tpu.memory_space<vmem>>, %arg6: memref<1x16x256xf32, #tpu.memory_space<vmem>>, %arg7: memref<1x1x256xf32, #tpu.memory_space<vmem>>) attributes {dimension_semantics = [#tpu.dimension_semantics<parallel>, #tpu.dimension_semantics<parallel>], iteration_bounds = array<i64: 2, 1>, scalar_prefetch = 0 : i64, scratch_operands = 0 : i64, tpu.core_type = #tpu.core_type<tc>, window_params = [{transform_indices = @transform_0, window_bounds = array<i64: 1, 400, 256>}, {transform_indices = @transform_1, window_bounds = array<i64: 1, 25, 256>}, {pipeline_mode = #tpu.pipeline_mode<synchronous>, transform_indices = @transform_2, window_bounds = array<i64: 16, 400>}, {pipeline_mode = #tpu.pipeline_mode<synchronous>, transform_indices = @transform_3, window_bounds = array<i64: 16, 1>}, {transform_indices = @transform_4, window_bounds = array<i64: 1, 16, 256>}, {transform_indices = @transform_5, window_bounds = array<i64: 1, 1, 256>}]} {
    %c0 = arith.constant 0 : index
    %c0_0 = arith.constant 0 : index
    %0 = vector.load %arg4[%c0, %c0_0] : memref<16x400xbf16, #tpu.memory_space<vmem>>, vector<16x400xbf16>
    %c0_1 = arith.constant 0 : index
    %c0_2 = arith.constant 0 : index
    %c0_3 = arith.constant 0 : index
    %1 = vector.load %arg2[%c0_1, %c0_2, %c0_3] : memref<1x400x256xbf16, #tpu.memory_space<vmem>>, vector<1x400x256xbf16>
    %2 = vector.shape_cast %1 : vector<1x400x256xbf16> to vector<400x256xbf16>
    %cst = arith.constant dense<0.000000e+00> : vector<16x256xf32>
    %3 = tpu.matmul %0, %2, %cst {dimension_numbers = #tpu.dot_dimension_numbers<[1], [0], [0], [1], [0, 0, 1, 1], [], []>} : vector<16x400xbf16>, vector<400x256xbf16>, vector<16x256xf32> -> vector<16x256xf32>
    %c0_4 = arith.constant 0 : index
    %c0_5 = arith.constant 0 : index
    %c0_6 = arith.constant 0 : index
    %4 = vector.load %arg3[%c0_4, %c0_5, %c0_6] : memref<1x25x256xf32, #tpu.memory_space<vmem>>, vector<1x25x256xf32>
    %5 = vector.shape_cast %4 : vector<1x25x256xf32> to vector<25x256xf32>
    %cst_7 = arith.constant dense<0.000000e+00> : vector<256xf32>
    %6 = vector.multi_reduction <add>, %5, %cst_7 [0] : vector<25x256xf32> to vector<256xf32>
    %7 = vector.shape_cast %6 : vector<256xf32> to vector<1x256xf32>
    %cst_8 = arith.constant 9.99999974E-6 : f32
    %8 = vector.broadcast %cst_8 : f32 to vector<1x256xf32>
    %9 = arith.maximumf %7, %8 : vector<1x256xf32>
    %cst_9 = arith.constant 1.000000e+00 : f32
    %10 = vector.broadcast %cst_9 : f32 to vector<1x256xf32>
    %11 = arith.divf %10, %9 : vector<1x256xf32>
    %12 = vector.broadcast %11 : vector<1x256xf32> to vector<16x256xf32>
    %13 = arith.mulf %3, %12 : vector<16x256xf32>
    %c0_10 = arith.constant 0 : index
    %c0_11 = arith.constant 0 : index
    %14 = vector.load %arg5[%c0_10, %c0_11] : memref<16x1xf32, #tpu.memory_space<vmem>>, vector<16x1xf32>
    %15 = vector.broadcast %14 : vector<16x1xf32> to vector<16x256xf32>
    %16 = arith.addf %13, %15 : vector<16x256xf32>
    %c0_12 = arith.constant 0 : index
    %c0_13 = arith.constant 0 : index
    %c0_14 = arith.constant 0 : index
    %17 = vector.load %arg6[%c0_12, %c0_13, %c0_14] : memref<1x16x256xf32, #tpu.memory_space<vmem>>, vector<1x16x256xf32>
    %18 = vector.shape_cast %17 : vector<1x16x256xf32> to vector<16x256xf32>
    %19 = vector.shape_cast %16 : vector<16x256xf32> to vector<1x16x256xf32>
    tpu.vector_store %arg6[%c0_12, %c0_13, %c0_14], %19 {strides = array<i32>} : memref<1x16x256xf32, #tpu.memory_space<vmem>>, vector<1x16x256xf32>,
    %cst_15 = arith.constant 0.000000e+00 : f32
    %20 = vector.broadcast %cst_15 : f32 to vector<1x256xf32>
    %21 = arith.cmpf ogt, %7, %20 : vector<1x256xf32>
    %22 = arith.extui %21 : vector<1x256xi1> to vector<1x256xi32>
    %23 = arith.sitofp %22 : vector<1x256xi32> to vector<1x256xf32>
    %c0_16 = arith.constant 0 : index
    %c0_17 = arith.constant 0 : index
    %c0_18 = arith.constant 0 : index
    %24 = vector.load %arg7[%c0_16, %c0_17, %c0_18] : memref<1x1x256xf32, #tpu.memory_space<vmem>>, vector<1x1x256xf32>
    %25 = vector.shape_cast %24 : vector<1x1x256xf32> to vector<1x256xf32>
    %26 = vector.shape_cast %23 : vector<1x256xf32> to vector<1x1x256xf32>
    tpu.vector_store %arg7[%c0_16, %c0_17, %c0_18], %26 {strides = array<i32>} : memref<1x1x256xf32, #tpu.memory_space<vmem>>, vector<1x1x256xf32>,
    return
  }
  func.func @transform_0(%arg0: i32, %arg1: i32) -> (i32, i32, i32) {
    %c0_i32 = arith.constant 0 : i32
    %c0_i32_0 = arith.constant 0 : i32
    return %arg0, %c0_i32, %arg1 : i32, i32, i32
  }
  func.func @transform_1(%arg0: i32, %arg1: i32) -> (i32, i32, i32) {
    %c0_i32 = arith.constant 0 : i32
    %c0_i32_0 = arith.constant 0 : i32
    return %arg0, %c0_i32, %arg1 : i32, i32, i32
  }
  func.func @transform_2(%arg0: i32, %arg1: i32) -> (i32, i32) {
    %c0_i32 = arith.constant 0 : i32
    %c0_i32_0 = arith.constant 0 : i32
    %c0_i32_1 = arith.constant 0 : i32
    return %c0_i32, %c0_i32_0 : i32, i32
  }
  func.func @transform_3(%arg0: i32, %arg1: i32) -> (i32, i32) {
    %c0_i32 = arith.constant 0 : i32
    %c0_i32_0 = arith.constant 0 : i32
    %c0_i32_1 = arith.constant 0 : i32
    return %c0_i32, %c0_i32_0 : i32, i32
  }
  func.func @transform_4(%arg0: i32, %arg1: i32) -> (i32, i32, i32) {
    %c0_i32 = arith.constant 0 : i32
    %c0_i32_0 = arith.constant 0 : i32
    return %arg0, %c0_i32, %arg1 : i32, i32, i32
  }
  func.func @transform_5(%arg0: i32, %arg1: i32) -> (i32, i32, i32) {
    %c0_i32 = arith.constant 0 : i32
    %c0_i32_0 = arith.constant 0 : i32
    return %arg0, %c0_i32, %arg1 : i32, i32, i32
  }
}

module attributes {stable_mosaic.version = 11 : i64} {
  func.func @_concat_conv_kernel(%arg0: i32, %arg1: i32, %arg2: memref<1x32x16xbf16, #tpu.memory_space<vmem>>, %arg3: memref<1x1x16xf32, #tpu.memory_space<vmem>>, %arg4: memref<1x1x16xf32, #tpu.memory_space<vmem>>, %arg5: memref<48x32xbf16, #tpu.memory_space<vmem>>, %arg6: memref<1x16x16xf32, #tpu.memory_space<vmem>>, %arg7: memref<1x1x16xf32, #tpu.memory_space<vmem>>) attributes {dimension_semantics = [#tpu.dimension_semantics<parallel>, #tpu.dimension_semantics<parallel>], iteration_bounds = array<i64: 2, 1>, scalar_prefetch = 0 : i64, scratch_operands = 0 : i64, tpu.core_type = #tpu.core_type<tc>, window_params = [{transform_indices = @transform_0, window_bounds = array<i64: 1, 32, 16>}, {transform_indices = @transform_1, window_bounds = array<i64: 1, 1, 16>}, {transform_indices = @transform_2, window_bounds = array<i64: 1, 1, 16>}, {pipeline_mode = #tpu.pipeline_mode<synchronous>, transform_indices = @transform_3, window_bounds = array<i64: 48, 32>}, {transform_indices = @transform_4, window_bounds = array<i64: 1, 16, 16>}, {transform_indices = @transform_5, window_bounds = array<i64: 1, 1, 16>}]} {
    %c0 = arith.constant 0 : index
    %c0_0 = arith.constant 0 : index
    %0 = vector.load %arg5[%c0, %c0_0] : memref<48x32xbf16, #tpu.memory_space<vmem>>, vector<48x32xbf16>
    %c0_1 = arith.constant 0 : index
    %c0_2 = arith.constant 0 : index
    %c0_3 = arith.constant 0 : index
    %1 = vector.load %arg2[%c0_1, %c0_2, %c0_3] : memref<1x32x16xbf16, #tpu.memory_space<vmem>>, vector<1x32x16xbf16>
    %2 = vector.shape_cast %1 : vector<1x32x16xbf16> to vector<32x16xbf16>
    %cst = arith.constant dense<0.000000e+00> : vector<48x16xf32>
    %3 = tpu.matmul %0, %2, %cst {dimension_numbers = #tpu.dot_dimension_numbers<[1], [0], [0], [1], [0, 0, 1, 1], [], []>} : vector<48x32xbf16>, vector<32x16xbf16>, vector<48x16xf32> -> vector<48x16xf32>
    %c0_4 = arith.constant 0 : index
    %c0_5 = arith.constant 0 : index
    %c0_6 = arith.constant 0 : index
    %4 = vector.load %arg3[%c0_4, %c0_5, %c0_6] : memref<1x1x16xf32, #tpu.memory_space<vmem>>, vector<1x1x16xf32>
    %5 = vector.shape_cast %4 : vector<1x1x16xf32> to vector<1x16xf32>
    %c0_7 = arith.constant 0 : index
    %c0_8 = arith.constant 0 : index
    %c0_9 = arith.constant 0 : index
    %6 = vector.load %arg4[%c0_7, %c0_8, %c0_9] : memref<1x1x16xf32, #tpu.memory_space<vmem>>, vector<1x1x16xf32>
    %7 = vector.shape_cast %6 : vector<1x1x16xf32> to vector<1x16xf32>
    %cst_10 = arith.constant 0.000000e+00 : f32
    %8 = vector.broadcast %cst_10 : f32 to vector<1x16xf32>
    %9 = arith.cmpf ogt, %5, %8 : vector<1x16xf32>
    %10 = arith.extui %9 : vector<1x16xi1> to vector<1x16xi32>
    %11 = arith.sitofp %10 : vector<1x16xi32> to vector<1x16xf32>
    %cst_11 = arith.constant 0.000000e+00 : f32
    %12 = vector.broadcast %cst_11 : f32 to vector<1x16xf32>
    %13 = arith.cmpf ogt, %7, %12 : vector<1x16xf32>
    %14 = arith.extui %13 : vector<1x16xi1> to vector<1x16xi32>
    %15 = arith.sitofp %14 : vector<1x16xi32> to vector<1x16xf32>
    %cst_12 = arith.constant 0.000000e+00 : f32
    %16 = vector.broadcast %cst_12 : f32 to vector<1x16xf32>
    %17 = arith.cmpf oeq, %5, %16 : vector<1x16xf32>
    %18 = arith.extui %17 : vector<1x16xi1> to vector<1x16xi32>
    %19 = arith.sitofp %18 : vector<1x16xi32> to vector<1x16xf32>
    %cst_13 = arith.constant 0.000000e+00 : f32
    %20 = vector.broadcast %cst_13 : f32 to vector<1x16xf32>
    %21 = arith.cmpf oeq, %7, %20 : vector<1x16xf32>
    %22 = arith.extui %21 : vector<1x16xi1> to vector<1x16xi32>
    %23 = arith.sitofp %22 : vector<1x16xi32> to vector<1x16xf32>
    %24 = arith.mulf %11, %23 : vector<1x16xf32>
    %25 = vector.extract_strided_slice %3 {offsets = [0, 0], sizes = [16, 16], strides = [1, 1]} : vector<48x16xf32> to vector<16x16xf32>
    %26 = vector.broadcast %24 : vector<1x16xf32> to vector<16x16xf32>
    %27 = arith.mulf %26, %25 : vector<16x16xf32>
    %28 = arith.mulf %19, %15 : vector<1x16xf32>
    %29 = vector.extract_strided_slice %3 {offsets = [16, 0], sizes = [16, 16], strides = [1, 1]} : vector<48x16xf32> to vector<16x16xf32>
    %30 = vector.broadcast %28 : vector<1x16xf32> to vector<16x16xf32>
    %31 = arith.mulf %30, %29 : vector<16x16xf32>
    %32 = arith.addf %27, %31 : vector<16x16xf32>
    %33 = arith.mulf %11, %15 : vector<1x16xf32>
    %34 = vector.extract_strided_slice %3 {offsets = [32, 0], sizes = [16, 16], strides = [1, 1]} : vector<48x16xf32> to vector<16x16xf32>
    %35 = vector.broadcast %33 : vector<1x16xf32> to vector<16x16xf32>
    %36 = arith.mulf %35, %34 : vector<16x16xf32>
    %37 = arith.addf %32, %36 : vector<16x16xf32>
    %c0_14 = arith.constant 0 : index
    %c0_15 = arith.constant 0 : index
    %c0_16 = arith.constant 0 : index
    %38 = vector.load %arg6[%c0_14, %c0_15, %c0_16] : memref<1x16x16xf32, #tpu.memory_space<vmem>>, vector<1x16x16xf32>
    %39 = vector.shape_cast %38 : vector<1x16x16xf32> to vector<16x16xf32>
    %40 = vector.shape_cast %37 : vector<16x16xf32> to vector<1x16x16xf32>
    tpu.vector_store %arg6[%c0_14, %c0_15, %c0_16], %40 {strides = array<i32>} : memref<1x16x16xf32, #tpu.memory_space<vmem>>, vector<1x16x16xf32>,
    %41 = arith.addf %5, %7 : vector<1x16xf32>
    %cst_17 = arith.constant 0.000000e+00 : f32
    %42 = vector.broadcast %cst_17 : f32 to vector<1x16xf32>
    %43 = arith.cmpf ogt, %41, %42 : vector<1x16xf32>
    %44 = arith.extui %43 : vector<1x16xi1> to vector<1x16xi32>
    %45 = arith.sitofp %44 : vector<1x16xi32> to vector<1x16xf32>
    %c0_18 = arith.constant 0 : index
    %c0_19 = arith.constant 0 : index
    %c0_20 = arith.constant 0 : index
    %46 = vector.load %arg7[%c0_18, %c0_19, %c0_20] : memref<1x1x16xf32, #tpu.memory_space<vmem>>, vector<1x1x16xf32>
    %47 = vector.shape_cast %46 : vector<1x1x16xf32> to vector<1x16xf32>
    %48 = vector.shape_cast %45 : vector<1x16xf32> to vector<1x1x16xf32>
    tpu.vector_store %arg7[%c0_18, %c0_19, %c0_20], %48 {strides = array<i32>} : memref<1x1x16xf32, #tpu.memory_space<vmem>>, vector<1x1x16xf32>,
    return
  }
  func.func @transform_0(%arg0: i32, %arg1: i32) -> (i32, i32, i32) {
    %c0_i32 = arith.constant 0 : i32
    %c0_i32_0 = arith.constant 0 : i32
    return %arg0, %c0_i32, %arg1 : i32, i32, i32
  }
  func.func @transform_1(%arg0: i32, %arg1: i32) -> (i32, i32, i32) {
    %c0_i32 = arith.constant 0 : i32
    %c0_i32_0 = arith.constant 0 : i32
    return %arg0, %c0_i32, %arg1 : i32, i32, i32
  }
  func.func @transform_2(%arg0: i32, %arg1: i32) -> (i32, i32, i32) {
    %c0_i32 = arith.constant 0 : i32
    %c0_i32_0 = arith.constant 0 : i32
    return %arg0, %c0_i32, %arg1 : i32, i32, i32
  }
  func.func @transform_3(%arg0: i32, %arg1: i32) -> (i32, i32) {
    %c0_i32 = arith.constant 0 : i32
    %c0_i32_0 = arith.constant 0 : i32
    %c0_i32_1 = arith.constant 0 : i32
    return %c0_i32, %c0_i32_0 : i32, i32
  }
  func.func @transform_4(%arg0: i32, %arg1: i32) -> (i32, i32, i32) {
    %c0_i32 = arith.constant 0 : i32
    %c0_i32_0 = arith.constant 0 : i32
    return %arg0, %c0_i32, %arg1 : i32, i32, i32
  }
  func.func @transform_5(%arg0: i32, %arg1: i32) -> (i32, i32, i32) {
    %c0_i32 = arith.constant 0 : i32
    %c0_i32_0 = arith.constant 0 : i32
    return %arg0, %c0_i32, %arg1 : i32, i32, i32
  }
}

module attributes {stable_mosaic.version = 11 : i64} {
  func.func @_sparse_conv_fused_kernel(%arg0: i32, %arg1: i32, %arg2: memref<1x400x16xbf16, #tpu.memory_space<vmem>>, %arg3: memref<1x25x16xf32, #tpu.memory_space<vmem>>, %arg4: memref<16x400xbf16, #tpu.memory_space<vmem>>, %arg5: memref<16x1xf32, #tpu.memory_space<vmem>>, %arg6: memref<16x16xbf16, #tpu.memory_space<vmem>>, %arg7: memref<16x1xf32, #tpu.memory_space<vmem>>, %arg8: memref<1x16x16xf32, #tpu.memory_space<vmem>>, %arg9: memref<1x1x16xf32, #tpu.memory_space<vmem>>, %arg10: memref<1x16x16xf32, #tpu.memory_space<vmem>>) attributes {dimension_semantics = [#tpu.dimension_semantics<parallel>, #tpu.dimension_semantics<parallel>], iteration_bounds = array<i64: 2, 1>, scalar_prefetch = 0 : i64, scratch_operands = 0 : i64, tpu.core_type = #tpu.core_type<tc>, window_params = [{transform_indices = @transform_0, window_bounds = array<i64: 1, 400, 16>}, {transform_indices = @transform_1, window_bounds = array<i64: 1, 25, 16>}, {pipeline_mode = #tpu.pipeline_mode<synchronous>, transform_indices = @transform_2, window_bounds = array<i64: 16, 400>}, {pipeline_mode = #tpu.pipeline_mode<synchronous>, transform_indices = @transform_3, window_bounds = array<i64: 16, 1>}, {pipeline_mode = #tpu.pipeline_mode<synchronous>, transform_indices = @transform_4, window_bounds = array<i64: 16, 16>}, {pipeline_mode = #tpu.pipeline_mode<synchronous>, transform_indices = @transform_5, window_bounds = array<i64: 16, 1>}, {transform_indices = @transform_6, window_bounds = array<i64: 1, 16, 16>}, {transform_indices = @transform_7, window_bounds = array<i64: 1, 1, 16>}, {transform_indices = @transform_8, window_bounds = array<i64: 1, 16, 16>}]} {
    %c0 = arith.constant 0 : index
    %c0_0 = arith.constant 0 : index
    %0 = vector.load %arg4[%c0, %c0_0] : memref<16x400xbf16, #tpu.memory_space<vmem>>, vector<16x400xbf16>
    %c0_1 = arith.constant 0 : index
    %c0_2 = arith.constant 0 : index
    %c0_3 = arith.constant 0 : index
    %1 = vector.load %arg2[%c0_1, %c0_2, %c0_3] : memref<1x400x16xbf16, #tpu.memory_space<vmem>>, vector<1x400x16xbf16>
    %2 = vector.shape_cast %1 : vector<1x400x16xbf16> to vector<400x16xbf16>
    %cst = arith.constant dense<0.000000e+00> : vector<16x16xf32>
    %3 = tpu.matmul %0, %2, %cst {dimension_numbers = #tpu.dot_dimension_numbers<[1], [0], [0], [1], [0, 0, 1, 1], [], []>} : vector<16x400xbf16>, vector<400x16xbf16>, vector<16x16xf32> -> vector<16x16xf32>
    %c0_4 = arith.constant 0 : index
    %c0_5 = arith.constant 0 : index
    %c0_6 = arith.constant 0 : index
    %4 = vector.load %arg3[%c0_4, %c0_5, %c0_6] : memref<1x25x16xf32, #tpu.memory_space<vmem>>, vector<1x25x16xf32>
    %5 = vector.shape_cast %4 : vector<1x25x16xf32> to vector<25x16xf32>
    %cst_7 = arith.constant dense<0.000000e+00> : vector<16xf32>
    %6 = vector.multi_reduction <add>, %5, %cst_7 [0] : vector<25x16xf32> to vector<16xf32>
    %7 = vector.shape_cast %6 : vector<16xf32> to vector<1x16xf32>
    %cst_8 = arith.constant 9.99999974E-6 : f32
    %8 = vector.broadcast %cst_8 : f32 to vector<1x16xf32>
    %9 = arith.maximumf %7, %8 : vector<1x16xf32>
    %cst_9 = arith.constant 1.000000e+00 : f32
    %10 = vector.broadcast %cst_9 : f32 to vector<1x16xf32>
    %11 = arith.divf %10, %9 : vector<1x16xf32>
    %12 = vector.broadcast %11 : vector<1x16xf32> to vector<16x16xf32>
    %13 = arith.mulf %3, %12 : vector<16x16xf32>
    %c0_10 = arith.constant 0 : index
    %c0_11 = arith.constant 0 : index
    %14 = vector.load %arg5[%c0_10, %c0_11] : memref<16x1xf32, #tpu.memory_space<vmem>>, vector<16x1xf32>
    %15 = vector.broadcast %14 : vector<16x1xf32> to vector<16x16xf32>
    %16 = arith.addf %13, %15 : vector<16x16xf32>
    %c0_12 = arith.constant 0 : index
    %c0_13 = arith.constant 0 : index
    %c0_14 = arith.constant 0 : index
    %17 = vector.load %arg8[%c0_12, %c0_13, %c0_14] : memref<1x16x16xf32, #tpu.memory_space<vmem>>, vector<1x16x16xf32>
    %18 = vector.shape_cast %17 : vector<1x16x16xf32> to vector<16x16xf32>
    %19 = vector.shape_cast %16 : vector<16x16xf32> to vector<1x16x16xf32>
    tpu.vector_store %arg8[%c0_12, %c0_13, %c0_14], %19 {strides = array<i32>} : memref<1x16x16xf32, #tpu.memory_space<vmem>>, vector<1x16x16xf32>,
    %cst_15 = arith.constant 0.000000e+00 : f32
    %20 = vector.broadcast %cst_15 : f32 to vector<1x16xf32>
    %21 = arith.cmpf ogt, %7, %20 : vector<1x16xf32>
    %22 = arith.extui %21 : vector<1x16xi1> to vector<1x16xi32>
    %23 = arith.sitofp %22 : vector<1x16xi32> to vector<1x16xf32>
    %c0_16 = arith.constant 0 : index
    %c0_17 = arith.constant 0 : index
    %c0_18 = arith.constant 0 : index
    %24 = vector.load %arg9[%c0_16, %c0_17, %c0_18] : memref<1x1x16xf32, #tpu.memory_space<vmem>>, vector<1x1x16xf32>
    %25 = vector.shape_cast %24 : vector<1x1x16xf32> to vector<1x16xf32>
    %26 = vector.shape_cast %23 : vector<1x16xf32> to vector<1x1x16xf32>
    tpu.vector_store %arg9[%c0_16, %c0_17, %c0_18], %26 {strides = array<i32>} : memref<1x1x16xf32, #tpu.memory_space<vmem>>, vector<1x1x16xf32>,
    %c0_19 = arith.constant 0 : index
    %c0_20 = arith.constant 0 : index
    %27 = vector.load %arg6[%c0_19, %c0_20] : memref<16x16xbf16, #tpu.memory_space<vmem>>, vector<16x16xbf16>
    %28 = arith.truncf %16 : vector<16x16xf32> to vector<16x16xbf16>
    %cst_21 = arith.constant dense<0.000000e+00> : vector<16x16xf32>
    %29 = tpu.matmul %27, %28, %cst_21 {dimension_numbers = #tpu.dot_dimension_numbers<[1], [0], [0], [1], [0, 0, 1, 1], [], []>} : vector<16x16xbf16>, vector<16x16xbf16>, vector<16x16xf32> -> vector<16x16xf32>
    %c0_22 = arith.constant 0 : index
    %c0_23 = arith.constant 0 : index
    %30 = vector.load %arg7[%c0_22, %c0_23] : memref<16x1xf32, #tpu.memory_space<vmem>>, vector<16x1xf32>
    %31 = vector.broadcast %30 : vector<16x1xf32> to vector<16x16xf32>
    %32 = arith.addf %29, %31 : vector<16x16xf32>
    %c0_24 = arith.constant 0 : index
    %c0_25 = arith.constant 0 : index
    %c0_26 = arith.constant 0 : index
    %33 = vector.load %arg10[%c0_24, %c0_25, %c0_26] : memref<1x16x16xf32, #tpu.memory_space<vmem>>, vector<1x16x16xf32>
    %34 = vector.shape_cast %33 : vector<1x16x16xf32> to vector<16x16xf32>
    %35 = vector.shape_cast %32 : vector<16x16xf32> to vector<1x16x16xf32>
    tpu.vector_store %arg10[%c0_24, %c0_25, %c0_26], %35 {strides = array<i32>} : memref<1x16x16xf32, #tpu.memory_space<vmem>>, vector<1x16x16xf32>,
    return
  }
  func.func @transform_0(%arg0: i32, %arg1: i32) -> (i32, i32, i32) {
    %c0_i32 = arith.constant 0 : i32
    %c0_i32_0 = arith.constant 0 : i32
    return %arg0, %c0_i32, %arg1 : i32, i32, i32
  }
  func.func @transform_1(%arg0: i32, %arg1: i32) -> (i32, i32, i32) {
    %c0_i32 = arith.constant 0 : i32
    %c0_i32_0 = arith.constant 0 : i32
    return %arg0, %c0_i32, %arg1 : i32, i32, i32
  }
  func.func @transform_2(%arg0: i32, %arg1: i32) -> (i32, i32) {
    %c0_i32 = arith.constant 0 : i32
    %c0_i32_0 = arith.constant 0 : i32
    %c0_i32_1 = arith.constant 0 : i32
    return %c0_i32, %c0_i32_0 : i32, i32
  }
  func.func @transform_3(%arg0: i32, %arg1: i32) -> (i32, i32) {
    %c0_i32 = arith.constant 0 : i32
    %c0_i32_0 = arith.constant 0 : i32
    %c0_i32_1 = arith.constant 0 : i32
    return %c0_i32, %c0_i32_0 : i32, i32
  }
  func.func @transform_4(%arg0: i32, %arg1: i32) -> (i32, i32) {
    %c0_i32 = arith.constant 0 : i32
    %c0_i32_0 = arith.constant 0 : i32
    %c0_i32_1 = arith.constant 0 : i32
    return %c0_i32, %c0_i32_0 : i32, i32
  }
  func.func @transform_5(%arg0: i32, %arg1: i32) -> (i32, i32) {
    %c0_i32 = arith.constant 0 : i32
    %c0_i32_0 = arith.constant 0 : i32
    %c0_i32_1 = arith.constant 0 : i32
    return %c0_i32, %c0_i32_0 : i32, i32
  }
  func.func @transform_6(%arg0: i32, %arg1: i32) -> (i32, i32, i32) {
    %c0_i32 = arith.constant 0 : i32
    %c0_i32_0 = arith.constant 0 : i32
    return %arg0, %c0_i32, %arg1 : i32, i32, i32
  }
  func.func @transform_7(%arg0: i32, %arg1: i32) -> (i32, i32, i32) {
    %c0_i32 = arith.constant 0 : i32
    %c0_i32_0 = arith.constant 0 : i32
    return %arg0, %c0_i32, %arg1 : i32, i32, i32
  }
  func.func @transform_8(%arg0: i32, %arg1: i32) -> (i32, i32, i32) {
    %c0_i32 = arith.constant 0 : i32
    %c0_i32_0 = arith.constant 0 : i32
    return %arg0, %c0_i32, %arg1 : i32, i32, i32
  }
}

module attributes {stable_mosaic.version = 11 : i64} {
  func.func @_concat_conv_kernel(%arg0: i32, %arg1: i32, %arg2: memref<1x32x64xbf16, #tpu.memory_space<vmem>>, %arg3: memref<1x1x64xf32, #tpu.memory_space<vmem>>, %arg4: memref<1x1x64xf32, #tpu.memory_space<vmem>>, %arg5: memref<48x32xbf16, #tpu.memory_space<vmem>>, %arg6: memref<1x16x64xf32, #tpu.memory_space<vmem>>, %arg7: memref<1x1x64xf32, #tpu.memory_space<vmem>>) attributes {dimension_semantics = [#tpu.dimension_semantics<parallel>, #tpu.dimension_semantics<parallel>], iteration_bounds = array<i64: 2, 1>, scalar_prefetch = 0 : i64, scratch_operands = 0 : i64, tpu.core_type = #tpu.core_type<tc>, window_params = [{transform_indices = @transform_0, window_bounds = array<i64: 1, 32, 64>}, {transform_indices = @transform_1, window_bounds = array<i64: 1, 1, 64>}, {transform_indices = @transform_2, window_bounds = array<i64: 1, 1, 64>}, {pipeline_mode = #tpu.pipeline_mode<synchronous>, transform_indices = @transform_3, window_bounds = array<i64: 48, 32>}, {transform_indices = @transform_4, window_bounds = array<i64: 1, 16, 64>}, {transform_indices = @transform_5, window_bounds = array<i64: 1, 1, 64>}]} {
    %c0 = arith.constant 0 : index
    %c0_0 = arith.constant 0 : index
    %0 = vector.load %arg5[%c0, %c0_0] : memref<48x32xbf16, #tpu.memory_space<vmem>>, vector<48x32xbf16>
    %c0_1 = arith.constant 0 : index
    %c0_2 = arith.constant 0 : index
    %c0_3 = arith.constant 0 : index
    %1 = vector.load %arg2[%c0_1, %c0_2, %c0_3] : memref<1x32x64xbf16, #tpu.memory_space<vmem>>, vector<1x32x64xbf16>
    %2 = vector.shape_cast %1 : vector<1x32x64xbf16> to vector<32x64xbf16>
    %cst = arith.constant dense<0.000000e+00> : vector<48x64xf32>
    %3 = tpu.matmul %0, %2, %cst {dimension_numbers = #tpu.dot_dimension_numbers<[1], [0], [0], [1], [0, 0, 1, 1], [], []>} : vector<48x32xbf16>, vector<32x64xbf16>, vector<48x64xf32> -> vector<48x64xf32>
    %c0_4 = arith.constant 0 : index
    %c0_5 = arith.constant 0 : index
    %c0_6 = arith.constant 0 : index
    %4 = vector.load %arg3[%c0_4, %c0_5, %c0_6] : memref<1x1x64xf32, #tpu.memory_space<vmem>>, vector<1x1x64xf32>
    %5 = vector.shape_cast %4 : vector<1x1x64xf32> to vector<1x64xf32>
    %c0_7 = arith.constant 0 : index
    %c0_8 = arith.constant 0 : index
    %c0_9 = arith.constant 0 : index
    %6 = vector.load %arg4[%c0_7, %c0_8, %c0_9] : memref<1x1x64xf32, #tpu.memory_space<vmem>>, vector<1x1x64xf32>
    %7 = vector.shape_cast %6 : vector<1x1x64xf32> to vector<1x64xf32>
    %cst_10 = arith.constant 0.000000e+00 : f32
    %8 = vector.broadcast %cst_10 : f32 to vector<1x64xf32>
    %9 = arith.cmpf ogt, %5, %8 : vector<1x64xf32>
    %10 = arith.extui %9 : vector<1x64xi1> to vector<1x64xi32>
    %11 = arith.sitofp %10 : vector<1x64xi32> to vector<1x64xf32>
    %cst_11 = arith.constant 0.000000e+00 : f32
    %12 = vector.broadcast %cst_11 : f32 to vector<1x64xf32>
    %13 = arith.cmpf ogt, %7, %12 : vector<1x64xf32>
    %14 = arith.extui %13 : vector<1x64xi1> to vector<1x64xi32>
    %15 = arith.sitofp %14 : vector<1x64xi32> to vector<1x64xf32>
    %cst_12 = arith.constant 0.000000e+00 : f32
    %16 = vector.broadcast %cst_12 : f32 to vector<1x64xf32>
    %17 = arith.cmpf oeq, %5, %16 : vector<1x64xf32>
    %18 = arith.extui %17 : vector<1x64xi1> to vector<1x64xi32>
    %19 = arith.sitofp %18 : vector<1x64xi32> to vector<1x64xf32>
    %cst_13 = arith.constant 0.000000e+00 : f32
    %20 = vector.broadcast %cst_13 : f32 to vector<1x64xf32>
    %21 = arith.cmpf oeq, %7, %20 : vector<1x64xf32>
    %22 = arith.extui %21 : vector<1x64xi1> to vector<1x64xi32>
    %23 = arith.sitofp %22 : vector<1x64xi32> to vector<1x64xf32>
    %24 = arith.mulf %11, %23 : vector<1x64xf32>
    %25 = vector.extract_strided_slice %3 {offsets = [0, 0], sizes = [16, 64], strides = [1, 1]} : vector<48x64xf32> to vector<16x64xf32>
    %26 = vector.broadcast %24 : vector<1x64xf32> to vector<16x64xf32>
    %27 = arith.mulf %26, %25 : vector<16x64xf32>
    %28 = arith.mulf %19, %15 : vector<1x64xf32>
    %29 = vector.extract_strided_slice %3 {offsets = [16, 0], sizes = [16, 64], strides = [1, 1]} : vector<48x64xf32> to vector<16x64xf32>
    %30 = vector.broadcast %28 : vector<1x64xf32> to vector<16x64xf32>
    %31 = arith.mulf %30, %29 : vector<16x64xf32>
    %32 = arith.addf %27, %31 : vector<16x64xf32>
    %33 = arith.mulf %11, %15 : vector<1x64xf32>
    %34 = vector.extract_strided_slice %3 {offsets = [32, 0], sizes = [16, 64], strides = [1, 1]} : vector<48x64xf32> to vector<16x64xf32>
    %35 = vector.broadcast %33 : vector<1x64xf32> to vector<16x64xf32>
    %36 = arith.mulf %35, %34 : vector<16x64xf32>
    %37 = arith.addf %32, %36 : vector<16x64xf32>
    %c0_14 = arith.constant 0 : index
    %c0_15 = arith.constant 0 : index
    %c0_16 = arith.constant 0 : index
    %38 = vector.load %arg6[%c0_14, %c0_15, %c0_16] : memref<1x16x64xf32, #tpu.memory_space<vmem>>, vector<1x16x64xf32>
    %39 = vector.shape_cast %38 : vector<1x16x64xf32> to vector<16x64xf32>
    %40 = vector.shape_cast %37 : vector<16x64xf32> to vector<1x16x64xf32>
    tpu.vector_store %arg6[%c0_14, %c0_15, %c0_16], %40 {strides = array<i32>} : memref<1x16x64xf32, #tpu.memory_space<vmem>>, vector<1x16x64xf32>,
    %41 = arith.addf %5, %7 : vector<1x64xf32>
    %cst_17 = arith.constant 0.000000e+00 : f32
    %42 = vector.broadcast %cst_17 : f32 to vector<1x64xf32>
    %43 = arith.cmpf ogt, %41, %42 : vector<1x64xf32>
    %44 = arith.extui %43 : vector<1x64xi1> to vector<1x64xi32>
    %45 = arith.sitofp %44 : vector<1x64xi32> to vector<1x64xf32>
    %c0_18 = arith.constant 0 : index
    %c0_19 = arith.constant 0 : index
    %c0_20 = arith.constant 0 : index
    %46 = vector.load %arg7[%c0_18, %c0_19, %c0_20] : memref<1x1x64xf32, #tpu.memory_space<vmem>>, vector<1x1x64xf32>
    %47 = vector.shape_cast %46 : vector<1x1x64xf32> to vector<1x64xf32>
    %48 = vector.shape_cast %45 : vector<1x64xf32> to vector<1x1x64xf32>
    tpu.vector_store %arg7[%c0_18, %c0_19, %c0_20], %48 {strides = array<i32>} : memref<1x1x64xf32, #tpu.memory_space<vmem>>, vector<1x1x64xf32>,
    return
  }
  func.func @transform_0(%arg0: i32, %arg1: i32) -> (i32, i32, i32) {
    %c0_i32 = arith.constant 0 : i32
    %c0_i32_0 = arith.constant 0 : i32
    return %arg0, %c0_i32, %arg1 : i32, i32, i32
  }
  func.func @transform_1(%arg0: i32, %arg1: i32) -> (i32, i32, i32) {
    %c0_i32 = arith.constant 0 : i32
    %c0_i32_0 = arith.constant 0 : i32
    return %arg0, %c0_i32, %arg1 : i32, i32, i32
  }
  func.func @transform_2(%arg0: i32, %arg1: i32) -> (i32, i32, i32) {
    %c0_i32 = arith.constant 0 : i32
    %c0_i32_0 = arith.constant 0 : i32
    return %arg0, %c0_i32, %arg1 : i32, i32, i32
  }
  func.func @transform_3(%arg0: i32, %arg1: i32) -> (i32, i32) {
    %c0_i32 = arith.constant 0 : i32
    %c0_i32_0 = arith.constant 0 : i32
    %c0_i32_1 = arith.constant 0 : i32
    return %c0_i32, %c0_i32_0 : i32, i32
  }
  func.func @transform_4(%arg0: i32, %arg1: i32) -> (i32, i32, i32) {
    %c0_i32 = arith.constant 0 : i32
    %c0_i32_0 = arith.constant 0 : i32
    return %arg0, %c0_i32, %arg1 : i32, i32, i32
  }
  func.func @transform_5(%arg0: i32, %arg1: i32) -> (i32, i32, i32) {
    %c0_i32 = arith.constant 0 : i32
    %c0_i32_0 = arith.constant 0 : i32
    return %arg0, %c0_i32, %arg1 : i32, i32, i32
  }
}

module attributes {stable_mosaic.version = 11 : i64} {
  func.func @_sparse_conv_fused_kernel(%arg0: i32, %arg1: i32, %arg2: memref<1x400x64xbf16, #tpu.memory_space<vmem>>, %arg3: memref<1x25x64xf32, #tpu.memory_space<vmem>>, %arg4: memref<16x400xbf16, #tpu.memory_space<vmem>>, %arg5: memref<16x1xf32, #tpu.memory_space<vmem>>, %arg6: memref<16x16xbf16, #tpu.memory_space<vmem>>, %arg7: memref<16x1xf32, #tpu.memory_space<vmem>>, %arg8: memref<1x16x64xf32, #tpu.memory_space<vmem>>, %arg9: memref<1x1x64xf32, #tpu.memory_space<vmem>>, %arg10: memref<1x16x64xf32, #tpu.memory_space<vmem>>) attributes {dimension_semantics = [#tpu.dimension_semantics<parallel>, #tpu.dimension_semantics<parallel>], iteration_bounds = array<i64: 2, 1>, scalar_prefetch = 0 : i64, scratch_operands = 0 : i64, tpu.core_type = #tpu.core_type<tc>, window_params = [{transform_indices = @transform_0, window_bounds = array<i64: 1, 400, 64>}, {transform_indices = @transform_1, window_bounds = array<i64: 1, 25, 64>}, {pipeline_mode = #tpu.pipeline_mode<synchronous>, transform_indices = @transform_2, window_bounds = array<i64: 16, 400>}, {pipeline_mode = #tpu.pipeline_mode<synchronous>, transform_indices = @transform_3, window_bounds = array<i64: 16, 1>}, {pipeline_mode = #tpu.pipeline_mode<synchronous>, transform_indices = @transform_4, window_bounds = array<i64: 16, 16>}, {pipeline_mode = #tpu.pipeline_mode<synchronous>, transform_indices = @transform_5, window_bounds = array<i64: 16, 1>}, {transform_indices = @transform_6, window_bounds = array<i64: 1, 16, 64>}, {transform_indices = @transform_7, window_bounds = array<i64: 1, 1, 64>}, {transform_indices = @transform_8, window_bounds = array<i64: 1, 16, 64>}]} {
    %c0 = arith.constant 0 : index
    %c0_0 = arith.constant 0 : index
    %0 = vector.load %arg4[%c0, %c0_0] : memref<16x400xbf16, #tpu.memory_space<vmem>>, vector<16x400xbf16>
    %c0_1 = arith.constant 0 : index
    %c0_2 = arith.constant 0 : index
    %c0_3 = arith.constant 0 : index
    %1 = vector.load %arg2[%c0_1, %c0_2, %c0_3] : memref<1x400x64xbf16, #tpu.memory_space<vmem>>, vector<1x400x64xbf16>
    %2 = vector.shape_cast %1 : vector<1x400x64xbf16> to vector<400x64xbf16>
    %cst = arith.constant dense<0.000000e+00> : vector<16x64xf32>
    %3 = tpu.matmul %0, %2, %cst {dimension_numbers = #tpu.dot_dimension_numbers<[1], [0], [0], [1], [0, 0, 1, 1], [], []>} : vector<16x400xbf16>, vector<400x64xbf16>, vector<16x64xf32> -> vector<16x64xf32>
    %c0_4 = arith.constant 0 : index
    %c0_5 = arith.constant 0 : index
    %c0_6 = arith.constant 0 : index
    %4 = vector.load %arg3[%c0_4, %c0_5, %c0_6] : memref<1x25x64xf32, #tpu.memory_space<vmem>>, vector<1x25x64xf32>
    %5 = vector.shape_cast %4 : vector<1x25x64xf32> to vector<25x64xf32>
    %cst_7 = arith.constant dense<0.000000e+00> : vector<64xf32>
    %6 = vector.multi_reduction <add>, %5, %cst_7 [0] : vector<25x64xf32> to vector<64xf32>
    %7 = vector.shape_cast %6 : vector<64xf32> to vector<1x64xf32>
    %cst_8 = arith.constant 9.99999974E-6 : f32
    %8 = vector.broadcast %cst_8 : f32 to vector<1x64xf32>
    %9 = arith.maximumf %7, %8 : vector<1x64xf32>
    %cst_9 = arith.constant 1.000000e+00 : f32
    %10 = vector.broadcast %cst_9 : f32 to vector<1x64xf32>
    %11 = arith.divf %10, %9 : vector<1x64xf32>
    %12 = vector.broadcast %11 : vector<1x64xf32> to vector<16x64xf32>
    %13 = arith.mulf %3, %12 : vector<16x64xf32>
    %c0_10 = arith.constant 0 : index
    %c0_11 = arith.constant 0 : index
    %14 = vector.load %arg5[%c0_10, %c0_11] : memref<16x1xf32, #tpu.memory_space<vmem>>, vector<16x1xf32>
    %15 = vector.broadcast %14 : vector<16x1xf32> to vector<16x64xf32>
    %16 = arith.addf %13, %15 : vector<16x64xf32>
    %c0_12 = arith.constant 0 : index
    %c0_13 = arith.constant 0 : index
    %c0_14 = arith.constant 0 : index
    %17 = vector.load %arg8[%c0_12, %c0_13, %c0_14] : memref<1x16x64xf32, #tpu.memory_space<vmem>>, vector<1x16x64xf32>
    %18 = vector.shape_cast %17 : vector<1x16x64xf32> to vector<16x64xf32>
    %19 = vector.shape_cast %16 : vector<16x64xf32> to vector<1x16x64xf32>
    tpu.vector_store %arg8[%c0_12, %c0_13, %c0_14], %19 {strides = array<i32>} : memref<1x16x64xf32, #tpu.memory_space<vmem>>, vector<1x16x64xf32>,
    %cst_15 = arith.constant 0.000000e+00 : f32
    %20 = vector.broadcast %cst_15 : f32 to vector<1x64xf32>
    %21 = arith.cmpf ogt, %7, %20 : vector<1x64xf32>
    %22 = arith.extui %21 : vector<1x64xi1> to vector<1x64xi32>
    %23 = arith.sitofp %22 : vector<1x64xi32> to vector<1x64xf32>
    %c0_16 = arith.constant 0 : index
    %c0_17 = arith.constant 0 : index
    %c0_18 = arith.constant 0 : index
    %24 = vector.load %arg9[%c0_16, %c0_17, %c0_18] : memref<1x1x64xf32, #tpu.memory_space<vmem>>, vector<1x1x64xf32>
    %25 = vector.shape_cast %24 : vector<1x1x64xf32> to vector<1x64xf32>
    %26 = vector.shape_cast %23 : vector<1x64xf32> to vector<1x1x64xf32>
    tpu.vector_store %arg9[%c0_16, %c0_17, %c0_18], %26 {strides = array<i32>} : memref<1x1x64xf32, #tpu.memory_space<vmem>>, vector<1x1x64xf32>,
    %c0_19 = arith.constant 0 : index
    %c0_20 = arith.constant 0 : index
    %27 = vector.load %arg6[%c0_19, %c0_20] : memref<16x16xbf16, #tpu.memory_space<vmem>>, vector<16x16xbf16>
    %28 = arith.truncf %16 : vector<16x64xf32> to vector<16x64xbf16>
    %cst_21 = arith.constant dense<0.000000e+00> : vector<16x64xf32>
    %29 = tpu.matmul %27, %28, %cst_21 {dimension_numbers = #tpu.dot_dimension_numbers<[1], [0], [0], [1], [0, 0, 1, 1], [], []>} : vector<16x16xbf16>, vector<16x64xbf16>, vector<16x64xf32> -> vector<16x64xf32>
    %c0_22 = arith.constant 0 : index
    %c0_23 = arith.constant 0 : index
    %30 = vector.load %arg7[%c0_22, %c0_23] : memref<16x1xf32, #tpu.memory_space<vmem>>, vector<16x1xf32>
    %31 = vector.broadcast %30 : vector<16x1xf32> to vector<16x64xf32>
    %32 = arith.addf %29, %31 : vector<16x64xf32>
    %c0_24 = arith.constant 0 : index
    %c0_25 = arith.constant 0 : index
    %c0_26 = arith.constant 0 : index
    %33 = vector.load %arg10[%c0_24, %c0_25, %c0_26] : memref<1x16x64xf32, #tpu.memory_space<vmem>>, vector<1x16x64xf32>
    %34 = vector.shape_cast %33 : vector<1x16x64xf32> to vector<16x64xf32>
    %35 = vector.shape_cast %32 : vector<16x64xf32> to vector<1x16x64xf32>
    tpu.vector_store %arg10[%c0_24, %c0_25, %c0_26], %35 {strides = array<i32>} : memref<1x16x64xf32, #tpu.memory_space<vmem>>, vector<1x16x64xf32>,
    return
  }
  func.func @transform_0(%arg0: i32, %arg1: i32) -> (i32, i32, i32) {
    %c0_i32 = arith.constant 0 : i32
    %c0_i32_0 = arith.constant 0 : i32
    return %arg0, %c0_i32, %arg1 : i32, i32, i32
  }
  func.func @transform_1(%arg0: i32, %arg1: i32) -> (i32, i32, i32) {
    %c0_i32 = arith.constant 0 : i32
    %c0_i32_0 = arith.constant 0 : i32
    return %arg0, %c0_i32, %arg1 : i32, i32, i32
  }
  func.func @transform_2(%arg0: i32, %arg1: i32) -> (i32, i32) {
    %c0_i32 = arith.constant 0 : i32
    %c0_i32_0 = arith.constant 0 : i32
    %c0_i32_1 = arith.constant 0 : i32
    return %c0_i32, %c0_i32_0 : i32, i32
  }
  func.func @transform_3(%arg0: i32, %arg1: i32) -> (i32, i32) {
    %c0_i32 = arith.constant 0 : i32
    %c0_i32_0 = arith.constant 0 : i32
    %c0_i32_1 = arith.constant 0 : i32
    return %c0_i32, %c0_i32_0 : i32, i32
  }
  func.func @transform_4(%arg0: i32, %arg1: i32) -> (i32, i32) {
    %c0_i32 = arith.constant 0 : i32
    %c0_i32_0 = arith.constant 0 : i32
    %c0_i32_1 = arith.constant 0 : i32
    return %c0_i32, %c0_i32_0 : i32, i32
  }
  func.func @transform_5(%arg0: i32, %arg1: i32) -> (i32, i32) {
    %c0_i32 = arith.constant 0 : i32
    %c0_i32_0 = arith.constant 0 : i32
    %c0_i32_1 = arith.constant 0 : i32
    return %c0_i32, %c0_i32_0 : i32, i32
  }
  func.func @transform_6(%arg0: i32, %arg1: i32) -> (i32, i32, i32) {
    %c0_i32 = arith.constant 0 : i32
    %c0_i32_0 = arith.constant 0 : i32
    return %arg0, %c0_i32, %arg1 : i32, i32, i32
  }
  func.func @transform_7(%arg0: i32, %arg1: i32) -> (i32, i32, i32) {
    %c0_i32 = arith.constant 0 : i32
    %c0_i32_0 = arith.constant 0 : i32
    return %arg0, %c0_i32, %arg1 : i32, i32, i32
  }
  func.func @transform_8(%arg0: i32, %arg1: i32) -> (i32, i32, i32) {
    %c0_i32 = arith.constant 0 : i32
    %c0_i32_0 = arith.constant 0 : i32
    return %arg0, %c0_i32, %arg1 : i32, i32, i32
  }
}

module attributes {stable_mosaic.version = 11 : i64} {
  func.func @_upsum_kernel(%arg0: i32, %arg1: i32, %arg2: memref<1x16x256xf32, #tpu.memory_space<vmem>>, %arg3: memref<1x1x256xf32, #tpu.memory_space<vmem>>, %arg4: memref<1x16x256xf32, #tpu.memory_space<vmem>>, %arg5: memref<1x1x256xf32, #tpu.memory_space<vmem>>, %arg6: memref<1x16x256xf32, #tpu.memory_space<vmem>>, %arg7: memref<1x1x256xf32, #tpu.memory_space<vmem>>, %arg8: memref<1x16x256xf32, #tpu.memory_space<vmem>>, %arg9: memref<1x1x256xf32, #tpu.memory_space<vmem>>) attributes {dimension_semantics = [#tpu.dimension_semantics<parallel>, #tpu.dimension_semantics<parallel>], iteration_bounds = array<i64: 2, 1>, scalar_prefetch = 0 : i64, scratch_operands = 0 : i64, tpu.core_type = #tpu.core_type<tc>, window_params = [{transform_indices = @transform_0, window_bounds = array<i64: 1, 16, 256>}, {transform_indices = @transform_1, window_bounds = array<i64: 1, 1, 256>}, {transform_indices = @transform_2, window_bounds = array<i64: 1, 16, 256>}, {transform_indices = @transform_3, window_bounds = array<i64: 1, 1, 256>}, {transform_indices = @transform_4, window_bounds = array<i64: 1, 16, 256>}, {transform_indices = @transform_5, window_bounds = array<i64: 1, 1, 256>}, {transform_indices = @transform_6, window_bounds = array<i64: 1, 16, 256>}, {transform_indices = @transform_7, window_bounds = array<i64: 1, 1, 256>}]} {
    %c0 = arith.constant 0 : index
    %c0_0 = arith.constant 0 : index
    %c0_1 = arith.constant 0 : index
    %0 = vector.load %arg3[%c0, %c0_0, %c0_1] : memref<1x1x256xf32, #tpu.memory_space<vmem>>, vector<1x1x256xf32>
    %1 = vector.shape_cast %0 : vector<1x1x256xf32> to vector<1x256xf32>
    %c0_2 = arith.constant 0 : index
    %c0_3 = arith.constant 0 : index
    %c0_4 = arith.constant 0 : index
    %2 = vector.load %arg5[%c0_2, %c0_3, %c0_4] : memref<1x1x256xf32, #tpu.memory_space<vmem>>, vector<1x1x256xf32>
    %3 = vector.shape_cast %2 : vector<1x1x256xf32> to vector<1x256xf32>
    %c0_5 = arith.constant 0 : index
    %c0_6 = arith.constant 0 : index
    %c0_7 = arith.constant 0 : index
    %4 = vector.load %arg7[%c0_5, %c0_6, %c0_7] : memref<1x1x256xf32, #tpu.memory_space<vmem>>, vector<1x1x256xf32>
    %5 = vector.shape_cast %4 : vector<1x1x256xf32> to vector<1x256xf32>
    %c0_8 = arith.constant 0 : index
    %c0_9 = arith.constant 0 : index
    %c0_10 = arith.constant 0 : index
    %6 = vector.load %arg4[%c0_8, %c0_9, %c0_10] : memref<1x16x256xf32, #tpu.memory_space<vmem>>, vector<1x16x256xf32>
    %7 = vector.shape_cast %6 : vector<1x16x256xf32> to vector<16x256xf32>
    %cst = arith.constant 9.99999974E-6 : f32
    %8 = vector.broadcast %cst : f32 to vector<1x256xf32>
    %9 = arith.maximumf %3, %8 : vector<1x256xf32>
    %cst_11 = arith.constant 1.000000e+00 : f32
    %10 = vector.broadcast %cst_11 : f32 to vector<1x256xf32>
    %11 = arith.divf %10, %9 : vector<1x256xf32>
    %12 = vector.broadcast %11 : vector<1x256xf32> to vector<16x256xf32>
    %13 = arith.mulf %7, %12 : vector<16x256xf32>
    %cst_12 = arith.constant 0.000000e+00 : f32
    %14 = vector.broadcast %cst_12 : f32 to vector<1x256xf32>
    %15 = arith.cmpf ogt, %3, %14 : vector<1x256xf32>
    %16 = arith.extui %15 : vector<1x256xi1> to vector<1x256xi32>
    %17 = arith.sitofp %16 : vector<1x256xi32> to vector<1x256xf32>
    %c0_13 = arith.constant 0 : index
    %c0_14 = arith.constant 0 : index
    %c0_15 = arith.constant 0 : index
    %18 = vector.load %arg6[%c0_13, %c0_14, %c0_15] : memref<1x16x256xf32, #tpu.memory_space<vmem>>, vector<1x16x256xf32>
    %19 = vector.shape_cast %18 : vector<1x16x256xf32> to vector<16x256xf32>
    %cst_16 = arith.constant 9.99999974E-6 : f32
    %20 = vector.broadcast %cst_16 : f32 to vector<1x256xf32>
    %21 = arith.maximumf %5, %20 : vector<1x256xf32>
    %cst_17 = arith.constant 1.000000e+00 : f32
    %22 = vector.broadcast %cst_17 : f32 to vector<1x256xf32>
    %23 = arith.divf %22, %21 : vector<1x256xf32>
    %24 = vector.broadcast %23 : vector<1x256xf32> to vector<16x256xf32>
    %25 = arith.mulf %19, %24 : vector<16x256xf32>
    %cst_18 = arith.constant 0.000000e+00 : f32
    %26 = vector.broadcast %cst_18 : f32 to vector<1x256xf32>
    %27 = arith.cmpf ogt, %5, %26 : vector<1x256xf32>
    %28 = arith.extui %27 : vector<1x256xi1> to vector<1x256xi32>
    %29 = arith.sitofp %28 : vector<1x256xi32> to vector<1x256xf32>
    %30 = arith.addf %1, %17 : vector<1x256xf32>
    %c0_19 = arith.constant 0 : index
    %c0_20 = arith.constant 0 : index
    %c0_21 = arith.constant 0 : index
    %31 = vector.load %arg2[%c0_19, %c0_20, %c0_21] : memref<1x16x256xf32, #tpu.memory_space<vmem>>, vector<1x16x256xf32>
    %32 = vector.shape_cast %31 : vector<1x16x256xf32> to vector<16x256xf32>
    %33 = vector.broadcast %1 : vector<1x256xf32> to vector<16x256xf32>
    %34 = arith.mulf %32, %33 : vector<16x256xf32>
    %35 = vector.broadcast %17 : vector<1x256xf32> to vector<16x256xf32>
    %36 = arith.mulf %13, %35 : vector<16x256xf32>
    %37 = arith.addf %34, %36 : vector<16x256xf32>
    %cst_22 = arith.constant 9.99999974E-6 : f32
    %38 = vector.broadcast %cst_22 : f32 to vector<1x256xf32>
    %39 = arith.maximumf %30, %38 : vector<1x256xf32>
    %cst_23 = arith.constant 1.000000e+00 : f32
    %40 = vector.broadcast %cst_23 : f32 to vector<1x256xf32>
    %41 = arith.divf %40, %39 : vector<1x256xf32>
    %42 = vector.broadcast %41 : vector<1x256xf32> to vector<16x256xf32>
    %43 = arith.mulf %37, %42 : vector<16x256xf32>
    %cst_24 = arith.constant 0.000000e+00 : f32
    %44 = vector.broadcast %cst_24 : f32 to vector<1x256xf32>
    %45 = arith.cmpf ogt, %30, %44 : vector<1x256xf32>
    %46 = arith.extui %45 : vector<1x256xi1> to vector<1x256xi32>
    %47 = arith.sitofp %46 : vector<1x256xi32> to vector<1x256xf32>
    %48 = arith.addf %47, %29 : vector<1x256xf32>
    %49 = vector.broadcast %47 : vector<1x256xf32> to vector<16x256xf32>
    %50 = arith.mulf %43, %49 : vector<16x256xf32>
    %51 = vector.broadcast %29 : vector<1x256xf32> to vector<16x256xf32>
    %52 = arith.mulf %25, %51 : vector<16x256xf32>
    %53 = arith.addf %50, %52 : vector<16x256xf32>
    %cst_25 = arith.constant 9.99999974E-6 : f32
    %54 = vector.broadcast %cst_25 : f32 to vector<1x256xf32>
    %55 = arith.maximumf %48, %54 : vector<1x256xf32>
    %cst_26 = arith.constant 1.000000e+00 : f32
    %56 = vector.broadcast %cst_26 : f32 to vector<1x256xf32>
    %57 = arith.divf %56, %55 : vector<1x256xf32>
    %58 = vector.broadcast %57 : vector<1x256xf32> to vector<16x256xf32>
    %59 = arith.mulf %53, %58 : vector<16x256xf32>
    %c0_27 = arith.constant 0 : index
    %c0_28 = arith.constant 0 : index
    %c0_29 = arith.constant 0 : index
    %60 = vector.load %arg8[%c0_27, %c0_28, %c0_29] : memref<1x16x256xf32, #tpu.memory_space<vmem>>, vector<1x16x256xf32>
    %61 = vector.shape_cast %60 : vector<1x16x256xf32> to vector<16x256xf32>
    %62 = vector.shape_cast %59 : vector<16x256xf32> to vector<1x16x256xf32>
    tpu.vector_store %arg8[%c0_27, %c0_28, %c0_29], %62 {strides = array<i32>} : memref<1x16x256xf32, #tpu.memory_space<vmem>>, vector<1x16x256xf32>,
    %cst_30 = arith.constant 0.000000e+00 : f32
    %63 = vector.broadcast %cst_30 : f32 to vector<1x256xf32>
    %64 = arith.cmpf ogt, %48, %63 : vector<1x256xf32>
    %65 = arith.extui %64 : vector<1x256xi1> to vector<1x256xi32>
    %66 = arith.sitofp %65 : vector<1x256xi32> to vector<1x256xf32>
    %c0_31 = arith.constant 0 : index
    %c0_32 = arith.constant 0 : index
    %c0_33 = arith.constant 0 : index
    %67 = vector.load %arg9[%c0_31, %c0_32, %c0_33] : memref<1x1x256xf32, #tpu.memory_space<vmem>>, vector<1x1x256xf32>
    %68 = vector.shape_cast %67 : vector<1x1x256xf32> to vector<1x256xf32>
    %69 = vector.shape_cast %66 : vector<1x256xf32> to vector<1x1x256xf32>
    tpu.vector_store %arg9[%c0_31, %c0_32, %c0_33], %69 {strides = array<i32>} : memref<1x1x256xf32, #tpu.memory_space<vmem>>, vector<1x1x256xf32>,
    return
  }
  func.func @transform_0(%arg0: i32, %arg1: i32) -> (i32, i32, i32) {
    %c0_i32 = arith.constant 0 : i32
    %c0_i32_0 = arith.constant 0 : i32
    return %arg0, %c0_i32, %arg1 : i32, i32, i32
  }
  func.func @transform_1(%arg0: i32, %arg1: i32) -> (i32, i32, i32) {
    %c0_i32 = arith.constant 0 : i32
    %c0_i32_0 = arith.constant 0 : i32
    return %arg0, %c0_i32, %arg1 : i32, i32, i32
  }
  func.func @transform_2(%arg0: i32, %arg1: i32) -> (i32, i32, i32) {
    %c0_i32 = arith.constant 0 : i32
    %c0_i32_0 = arith.constant 0 : i32
    return %arg0, %c0_i32, %arg1 : i32, i32, i32
  }
  func.func @transform_3(%arg0: i32, %arg1: i32) -> (i32, i32, i32) {
    %c0_i32 = arith.constant 0 : i32
    %c0_i32_0 = arith.constant 0 : i32
    return %arg0, %c0_i32, %arg1 : i32, i32, i32
  }
  func.func @transform_4(%arg0: i32, %arg1: i32) -> (i32, i32, i32) {
    %c0_i32 = arith.constant 0 : i32
    %c0_i32_0 = arith.constant 0 : i32
    return %arg0, %c0_i32, %arg1 : i32, i32, i32
  }
  func.func @transform_5(%arg0: i32, %arg1: i32) -> (i32, i32, i32) {
    %c0_i32 = arith.constant 0 : i32
    %c0_i32_0 = arith.constant 0 : i32
    return %arg0, %c0_i32, %arg1 : i32, i32, i32
  }
  func.func @transform_6(%arg0: i32, %arg1: i32) -> (i32, i32, i32) {
    %c0_i32 = arith.constant 0 : i32
    %c0_i32_0 = arith.constant 0 : i32
    return %arg0, %c0_i32, %arg1 : i32, i32, i32
  }
  func.func @transform_7(%arg0: i32, %arg1: i32) -> (i32, i32, i32) {
    %c0_i32 = arith.constant 0 : i32
    %c0_i32_0 = arith.constant 0 : i32
    return %arg0, %c0_i32, %arg1 : i32, i32, i32
  }
}

</mosaic_0001>

<llo_original>
// kernel: mul.57
$region0: #{mul.57}
  %s0 = inlined_call_operand.vmem [shape: f32[2,256], index: 0, kind: input, shape index: {}]
  %s1 = inlined_call_operand.vmem [shape: f32[2,16,16], index: 1, kind: output, shape index: {}]
  $region1: #{mul.57} parent=0
    #allocation0 [shape = 'u8[8192]{0}', space=vmem, size = 0x2000, scoped, tag = 'scoped mem for input reshape']
    %s3 = sshllo.u32 0, 2
    %s4 = scalar_lea.vmem %s0, 2
    %v5 = vld [vmem:[%s4] sm:%s3]
    %s6 = scalar_lea.vmem [#allocation0], 8
    %7 = vst [vmem:[%s6] sm:%s3] %v5
    %v8 = vld [vmem:[%s0] sm:%s3]
    %9 = vst [vmem:[#allocation0] sm:%s3] %v8
    %v10 = vld [vmem:[#allocation0] sm:$0x3]
    %vm11 = vcmask 130048
    %12 = vst.msk [vmem:[%s1] ss:$16 sm:$0x3] %vm11, %v10
    %s13 = scalar_lea.vmem [#allocation0], 8
    %v14 = vld [vmem:[%s13] sm:$0x3]
    %vm15 = vcmask 130048
    %s16 = scalar_lea.vmem %s1, 8
    %17 = vst.msk [vmem:[%s16] ss:$16 sm:$0x3] %vm15, %v14
    %v18 = vld.sshfl [vmem:[#allocation0] sm:$0xff pattern:$0x99999180]
    %19 = vrot.lane.b32.xlu0 %v18, 112
    %v20 = vpop.permute.xlu0 %19
    %vm21 = vcmask 130048
    %s22 = scalar_lea.vmem %s1, 1
    %23 = vst.msk [vmem:[%s22] ss:$8 sm:$0xf] %vm21, %v20
    %v24 = vld.sshfl [vmem:[#allocation0] sm:$0xff pattern:$0x99999180]
    %25 = vrot.lane.b32.xlu0 %v24, 96
    %v26 = vpop.permute.xlu0 %25
    %vm27 = vcmask 130048
    %s28 = scalar_lea.vmem %s1, 2
    %29 = vst.msk [vmem:[%s28] ss:$8 sm:$0xf] %vm27, %v26
    %v30 = vld.sshfl [vmem:[#allocation0] sm:$0xff pattern:$0x99999180]
    %31 = vrot.lane.b32.xlu0 %v30, 80
    %v32 = vpop.permute.xlu0 %31
    %vm33 = vcmask 130048
    %s34 = scalar_lea.vmem %s1, 3
    %35 = vst.msk [vmem:[%s34] ss:$8 sm:$0xf] %vm33, %v32
    %v36 = vld.sshfl [vmem:[#allocation0] sm:$0xff pattern:$0x99999180]
    %37 = vrot.lane.b32.xlu0 %v36, 64
    %v38 = vpop.permute.xlu0 %37
    %vm39 = vcmask 130048
    %s40 = scalar_lea.vmem %s1, 4
    %41 = vst.msk [vmem:[%s40] ss:$8 sm:$0xf] %vm39, %v38
    %v42 = vld.sshfl [vmem:[#allocation0] sm:$0xff pattern:$0x99999180]
    %43 = vrot.lane.b32.xlu0 %v42, 48
    %v44 = vpop.permute.xlu0 %43
    %vm45 = vcmask 130048
    %s46 = scalar_lea.vmem %s1, 5
    %47 = vst.msk [vmem:[%s46] ss:$8 sm:$0xf] %vm45, %v44
    %v48 = vld.sshfl [vmem:[#allocation0] sm:$0xff pattern:$0x99999180]
    %49 = vrot.lane.b32.xlu0 %v48, 32
    %v50 = vpop.permute.xlu0 %49
    %vm51 = vcmask 130048
    %s52 = scalar_lea.vmem %s1, 6
    %53 = vst.msk [vmem:[%s52] ss:$8 sm:$0xf] %vm51, %v50
    %v54 = vld.sshfl [vmem:[#allocation0] sm:$0xff pattern:$0x99999180]
    %55 = vrot.lane.b32.xlu0 %v54, 16
    %v56 = vpop.permute.xlu0 %55
    %vm57 = vcmask 130048
    %s58 = scalar_lea.vmem %s1, 7
    %59 = vst.msk [vmem:[%s58] ss:$8 sm:$0xf] %vm57, %v56

// kernel: three_scale_block_forward.6
$region0: #{three_scale_block_forward.6}
  #allocation0 [shape = 'u32[]', space=smem, size = 0x4, offset = 0x4, fixed_abs, tag = 'smem constant byte address 0x4 - core index']
  #allocation1 [shape = 'u32[144,128]{1,0:T(1,128)}', space=vmem, size = 0x12000, scoped, tag = 'internal scratch']
  %s0 = inlined_call_operand.vmem [shape: bf16[2,400,256], index: 0, kind: input, shape index: {}]
  %s1 = inlined_call_operand.vmem [shape: f32[2,25,256], index: 1, kind: input, shape index: {}]
  %s2 = inlined_call_operand.vmem [shape: bf16[16,400], index: 2, kind: input, shape index: {}]
  %s3 = inlined_call_operand.vmem [shape: f32[16,1], index: 3, kind: input, shape index: {}]
  %s4 = inlined_call_operand.vmem [shape: f32[2,16,256], index: 4, kind: output, shape index: {0}]
  %s5 = inlined_call_operand.vmem [shape: f32[2,1,256], index: 5, kind: output, shape index: {1}]
  %6 = xla_tuple %s4, %s5
  %s7 = sld [smem:[#allocation0]]
  $region57: #{three_scale_block_forward.6} parent=0
    _
  %s9 = ssub.s32 1, %s7
  %s10 = scalar_select 0, %s9, %s7
  loop: start=0, step=1, limit=4
  $region2: #{three_scale_block_forward.6} parent=0 // loop_pre_header
    _
  $region3: #{three_scale_block_forward.6} parent=0 // loop_header
    %s12 = sphi 0, %s16
    %p13 = scmp.ge.s32.totalorder %s12, 4
    %s19 = sphi 0, %s31
    %s20 = sphi 0, %s27
    %s21 = sphi 0, %s19
    %s22 = sphi 0, %s20
    %s23 = sphi 0, %s21
    %s24 = sphi 0, %s22
    %s36 = sphi 0, %s38
    %s39 = sphi 0, %s36
    %s40 = sphi 0, %s39
    %s56 = sphi 0, %s40
    %s64 = sphi 0, %s66
    %s67 = sphi 0, %s64
    %s68 = sphi 0, %s67
    %s84 = sphi 0, %s68
    %s88 = sphi 0, %s88
    %s90 = sphi 0, %s88
    %s91 = sphi 0, %s90
    %s105 = sphi 0, %s91
    %s109 = sphi 0, %s109
    %s111 = sphi 0, %s109
    %s112 = sphi 0, %s111
    %s126 = sphi 0, %s112
    %s134 = sphi 0, %s136
    %s137 = sphi 0, %s134
    %s138 = sphi 0, %s137
    %s154 = sphi 0, %s138
    %s162 = sphi 0, %s164
    %s165 = sphi 0, %s162
    %s166 = sphi 0, %s165
    %s182 = sphi 0, %s166
  $region4: #{three_scale_block_forward.6} parent=0 // loop_header_branch
    %15 = sbr.rel (%p13) target = $region8
  $region5: #{three_scale_block_forward.6} parent=0 // loop_body
    %s17 = ssub.s32 %s12, 1
    %s18 = ssub.s32 %s12, 2
    %s25 = sadd.s32 1, %s20
    %p26 = scmp.ge.s32.totalorder %s25, 1
    %s27 = scalar_select %p26, 0, %s25
    %s28 = sadd.s32 1, %s19
    %s29 = scalar_select %p26, %s28, %s19
    %p30 = scmp.ge.s32.totalorder %s29, 2
    %s31 = scalar_select %p30, 0, %s29
    %s32 = ssub.s32 %s19, %s31
    %s33 = ssub.s32 %s20, %s27
    %s34 = sor.u32 %s32, %s33
    %p35 = scmp.eq.s32.totalorder %s34, 0
    %s37 = sadd.s32 %s36, 1
    %s38 = scalar_select %p35, %s36, %s37
    %p41 = pneg %p35
    %p42 = scmp.eq.s32.totalorder %s12, 1
    %p43 = por %p41, %p42
    %p44 = scmp.ne.s32.totalorder %s36, %s39
    %p45 = scmp.eq.s32.totalorder %s12, 0
    %p46 = por %p44, %p45
    %p47 = scmp.ne.s32.totalorder %s36, %s39
    %p48 = scmp.eq.s32.totalorder %s17, 1
    %p49 = por %p47, %p48
    %p50 = scmp.ne.s32.totalorder %s39, %s40
    %p51 = scmp.eq.s32.totalorder %s17, 0
    %p52 = por %p50, %p51
    %p53 = scmp.ne.s32.totalorder %s39, %s40
    %p54 = scmp.eq.s32.totalorder %s18, 1
    %p55 = por %p53, %p54
    %p57 = scmp.ne.s32.totalorder %s40, %s56
    %p58 = scmp.eq.s32.totalorder %s18, 0
    %p59 = por %p57, %p58
    %s60 = ssub.s32 %s19, %s31
    %s61 = ssub.s32 %s20, %s27
    %s62 = sor.u32 %s60, %s61
    %p63 = scmp.eq.s32.totalorder %s62, 0
    %s65 = sadd.s32 %s64, 1
    %s66 = scalar_select %p63, %s64, %s65
    %p69 = pneg %p63
    %p70 = scmp.eq.s32.totalorder %s12, 1
    %p71 = por %p69, %p70
    %p72 = scmp.ne.s32.totalorder %s64, %s67
    %p73 = scmp.eq.s32.totalorder %s12, 0
    %p74 = por %p72, %p73
    %p75 = scmp.ne.s32.totalorder %s64, %s67
    %p76 = scmp.eq.s32.totalorder %s17, 1
    %p77 = por %p75, %p76
    %p78 = scmp.ne.s32.totalorder %s67, %s68
    %p79 = scmp.eq.s32.totalorder %s17, 0
    %p80 = por %p78, %p79
    %p81 = scmp.ne.s32.totalorder %s67, %s68
    %p82 = scmp.eq.s32.totalorder %s18, 1
    %p83 = por %p81, %p82
    %p85 = scmp.ne.s32.totalorder %s68, %s84
    %p86 = scmp.eq.s32.totalorder %s18, 0
    %p87 = por %p85, %p86
    %s89 = sadd.s32 %s88, 1
    %p92 = scmp.eq.s32.totalorder %s12, 1
    %p93 = scmp.ne.s32.totalorder %s88, %s90
    %p94 = scmp.eq.s32.totalorder %s12, 0
    %p95 = por %p93, %p94
    %p96 = scmp.ne.s32.totalorder %s88, %s90
    %p97 = scmp.eq.s32.totalorder %s17, 1
    %p98 = por %p96, %p97
    %p99 = scmp.ne.s32.totalorder %s90, %s91
    %p100 = scmp.eq.s32.totalorder %s17, 0
    %p101 = por %p99, %p100
    %p102 = scmp.ne.s32.totalorder %s90, %s91
    %p103 = scmp.eq.s32.totalorder %s18, 1
    %p104 = por %p102, %p103
    %p106 = scmp.ne.s32.totalorder %s91, %s105
    %p107 = scmp.eq.s32.totalorder %s18, 0
    %p108 = por %p106, %p107
    %s110 = sadd.s32 %s109, 1
    %p113 = scmp.eq.s32.totalorder %s12, 1
    %p114 = scmp.ne.s32.totalorder %s109, %s111
    %p115 = scmp.eq.s32.totalorder %s12, 0
    %p116 = por %p114, %p115
    %p117 = scmp.ne.s32.totalorder %s109, %s111
    %p118 = scmp.eq.s32.totalorder %s17, 1
    %p119 = por %p117, %p118
    %p120 = scmp.ne.s32.totalorder %s111, %s112
    %p121 = scmp.eq.s32.totalorder %s17, 0
    %p122 = por %p120, %p121
    %p123 = scmp.ne.s32.totalorder %s111, %s112
    %p124 = scmp.eq.s32.totalorder %s18, 1
    %p125 = por %p123, %p124
    %p127 = scmp.ne.s32.totalorder %s112, %s126
    %p128 = scmp.eq.s32.totalorder %s18, 0
    %p129 = por %p127, %p128
    %s130 = ssub.s32 %s19, %s31
    %s131 = ssub.s32 %s20, %s27
    %s132 = sor.u32 %s130, %s131
    %p133 = scmp.eq.s32.totalorder %s132, 0
    %s135 = sadd.s32 %s134, 1
    %s136 = scalar_select %p133, %s134, %s135
    %p139 = pneg %p133
    %p140 = scmp.eq.s32.totalorder %s12, 1
    %p141 = por %p139, %p140
    %p142 = scmp.ne.s32.totalorder %s134, %s137
    %p143 = scmp.eq.s32.totalorder %s12, 0
    %p144 = por %p142, %p143
    %p145 = scmp.ne.s32.totalorder %s134, %s137
    %p146 = scmp.eq.s32.totalorder %s17, 1
    %p147 = por %p145, %p146
    %p148 = scmp.ne.s32.totalorder %s137, %s138
    %p149 = scmp.eq.s32.totalorder %s17, 0
    %p150 = por %p148, %p149
    %p151 = scmp.ne.s32.totalorder %s137, %s138
    %p152 = scmp.eq.s32.totalorder %s18, 1
    %p153 = por %p151, %p152
    %p155 = scmp.ne.s32.totalorder %s138, %s154
    %p156 = scmp.eq.s32.totalorder %s18, 0
    %p157 = por %p155, %p156
    %s158 = ssub.s32 %s19, %s31
    %s159 = ssub.s32 %s20, %s27
    %s160 = sor.u32 %s158, %s159
    %p161 = scmp.eq.s32.totalorder %s160, 0
    %s163 = sadd.s32 %s162, 1
    %s164 = scalar_select %p161, %s162, %s163
    %p167 = pneg %p161
    %p168 = scmp.eq.s32.totalorder %s12, 1
    %p169 = por %p167, %p168
    %p170 = scmp.ne.s32.totalorder %s162, %s165
    %p171 = scmp.eq.s32.totalorder %s12, 0
    %p172 = por %p170, %p171
    %p173 = scmp.ne.s32.totalorder %s162, %s165
    %p174 = scmp.eq.s32.totalorder %s17, 1
    %p175 = por %p173, %p174
    %p176 = scmp.ne.s32.totalorder %s165, %s166
    %p177 = scmp.eq.s32.totalorder %s17, 0
    %p178 = por %p176, %p177
    %p179 = scmp.ne.s32.totalorder %s165, %s166
    %p180 = scmp.eq.s32.totalorder %s18, 1
    %p181 = por %p179, %p180
    %p183 = scmp.ne.s32.totalorder %s166, %s182
    %p184 = scmp.eq.s32.totalorder %s18, 0
    %p185 = por %p183, %p184
    %p186 = scmp.le.s32.totalorder 1, %s12
    %p187 = scmp.lt.s32.totalorder %s12, 3
    %p188 = pnand %p186, %p187
    %p189 = pneg %p188
    // Predicated region
    $region9: #{three_scale_block_forward.6} parent=5 // pred_check
      _
    $region10: #{three_scale_block_forward.6} parent=5 // pred_check_branch
      %191 = sbr.rel (%p188) target = $region12
    $region11: #{three_scale_block_forward.6} parent=5 // pred_region
      %s192 = ssub.s32 %s12, 1
      // Predicated region
      $region13: #{three_scale_block_forward.6} parent=11 // pred_check
        %p193 = pneg %p101
      $region14: #{three_scale_block_forward.6} parent=11 // pred_check_branch
        %195 = sbr.rel (%p193) target = $region16
      $region15: #{three_scale_block_forward.6} parent=11 // pred_region
        _
      $region16: #{three_scale_block_forward.6} parent=11 // pred_fallthru
        _
      // Predicated region
      $region17: #{three_scale_block_forward.6} parent=11 // pred_check
        %p196 = pneg %p122
      $region18: #{three_scale_block_forward.6} parent=11 // pred_check_branch
        %198 = sbr.rel (%p196) target = $region20
      $region19: #{three_scale_block_forward.6} parent=11 // pred_region
        _
      $region20: #{three_scale_block_forward.6} parent=11 // pred_fallthru
        _
    $region12: #{three_scale_block_forward.6} parent=5 // pred_fallthru
      _
    %p199 = scmp.lt.s32.totalorder %s12, 2
    // Predicated region
    $region21: #{three_scale_block_forward.6} parent=5 // pred_check
      %p200 = pneg %p199
    $region22: #{three_scale_block_forward.6} parent=5 // pred_check_branch
      %202 = sbr.rel (%p200) target = $region24
    $region23: #{three_scale_block_forward.6} parent=5 // pred_region
      // Predicated region
      $region25: #{three_scale_block_forward.6} parent=23 // pred_check
        %p203 = pneg %p46
      $region26: #{three_scale_block_forward.6} parent=23 // pred_check_branch
        %205 = sbr.rel (%p203) target = $region28
      $region27: #{three_scale_block_forward.6} parent=23 // pred_region
        %s206 = smul.u32 2, %s20
        %p207 = scmp.lt.s32.totalorder %s19, 1
        %s208 = scalar_select %p207, %s19, 1
        %p209 = scmp.lt.s32.totalorder %s206, 1
        %s210 = scalar_select %p209, %s206, 1
        %s211 = smul.addr %s208, 100
        %s212 = sadd.s32 %s210, %s211
        %s213 = smul.addr %s212, 4
        %s214 = scalar_lea.vmem %s0, %s213
        %s215 = smul.u32 2, %s20
      $region28: #{three_scale_block_forward.6} parent=23 // pred_fallthru
        _
      // Predicated region
      $region29: #{three_scale_block_forward.6} parent=23 // pred_check
        %p216 = pneg %p74
      $region30: #{three_scale_block_forward.6} parent=23 // pred_check_branch
        %218 = sbr.rel (%p216) target = $region32
      $region31: #{three_scale_block_forward.6} parent=23 // pred_region
        %s219 = smul.u32 2, %s20
        %p220 = scmp.lt.s32.totalorder %s19, 1
        %s221 = scalar_select %p220, %s19, 1
        %p222 = scmp.lt.s32.totalorder %s219, 1
        %s223 = scalar_select %p222, %s219, 1
        %s224 = smul.addr %s221, 8
        %s225 = sadd.s32 %s223, %s224
        %s226 = smul.addr %s225, 8
        %s227 = scalar_lea.vmem %s1, %s226
        %s228 = smul.u32 2, %s20
      $region32: #{three_scale_block_forward.6} parent=23 // pred_fallthru
        _
    $region24: #{three_scale_block_forward.6} parent=5 // pred_fallthru
      _
    %p229 = scmp.le.s32.totalorder 1, %s12
    %p230 = scmp.lt.s32.totalorder %s12, 3
    %p231 = pnand %p229, %p230
    %p232 = pneg %p231
    // Predicated region
    $region33: #{three_scale_block_forward.6} parent=5 // pred_check
      _
    $region34: #{three_scale_block_forward.6} parent=5 // pred_check_branch
      %234 = sbr.rel (%p231) target = $region36
    $region35: #{three_scale_block_forward.6} parent=5 // pred_region
      %s235 = ssub.s32 %s12, 1
      %s236 = smul.u32 2, %s22
      %p237 = scmp.lt.s32.totalorder %s21, 1
      %s238 = scalar_select %p237, %s21, 1
      %p239 = scmp.lt.s32.totalorder %s236, 1
      %s240 = scalar_select %p239, %s236, 1
      %s241 = smul.addr %s238, 100
      %s242 = sadd.s32 %s240, %s241
      %s243 = smul.addr %s242, 4
      %s244 = scalar_lea.vmem %s0, %s243
      %p245 = pneg %p52
      %p246 = pneg %p49
      %s247 = smul.u32 2, %s22
      %p248 = scmp.lt.s32.totalorder %s21, 1
      %s249 = scalar_select %p248, %s21, 1
      %p250 = scmp.lt.s32.totalorder %s247, 1
      %s251 = scalar_select %p250, %s247, 1
      %s252 = smul.addr %s249, 8
      %s253 = sadd.s32 %s251, %s252
      %s254 = smul.addr %s253, 8
      %s255 = scalar_lea.vmem %s1, %s254
      %p256 = pneg %p80
      %p257 = pneg %p77
      %p258 = pneg %p101
      %p259 = pneg %p98
      %p260 = pneg %p122
      %p261 = pneg %p119
      %p262 = pneg %p150
      %p263 = pneg %p147
      %s264 = smul.u32 2, %s22
      %p265 = scmp.lt.s32.totalorder %s21, 1
      %s266 = scalar_select %p265, %s21, 1
      %p267 = scmp.lt.s32.totalorder %s264, 1
      %s268 = scalar_select %p267, %s264, 1
      %s269 = smul.addr %s266, 4
      %s270 = sadd.s32 %s268, %s269
      %s271 = smul.addr %s270, 8
      %s272 = scalar_lea.vmem %s4, %s271
      %p273 = pneg %p178
      %p274 = pneg %p175
      %s275 = smul.u32 2, %s22
      %p276 = scmp.lt.s32.totalorder %s21, 1
      %s277 = scalar_select %p276, %s21, 1
      %p278 = scmp.lt.s32.totalorder %s275, 1
      %s279 = scalar_select %p278, %s275, 1
      %s280 = smul.addr %s277, 2
      %s281 = sadd.s32 %s279, %s280
      %s282 = scalar_lea.vmem %s5, %s281
      %s283 = smul.u32 2, %s22
      %p284 = scmp.lt.s32.totalorder %s21, 1
      %s285 = scalar_select %p284, %s21, 1
      %p286 = scmp.lt.s32.totalorder %s283, 1
      %s287 = scalar_select %p286, %s283, 1
      %s288 = smul.addr %s285, 100
      %s289 = sadd.s32 %s287, %s288
      %s290 = smul.addr %s289, 4
      %s291 = scalar_lea.vmem %s0, %s290
      %s292 = smul.u32 2, %s22
      %s293 = smul.u32 2, %s22
      %p294 = scmp.lt.s32.totalorder %s21, 1
      %s295 = scalar_select %p294, %s21, 1
      %p296 = scmp.lt.s32.totalorder %s293, 1
      %s297 = scalar_select %p296, %s293, 1
      %s298 = smul.addr %s295, 8
      %s299 = sadd.s32 %s297, %s298
      %s300 = smul.addr %s299, 8
      %s301 = scalar_lea.vmem %s1, %s300
      %s302 = smul.u32 2, %s22
      %s303 = smul.u32 2, %s22
      %p304 = scmp.lt.s32.totalorder %s21, 1
      %s305 = scalar_select %p304, %s21, 1
      %p306 = scmp.lt.s32.totalorder %s303, 1
      %s307 = scalar_select %p306, %s303, 1
      %s308 = smul.addr %s305, 4
      %s309 = sadd.s32 %s307, %s308
      %s310 = smul.addr %s309, 8
      %s311 = scalar_lea.vmem %s4, %s310
      %s312 = smul.u32 2, %s22
      %s313 = smul.u32 2, %s22
      %p314 = scmp.lt.s32.totalorder %s21, 1
      %s315 = scalar_select %p314, %s21, 1
      %p316 = scmp.lt.s32.totalorder %s313, 1
      %s317 = scalar_select %p316, %s313, 1
      %s318 = smul.addr %s315, 2
      %s319 = sadd.s32 %s317, %s318
      %s320 = scalar_lea.vmem %s5, %s319
      %s321 = smul.u32 2, %s22
      %v323 = vld [vmem:[%s2] sm:$0xff]
      %v324 = vld [vmem:[%s2 + $0x8] sm:$0xff]
      %v325 = vld [vmem:[%s2 + $0x10] sm:$0xff]
      %v326 = vld [vmem:[%s2 + $0x18] sm:$0xff]
      %v327 = vld [vmem:[%s291] sm:$0xff]
      %v328 = vld [vmem:[%s291 + $0x8] sm:$0xff]
      %v329 = vld [vmem:[%s291 + $0x10] sm:$0xff]
      %v330 = vld [vmem:[%s291 + $0x18] sm:$0xff]
      %v331 = vld [vmem:[%s291 + $0x20] sm:$0xff]
      %v332 = vld [vmem:[%s291 + $0x28] sm:$0xff]
      %v333 = vld [vmem:[%s291 + $0x30] sm:$0xff]
      %v334 = vld [vmem:[%s291 + $0x38] sm:$0xff]
      %v335 = vld [vmem:[%s291 + $0x40] sm:$0xff]
      %v336 = vld [vmem:[%s291 + $0x48] sm:$0xff]
      %v337 = vld [vmem:[%s291 + $0x50] sm:$0xff]
      %v338 = vld [vmem:[%s291 + $0x58] sm:$0xff]
      %v339 = vld [vmem:[%s291 + $0x60] sm:$0xff]
      %v340 = vld [vmem:[%s291 + $0x68] sm:$0xff]
      %v341 = vld [vmem:[%s291 + $0x70] sm:$0xff]
      %v342 = vld [vmem:[%s291 + $0x78] sm:$0xff]
      %v343 = vld [vmem:[%s291 + $0x80] sm:$0xff]
      %v344 = vld [vmem:[%s291 + $0x88] sm:$0xff]
      %v345 = vld [vmem:[%s291 + $0x90] sm:$0xff]
      %v346 = vld [vmem:[%s291 + $0x98] sm:$0xff]
      %v347 = vld [vmem:[%s291 + $0xa0] sm:$0xff]
      %v348 = vld [vmem:[%s291 + $0xa8] sm:$0xff]
      %v349 = vld [vmem:[%s291 + $0xb0] sm:$0xff]
      %v350 = vld [vmem:[%s291 + $0xb8] sm:$0xff]
      %v351 = vld [vmem:[%s291 + $0xc0] sm:$0xff]
      %v352 = vld [vmem:[%s291 + $0xc8] sm:$0xff]
      %v353 = vld [vmem:[%s291 + $0xd0] sm:$0xff]
      %v354 = vld [vmem:[%s291 + $0xd8] sm:$0xff]
      %v355 = vld [vmem:[%s291 + $0xe0] sm:$0xff]
      %v356 = vld [vmem:[%s291 + $0xe8] sm:$0xff]
      %v357 = vld [vmem:[%s291 + $0xf0] sm:$0xff]
      %v358 = vld [vmem:[%s291 + $0xf8] sm:$0xff]
      %v359 = vld [vmem:[%s291 + $0x100] sm:$0xff]
      %v360 = vld [vmem:[%s291 + $0x108] sm:$0xff]
      %v361 = vld [vmem:[%s291 + $0x110] sm:$0xff]
      %v362 = vld [vmem:[%s291 + $0x118] sm:$0xff]
      %v363 = vld [vmem:[%s291 + $0x120] sm:$0xff]
      %v364 = vld [vmem:[%s291 + $0x128] sm:$0xff]
      %v365 = vld [vmem:[%s291 + $0x130] sm:$0xff]
      %v366 = vld [vmem:[%s291 + $0x138] sm:$0xff]
      %v367 = vld [vmem:[%s291 + $0x140] sm:$0xff]
      %v368 = vld [vmem:[%s291 + $0x148] sm:$0xff]
      %v369 = vld [vmem:[%s291 + $0x150] sm:$0xff]
      %v370 = vld [vmem:[%s291 + $0x158] sm:$0xff]
      %v371 = vld [vmem:[%s291 + $0x160] sm:$0xff]
      %v372 = vld [vmem:[%s291 + $0x168] sm:$0xff]
      %v373 = vld [vmem:[%s291 + $0x170] sm:$0xff]
      %v374 = vld [vmem:[%s291 + $0x178] sm:$0xff]
      %v375 = vld [vmem:[%s291 + $0x180] sm:$0xff]
      %v376 = vld [vmem:[%s291 + $0x188] sm:$0xff]
      %v381 = vunpack.c.l.b16 %v323
      %v382 = vunpack.c.h.b16 %v323
      %v383 = vunpack.c.l.b16 %v324
      %v384 = vunpack.c.h.b16 %v324
      %v385 = vunpack.c.l.b16 %v325
      %v386 = vunpack.c.h.b16 %v325
      %v387 = vunpack.c.l.b16 %v326
      %v388 = vunpack.c.h.b16 %v326
      %v389 = vpack.c.b16 %v385, %v381
      %v390 = vpack.c.b16 %v386, %v382
      %v391 = vpack.c.b16 %v387, %v383
      %v392 = vpack.c.b16 %v388, %v384
      %v446 = vunpack.c.l.b16 %v327
      %v447 = vunpack.c.h.b16 %v327
      %v448 = vunpack.c.l.b16 %v328
      %v449 = vunpack.c.h.b16 %v328
      %v450 = vunpack.c.l.b16 %v329
      %v451 = vunpack.c.h.b16 %v329
      %v452 = vunpack.c.l.b16 %v330
      %v453 = vunpack.c.h.b16 %v330
      %v454 = vunpack.c.l.b16 %v331
      %v455 = vunpack.c.h.b16 %v331
      %v456 = vunpack.c.l.b16 %v332
      %v457 = vunpack.c.h.b16 %v332
      %v458 = vunpack.c.l.b16 %v333
      %v459 = vunpack.c.h.b16 %v333
      %v460 = vunpack.c.l.b16 %v334
      %v461 = vunpack.c.h.b16 %v334
      %v462 = vunpack.c.l.b16 %v335
      %v463 = vunpack.c.h.b16 %v335
      %v464 = vunpack.c.l.b16 %v336
      %v465 = vunpack.c.h.b16 %v336
      %v466 = vunpack.c.l.b16 %v337
      %v467 = vunpack.c.h.b16 %v337
      %v468 = vunpack.c.l.b16 %v338
      %v469 = vunpack.c.h.b16 %v338
      %v470 = vunpack.c.l.b16 %v339
      %v471 = vunpack.c.h.b16 %v339
      %v472 = vunpack.c.l.b16 %v340
      %v473 = vunpack.c.h.b16 %v340
      %v474 = vunpack.c.l.b16 %v341
      %v475 = vunpack.c.h.b16 %v341
      %v476 = vunpack.c.l.b16 %v342
      %v477 = vunpack.c.h.b16 %v342
      %v478 = vunpack.c.l.b16 %v343
      %v479 = vunpack.c.h.b16 %v343
      %v480 = vunpack.c.l.b16 %v344
      %v481 = vunpack.c.h.b16 %v344
      %v482 = vunpack.c.l.b16 %v345
      %v483 = vunpack.c.h.b16 %v345
      %v484 = vunpack.c.l.b16 %v346
      %v485 = vunpack.c.h.b16 %v346
      %v486 = vunpack.c.l.b16 %v347
      %v487 = vunpack.c.h.b16 %v347
      %v488 = vunpack.c.l.b16 %v348
      %v489 = vunpack.c.h.b16 %v348
      %v490 = vunpack.c.l.b16 %v349
      %v491 = vunpack.c.h.b16 %v349
      %v492 = vunpack.c.l.b16 %v350
      %v493 = vunpack.c.h.b16 %v350
      %v494 = vunpack.c.l.b16 %v351
      %v495 = vunpack.c.h.b16 %v351
      %v496 = vunpack.c.l.b16 %v352
      %v497 = vunpack.c.h.b16 %v352
      %v498 = vunpack.c.l.b16 %v353
      %v499 = vunpack.c.h.b16 %v353
      %v500 = vunpack.c.l.b16 %v354
      %v501 = vunpack.c.h.b16 %v354
      %v502 = vunpack.c.l.b16 %v355
      %v503 = vunpack.c.h.b16 %v355
      %v504 = vunpack.c.l.b16 %v356
      %v505 = vunpack.c.h.b16 %v356
      %v506 = vunpack.c.l.b16 %v357
      %v507 = vunpack.c.h.b16 %v357
      %v508 = vunpack.c.l.b16 %v358
      %v509 = vunpack.c.h.b16 %v358
      %v510 = vunpack.c.l.b16 %v359
      %v511 = vunpack.c.h.b16 %v359
      %v512 = vunpack.c.l.b16 %v360
      %v513 = vunpack.c.h.b16 %v360
      %v514 = vunpack.c.l.b16 %v361
      %v515 = vunpack.c.h.b16 %v361
      %v516 = vunpack.c.l.b16 %v362
      %v517 = vunpack.c.h.b16 %v362
      %v518 = vunpack.c.l.b16 %v363
      %v519 = vunpack.c.h.b16 %v363
      %v520 = vunpack.c.l.b16 %v364
      %v521 = vunpack.c.h.b16 %v364
      %v522 = vunpack.c.l.b16 %v365
      %v523 = vunpack.c.h.b16 %v365
      %v524 = vunpack.c.l.b16 %v366
      %v525 = vunpack.c.h.b16 %v366
      %v526 = vunpack.c.l.b16 %v367
      %v527 = vunpack.c.h.b16 %v367
      %v528 = vunpack.c.l.b16 %v368
      %v529 = vunpack.c.h.b16 %v368
      %v530 = vunpack.c.l.b16 %v369
      %v531 = vunpack.c.h.b16 %v369
      %v532 = vunpack.c.l.b16 %v370
      %v533 = vunpack.c.h.b16 %v370
      %v534 = vunpack.c.l.b16 %v371
      %v535 = vunpack.c.h.b16 %v371
      %v536 = vunpack.c.l.b16 %v372
      %v537 = vunpack.c.h.b16 %v372
      %v538 = vunpack.c.l.b16 %v373
      %v539 = vunpack.c.h.b16 %v373
      %v540 = vunpack.c.l.b16 %v374
      %v541 = vunpack.c.h.b16 %v374
      %v542 = vunpack.c.l.b16 %v375
      %v543 = vunpack.c.h.b16 %v375
      %v544 = vunpack.c.l.b16 %v376
      %v545 = vunpack.c.h.b16 %v376
      %v546 = vpack.c.b16 %v448, %v446
      %v547 = vpack.c.b16 %v449, %v447
      %v548 = vpack.c.b16 %v452, %v450
      %v549 = vpack.c.b16 %v453, %v451
      %v550 = vpack.c.b16 %v456, %v454
      %v551 = vpack.c.b16 %v457, %v455
      %v552 = vpack.c.b16 %v460, %v458
      %v553 = vpack.c.b16 %v461, %v459
      %v554 = vpack.c.b16 %v464, %v462
      %v555 = vpack.c.b16 %v465, %v463
      %v556 = vpack.c.b16 %v468, %v466
      %v557 = vpack.c.b16 %v469, %v467
      %v558 = vpack.c.b16 %v472, %v470
      %v559 = vpack.c.b16 %v473, %v471
      %v560 = vpack.c.b16 %v476, %v474
      %v561 = vpack.c.b16 %v477, %v475
      %v562 = vpack.c.b16 %v480, %v478
      %v563 = vpack.c.b16 %v481, %v479
      %v564 = vpack.c.b16 %v484, %v482
      %v565 = vpack.c.b16 %v485, %v483
      %v566 = vpack.c.b16 %v488, %v486
      %v567 = vpack.c.b16 %v489, %v487
      %v568 = vpack.c.b16 %v492, %v490
      %v569 = vpack.c.b16 %v493, %v491
      %v570 = vpack.c.b16 %v496, %v494
      %v571 = vpack.c.b16 %v497, %v495
      %v572 = vpack.c.b16 %v500, %v498
      %v573 = vpack.c.b16 %v501, %v499
      %v574 = vpack.c.b16 %v504, %v502
      %v575 = vpack.c.b16 %v505, %v503
      %v576 = vpack.c.b16 %v508, %v506
      %v577 = vpack.c.b16 %v509, %v507
      %v578 = vpack.c.b16 %v512, %v510
      %v579 = vpack.c.b16 %v513, %v511
      %v580 = vpack.c.b16 %v516, %v514
      %v581 = vpack.c.b16 %v517, %v515
      %v582 = vpack.c.b16 %v520, %v518
      %v583 = vpack.c.b16 %v521, %v519
      %v584 = vpack.c.b16 %v524, %v522
      %v585 = vpack.c.b16 %v525, %v523
      %v586 = vpack.c.b16 %v528, %v526
      %v587 = vpack.c.b16 %v529, %v527
      %v588 = vpack.c.b16 %v532, %v530
      %v589 = vpack.c.b16 %v533, %v531
      %v590 = vpack.c.b16 %v536, %v534
      %v591 = vpack.c.b16 %v537, %v535
      %v592 = vpack.c.b16 %v540, %v538
      %v593 = vpack.c.b16 %v541, %v539
      %v594 = vpack.c.b16 %v544, %v542
      %v595 = vpack.c.b16 %v545, %v543
      %vm646 = vcmask 130048
      %v648 = vsel %vm646, %v392, 0
      %650 = vmatprep.subr.bf16.mxu0 %v547
      %651 = vmatpush1.bf16.msra.mxu0 %v546
      %652 = vmatprep.subr.bf16.mxu0 %v549
      %653 = vmatpush1.bf16.msra.mxu0 %v548
      %654 = vmatprep.subr.bf16.mxu0 %v551
      %655 = vmatpush1.bf16.msra.mxu0 %v550
      %656 = vmatprep.subr.bf16.mxu0 %v553
      %657 = vmatpush1.bf16.msra.mxu0 %v552
      %658 = vmatprep.subr.bf16.mxu0 %v555
      %659 = vmatpush1.bf16.msra.mxu0 %v554
      %660 = vmatprep.subr.bf16.mxu0 %v557
      %661 = vmatpush1.bf16.msra.mxu0 %v556
      %662 = vmatprep.subr.bf16.mxu0 %v559
      %663 = vmatpush1.bf16.msra.mxu0 %v558
      %664 = vmatprep.subr.bf16.mxu0 %v561
      %665 = vmatpush1.bf16.msra.mxu0 %v560
      %666 = vmatprep.subr.bf16.mxu0 %v563
      %667 = vmatpush1.bf16.msra.mxu0 %v562
      %668 = vmatprep.subr.bf16.mxu0 %v565
      %669 = vmatpush1.bf16.msra.mxu0 %v564
      %670 = vmatprep.subr.bf16.mxu0 %v567
      %671 = vmatpush1.bf16.msra.mxu0 %v566
      %672 = vmatprep.subr.bf16.mxu0 %v569
      %673 = vmatpush1.bf16.msra.mxu0 %v568
      %674 = vmatprep.subr.bf16.mxu0 %v571
      %675 = vmatpush1.bf16.msra.mxu0 %v570
      %676 = vmatprep.subr.bf16.mxu0 %v573
      %677 = vmatpush1.bf16.msra.mxu0 %v572
      %678 = vmatprep.subr.bf16.mxu0 %v575
      %679 = vmatpush1.bf16.msra.mxu0 %v574
      %680 = vmatprep.subr.bf16.mxu0 %v577
      %681 = vmatpush1.bf16.msra.mxu0 %v576
      %682 = vmatprep.mubr.bf16.mxu0 %v390
      %683 = vmatmul.mubr.bf16.gmra.mrb[0].mxu0 %v389
      %v684 = vpop.f32.mrb[0].mxu0
      %v685 = vadd.f32 0.0, %v684
      %v686 = vpop.f32.mrb[0].mxu0
      %v687 = vadd.f32 0.0, %v686
      %v688 = vpop.f32.mrb[0].mxu0
      %v689 = vadd.f32 0.0, %v688
      %v690 = vpop.f32.mrb[0].mxu0
      %v691 = vadd.f32 0.0, %v690
      %692 = vdwg.mxu0
      %693 = vmatprep.subr.bf16.mxu0 %v579
      %694 = vmatpush1.bf16.msra.mxu0 %v578
      %695 = vmatprep.subr.bf16.mxu0 %v581
      %696 = vmatpush1.bf16.msra.mxu0 %v580
      %697 = vmatprep.subr.bf16.mxu0 %v583
      %698 = vmatpush1.bf16.msra.mxu0 %v582
      %699 = vmatprep.subr.bf16.mxu0 %v585
      %700 = vmatpush1.bf16.msra.mxu0 %v584
      %701 = vmatprep.subr.bf16.mxu0 %v587
      %702 = vmatpush1.bf16.msra.mxu0 %v586
      %703 = vmatprep.subr.bf16.mxu0 %v589
      %704 = vmatpush1.bf16.msra.mxu0 %v588
      %705 = vmatprep.subr.bf16.mxu0 %v591
      %706 = vmatpush1.bf16.msra.mxu0 %v590
      %707 = vmatprep.subr.bf16.mxu0 %v593
      %708 = vmatpush1.bf16.msra.mxu0 %v592
      %709 = vmatprep.subr.bf16.mxu0 %v595
      %710 = vmatpush1.bf16.msra.mxu0 %v594
      %711 = vmatprep.subr.bf16.mxu0 0
      %712 = vmatpush1.bf16.msra.mxu0 0
      %713 = vmatprep.subr.bf16.mxu0 0
      %714 = vmatpush1.bf16.msra.mxu0 0
      %715 = vmatprep.subr.bf16.mxu0 0
      %716 = vmatpush1.bf16.msra.mxu0 0
      %717 = vmatprep.subr.bf16.mxu0 0
      %718 = vmatpush1.bf16.msra.mxu0 0
      %719 = vmatprep.subr.bf16.mxu0 0
      %720 = vmatpush1.bf16.msra.mxu0 0
      %721 = vmatprep.subr.bf16.mxu0 0
      %722 = vmatpush1.bf16.msra.mxu0 0
      %723 = vmatprep.subr.bf16.mxu0 0
      %724 = vmatpush1.bf16.msra.mxu0 0
      %725 = vmatprep.mubr.bf16.mxu0 %v648
      %726 = vmatmul.mubr.bf16.gmra.mrb[0].mxu0 %v391
      %v727 = vpop.f32.mrb[0].mxu0
      %v728 = vadd.f32 %v685, %v727
      %v729 = vpop.f32.mrb[0].mxu0
      %v730 = vadd.f32 %v687, %v729
      %v731 = vpop.f32.mrb[0].mxu0
      %v732 = vadd.f32 %v689, %v731
      %v733 = vpop.f32.mrb[0].mxu0
      %v734 = vadd.f32 %v691, %v733
      %735 = vdwg.mxu0
      %v736 = vld [vmem:[%s301] sm:$0xff]
      %v737 = vld [vmem:[%s301 + $0x8] sm:$0xff]
      %v738 = vld [vmem:[%s301 + $0x10] sm:$0xff]
      %v739 = vld [vmem:[%s301 + $0x18] sm:$0xff]
      %v740 = vld [vmem:[%s301 + $0x20] sm:$0xff]
      %v741 = vld [vmem:[%s301 + $0x28] sm:$0xff]
      %v742 = vld [vmem:[%s301 + $0x30] sm:$0x1]
      %v743 = vld [vmem:[%s301 + $0x38] sm:$0x1]
      %v744 = vadd.f32 %v736, %v738
      %v745 = vadd.f32 %v744, %v740
      %vm746 = vcmask 1040384
      %v747 = vsel %vm746, %v742, 0.0
      %v748 = vadd.f32 %v745, %v747
      %v749 = vrot.slane %v748, 4
      %v750 = vadd.f32 %v748, %v749
      %v751 = vrot.slane %v750, 2
      %v752 = vadd.f32 %v750, %v751
      %v753 = vrot.slane %v752, 1
      %v754 = vadd.f32 %v752, %v753
      %v755 = vadd.f32 %v737, %v739
      %v756 = vadd.f32 %v755, %v741
      %v757 = vsel %vm746, %v743, 0.0
      %v758 = vadd.f32 %v756, %v757
      %v759 = vrot.slane %v758, 4
      %v760 = vadd.f32 %v758, %v759
      %v761 = vrot.slane %v760, 2
      %v762 = vadd.f32 %v760, %v761
      %v763 = vrot.slane %v762, 1
      %v764 = vadd.f32 %v762, %v763
      %v765 = vmax.f32 %v754, 1e-05
      %v766 = vmax.f32 %v764, 1e-05
      %v767 = vrcp.pop %v765
      %v768 = vmul.f32 1.0, %v767
      %v769 = vrcp.pop %v766
      %v770 = vmul.f32 1.0, %v769
      %v771 = vmul.f32 %v728, %v768
      %v772 = vmul.f32 %v730, %v770
      %v773 = vmul.f32 %v732, %v768
      %v774 = vmul.f32 %v734, %v770
      %v775 = vld [vmem:[%s3] sm:$0xff]
      %v776 = vld [vmem:[%s3 + $0x8] sm:$0xff]
      %778 = vset.pattern.permute.xlu0 0
      %779 = vperm.xlu0 %778, %v775
      %v780 = vpop.permute.xlu0 %779
      %783 = vset.pattern.permute.xlu0 0
      %784 = vperm.xlu0 %783, %v776
      %v785 = vpop.permute.xlu0 %784
      %v787 = vadd.f32 %v771, %v780
      %v788 = vadd.f32 %v772, %v780
      %v789 = vadd.f32 %v773, %v785
      %v790 = vadd.f32 %v774, %v785
      %791 = vst [vmem:[%s311] sm:$0xff] %v787
      %792 = vst [vmem:[%s311 + $0x8] sm:$0xff] %v788
      %793 = vst [vmem:[%s311 + $0x10] sm:$0xff] %v789
      %794 = vst [vmem:[%s311 + $0x18] sm:$0xff] %v790
      %vm795 = vcmp.gt.f32.partialorder %v754, 0.0
      %vm796 = vcmp.gt.f32.partialorder %v764, 0.0
      %v797 = vsel %vm795, 1, 0
      %v798 = vsel %vm796, 1, 0
      %v799 = vcvt.s32.f32 %v797
      %v800 = vcvt.s32.f32 %v798
      %v803 = vcombine.low %v799, %v800
      %v805 = vunpack.c.l.s4 1966171168
      %v806 = vunpack.c.0.s8 %v805
      %v807 = vlaneseq
      %v808 = vshrl.u32 %v807, 7
      %v809 = vsub.s32 %v806, %v808
      %v810 = vrot.slane %v803, %v809
      %v812 = vunpack.c.l.s4 1966171168
      %v813 = vunpack.c.0.s8 %v812
      %v814 = vlaneseq
      %v815 = vshrl.u32 %v814, 7
      %v816 = vsub.s32 %v813, %v815
      %v817 = vrot.slane %v810, %v816
      %v819 = vlaneseq
      %vm820 = vcmp.ge.s32.totalorder %v819, 0
      %vm821 = vcmp.lt.s32.totalorder %v819, 256
      %vm822 = vmand %vm820, %vm821
      %823 = vst.msk [vmem:[%s320] sm:$0x3] %vm822, %v817
      %s824 = smul.u32 2, %s22
      %p825 = scmp.lt.s32.totalorder %s21, 1
      %s826 = scalar_select %p825, %s21, 1
      %p827 = scmp.lt.s32.totalorder %s824, 1
      %s828 = scalar_select %p827, %s824, 1
      %s829 = smul.addr %s826, 4
      %s830 = sadd.s32 %s828, %s829
      %s831 = smul.addr %s830, 8
      %s832 = scalar_lea.vmem %s4, %s831
      %s833 = smul.u32 2, %s22
      %p834 = scmp.lt.s32.totalorder %s21, 1
      %s835 = scalar_select %p834, %s21, 1
      %p836 = scmp.lt.s32.totalorder %s833, 1
      %s837 = scalar_select %p836, %s833, 1
      %s838 = smul.addr %s835, 2
      %s839 = sadd.s32 %s837, %s838
      %s840 = scalar_lea.vmem %s5, %s839
      // Predicated region
      $region37: #{three_scale_block_forward.6} parent=35 // pred_check
        %p841 = pneg %p147
      $region38: #{three_scale_block_forward.6} parent=35 // pred_check_branch
        %843 = sbr.rel (%p841) target = $region40
      $region39: #{three_scale_block_forward.6} parent=35 // pred_region
        %s844 = smul.u32 2, %s22
      $region40: #{three_scale_block_forward.6} parent=35 // pred_fallthru
        _
      // Predicated region
      $region41: #{three_scale_block_forward.6} parent=35 // pred_check
        %p845 = pneg %p175
      $region42: #{three_scale_block_forward.6} parent=35 // pred_check_branch
        %847 = sbr.rel (%p845) target = $region44
      $region43: #{three_scale_block_forward.6} parent=35 // pred_region
        %s848 = smul.u32 2, %s22
      $region44: #{three_scale_block_forward.6} parent=35 // pred_fallthru
        _
    $region36: #{three_scale_block_forward.6} parent=5 // pred_fallthru
      _
    %p849 = scmp.le.s32.totalorder 2, %s12
    // Predicated region
    $region45: #{three_scale_block_forward.6} parent=5 // pred_check
      %p850 = pneg %p849
    $region46: #{three_scale_block_forward.6} parent=5 // pred_check_branch
      %852 = sbr.rel (%p850) target = $region48
    $region47: #{three_scale_block_forward.6} parent=5 // pred_region
      %s853 = ssub.s32 %s12, 2
      // Predicated region
      $region49: #{three_scale_block_forward.6} parent=47 // pred_check
        %p854 = pneg %p153
      $region50: #{three_scale_block_forward.6} parent=47 // pred_check_branch
        %856 = sbr.rel (%p854) target = $region52
      $region51: #{three_scale_block_forward.6} parent=47 // pred_region
        %s857 = smul.u32 2, %s24
        %p858 = scmp.lt.s32.totalorder %s23, 1
        %s859 = scalar_select %p858, %s23, 1
        %p860 = scmp.lt.s32.totalorder %s857, 1
        %s861 = scalar_select %p860, %s857, 1
        %s862 = smul.addr %s859, 4
        %s863 = sadd.s32 %s861, %s862
        %s864 = smul.addr %s863, 8
        %s865 = scalar_lea.vmem %s4, %s864
      $region52: #{three_scale_block_forward.6} parent=47 // pred_fallthru
        _
      // Predicated region
      $region53: #{three_scale_block_forward.6} parent=47 // pred_check
        %p866 = pneg %p181
      $region54: #{three_scale_block_forward.6} parent=47 // pred_check_branch
        %868 = sbr.rel (%p866) target = $region56
      $region55: #{three_scale_block_forward.6} parent=47 // pred_region
        %s869 = smul.u32 2, %s24
        %p870 = scmp.lt.s32.totalorder %s23, 1
        %s871 = scalar_select %p870, %s23, 1
        %p872 = scmp.lt.s32.totalorder %s869, 1
        %s873 = scalar_select %p872, %s869, 1
        %s874 = smul.addr %s871, 2
        %s875 = sadd.s32 %s873, %s874
        %s876 = scalar_lea.vmem %s5, %s875
      $region56: #{three_scale_block_forward.6} parent=47 // pred_fallthru
        _
    $region48: #{three_scale_block_forward.6} parent=5 // pred_fallthru
      _
  $region6: #{three_scale_block_forward.6} parent=0 // loop_footer
    %s16 = sadd.s32 1, %s12
  $region7: #{three_scale_block_forward.6} parent=0 // loop_footer_branch
    %11 = sbr.rel target = $region3
  $region8: #{three_scale_block_forward.6} parent=0 // loop_exit
    _

// kernel: mul.77
$region0: #{mul.77}
  %s0 = inlined_call_operand.vmem [shape: f32[2,16], index: 0, kind: input, shape index: {}]
  %s1 = inlined_call_operand.vmem [shape: f32[2,4,4], index: 1, kind: output, shape index: {}]
  $region1: #{mul.77} parent=0
    #allocation0 [shape = 'u8[8192]{0}', space=vmem, size = 0x2000, scoped, tag = 'scoped mem for output reshape']
    #allocation1 [shape = 'u8[4096]{0}', space=vmem, size = 0x1000, scoped, tag = 'scoped mem for input reshape']
    %s3 = sshllo.u32 0, 2
    %v4 = vld [vmem:[%s0] sm:%s3]
    %5 = vst [vmem:[#allocation1] sm:%s3] %v4
    %v6 = vld [vmem:[#allocation1] sm:$0x3]
    %vm7 = vcmask 31744
    %8 = vst.msk [vmem:[#allocation0] ss:$8 sm:$0x3] %vm7, %v6
    %v9 = vld [vmem:[#allocation1] sm:$0x3]
    %10 = vrot.lane.b32.xlu0 %v9, 124
    %v11 = vpop.permute.xlu0 %10
    %vm12 = vcmask 31744
    %s13 = scalar_lea.vmem [#allocation0], 1
    %14 = vst.msk [vmem:[%s13] ss:$8 sm:$0x3] %vm12, %v11
    %v15 = vld [vmem:[#allocation1] sm:$0x3]
    %16 = vrot.lane.b32.xlu0 %v15, 120
    %v17 = vpop.permute.xlu0 %16
    %vm18 = vcmask 31744
    %s19 = scalar_lea.vmem [#allocation0], 2
    %20 = vst.msk [vmem:[%s19] ss:$8 sm:$0x3] %vm18, %v17
    %v21 = vld [vmem:[#allocation1] sm:$0x3]
    %22 = vrot.lane.b32.xlu0 %v21, 116
    %v23 = vpop.permute.xlu0 %22
    %vm24 = vcmask 31744
    %s25 = scalar_lea.vmem [#allocation0], 3
    %26 = vst.msk [vmem:[%s25] ss:$8 sm:$0x3] %vm24, %v23
    %s28 = sshllo.u32 0, 4
    %v30 = vld [vmem:[#allocation0] sm:%s28]
    %s31 = sshllo.u32 0, 4
    %32 = vst [vmem:[%s1] sm:%s31] %v30
    %s33 = scalar_lea.vmem [#allocation0], 8
    %v34 = vld [vmem:[%s33] sm:%s28]
    %s35 = sshllo.u32 0, 4
    %s36 = scalar_lea.vmem %s1, 4
    %37 = vst [vmem:[%s36] sm:%s35] %v34

// kernel: three_scale_block_forward.8
$region0: #{three_scale_block_forward.8}
  #allocation0 [shape = 'u32[]', space=smem, size = 0x4, offset = 0x4, fixed_abs, tag = 'smem constant byte address 0x4 - core index']
  #allocation1 [shape = 'u32[144,128]{1,0:T(1,128)}', space=vmem, size = 0x12000, scoped, tag = 'internal scratch']
  %s0 = inlined_call_operand.vmem [shape: bf16[2,32,16], index: 0, kind: input, shape index: {}]
  %s1 = inlined_call_operand.vmem [shape: f32[2,1,16], index: 1, kind: input, shape index: {}]
  %s2 = inlined_call_operand.vmem [shape: f32[2,1,16], index: 2, kind: input, shape index: {}]
  %s3 = inlined_call_operand.vmem [shape: bf16[48,32], index: 3, kind: input, shape index: {}]
  %s4 = inlined_call_operand.vmem [shape: f32[2,16,16], index: 4, kind: output, shape index: {0}]
  %s5 = inlined_call_operand.vmem [shape: f32[2,1,16], index: 5, kind: output, shape index: {1}]
  %6 = xla_tuple %s4, %s5
  %s7 = sld [smem:[#allocation0]]
  $region57: #{three_scale_block_forward.8} parent=0
    _
  %s9 = ssub.s32 1, %s7
  %s10 = scalar_select 0, %s9, %s7
  loop: start=0, step=1, limit=4
  $region2: #{three_scale_block_forward.8} parent=0 // loop_pre_header
    _
  $region3: #{three_scale_block_forward.8} parent=0 // loop_header
    %s12 = sphi 0, %s16
    %p13 = scmp.ge.s32.totalorder %s12, 4
    %s19 = sphi 0, %s31
    %s20 = sphi 0, %s27
    %s21 = sphi 0, %s19
    %s22 = sphi 0, %s20
    %s23 = sphi 0, %s21
    %s24 = sphi 0, %s22
    %s36 = sphi 0, %s38
    %s39 = sphi 0, %s36
    %s40 = sphi 0, %s39
    %s56 = sphi 0, %s40
    %s64 = sphi 0, %s66
    %s67 = sphi 0, %s64
    %s68 = sphi 0, %s67
    %s84 = sphi 0, %s68
    %s92 = sphi 0, %s94
    %s95 = sphi 0, %s92
    %s96 = sphi 0, %s95
    %s112 = sphi 0, %s96
    %s116 = sphi 0, %s116
    %s118 = sphi 0, %s116
    %s119 = sphi 0, %s118
    %s133 = sphi 0, %s119
    %s141 = sphi 0, %s143
    %s144 = sphi 0, %s141
    %s145 = sphi 0, %s144
    %s161 = sphi 0, %s145
    %s169 = sphi 0, %s171
    %s172 = sphi 0, %s169
    %s173 = sphi 0, %s172
    %s189 = sphi 0, %s173
  $region4: #{three_scale_block_forward.8} parent=0 // loop_header_branch
    %15 = sbr.rel (%p13) target = $region8
  $region5: #{three_scale_block_forward.8} parent=0 // loop_body
    %s17 = ssub.s32 %s12, 1
    %s18 = ssub.s32 %s12, 2
    %s25 = sadd.s32 1, %s20
    %p26 = scmp.ge.s32.totalorder %s25, 1
    %s27 = scalar_select %p26, 0, %s25
    %s28 = sadd.s32 1, %s19
    %s29 = scalar_select %p26, %s28, %s19
    %p30 = scmp.ge.s32.totalorder %s29, 2
    %s31 = scalar_select %p30, 0, %s29
    %s32 = ssub.s32 %s19, %s31
    %s33 = ssub.s32 %s20, %s27
    %s34 = sor.u32 %s32, %s33
    %p35 = scmp.eq.s32.totalorder %s34, 0
    %s37 = sadd.s32 %s36, 1
    %s38 = scalar_select %p35, %s36, %s37
    %p41 = pneg %p35
    %p42 = scmp.eq.s32.totalorder %s12, 1
    %p43 = por %p41, %p42
    %p44 = scmp.ne.s32.totalorder %s36, %s39
    %p45 = scmp.eq.s32.totalorder %s12, 0
    %p46 = por %p44, %p45
    %p47 = scmp.ne.s32.totalorder %s36, %s39
    %p48 = scmp.eq.s32.totalorder %s17, 1
    %p49 = por %p47, %p48
    %p50 = scmp.ne.s32.totalorder %s39, %s40
    %p51 = scmp.eq.s32.totalorder %s17, 0
    %p52 = por %p50, %p51
    %p53 = scmp.ne.s32.totalorder %s39, %s40
    %p54 = scmp.eq.s32.totalorder %s18, 1
    %p55 = por %p53, %p54
    %p57 = scmp.ne.s32.totalorder %s40, %s56
    %p58 = scmp.eq.s32.totalorder %s18, 0
    %p59 = por %p57, %p58
    %s60 = ssub.s32 %s19, %s31
    %s61 = ssub.s32 %s20, %s27
    %s62 = sor.u32 %s60, %s61
    %p63 = scmp.eq.s32.totalorder %s62, 0
    %s65 = sadd.s32 %s64, 1
    %s66 = scalar_select %p63, %s64, %s65
    %p69 = pneg %p63
    %p70 = scmp.eq.s32.totalorder %s12, 1
    %p71 = por %p69, %p70
    %p72 = scmp.ne.s32.totalorder %s64, %s67
    %p73 = scmp.eq.s32.totalorder %s12, 0
    %p74 = por %p72, %p73
    %p75 = scmp.ne.s32.totalorder %s64, %s67
    %p76 = scmp.eq.s32.totalorder %s17, 1
    %p77 = por %p75, %p76
    %p78 = scmp.ne.s32.totalorder %s67, %s68
    %p79 = scmp.eq.s32.totalorder %s17, 0
    %p80 = por %p78, %p79
    %p81 = scmp.ne.s32.totalorder %s67, %s68
    %p82 = scmp.eq.s32.totalorder %s18, 1
    %p83 = por %p81, %p82
    %p85 = scmp.ne.s32.totalorder %s68, %s84
    %p86 = scmp.eq.s32.totalorder %s18, 0
    %p87 = por %p85, %p86
    %s88 = ssub.s32 %s19, %s31
    %s89 = ssub.s32 %s20, %s27
    %s90 = sor.u32 %s88, %s89
    %p91 = scmp.eq.s32.totalorder %s90, 0
    %s93 = sadd.s32 %s92, 1
    %s94 = scalar_select %p91, %s92, %s93
    %p97 = pneg %p91
    %p98 = scmp.eq.s32.totalorder %s12, 1
    %p99 = por %p97, %p98
    %p100 = scmp.ne.s32.totalorder %s92, %s95
    %p101 = scmp.eq.s32.totalorder %s12, 0
    %p102 = por %p100, %p101
    %p103 = scmp.ne.s32.totalorder %s92, %s95
    %p104 = scmp.eq.s32.totalorder %s17, 1
    %p105 = por %p103, %p104
    %p106 = scmp.ne.s32.totalorder %s95, %s96
    %p107 = scmp.eq.s32.totalorder %s17, 0
    %p108 = por %p106, %p107
    %p109 = scmp.ne.s32.totalorder %s95, %s96
    %p110 = scmp.eq.s32.totalorder %s18, 1
    %p111 = por %p109, %p110
    %p113 = scmp.ne.s32.totalorder %s96, %s112
    %p114 = scmp.eq.s32.totalorder %s18, 0
    %p115 = por %p113, %p114
    %s117 = sadd.s32 %s116, 1
    %p120 = scmp.eq.s32.totalorder %s12, 1
    %p121 = scmp.ne.s32.totalorder %s116, %s118
    %p122 = scmp.eq.s32.totalorder %s12, 0
    %p123 = por %p121, %p122
    %p124 = scmp.ne.s32.totalorder %s116, %s118
    %p125 = scmp.eq.s32.totalorder %s17, 1
    %p126 = por %p124, %p125
    %p127 = scmp.ne.s32.totalorder %s118, %s119
    %p128 = scmp.eq.s32.totalorder %s17, 0
    %p129 = por %p127, %p128
    %p130 = scmp.ne.s32.totalorder %s118, %s119
    %p131 = scmp.eq.s32.totalorder %s18, 1
    %p132 = por %p130, %p131
    %p134 = scmp.ne.s32.totalorder %s119, %s133
    %p135 = scmp.eq.s32.totalorder %s18, 0
    %p136 = por %p134, %p135
    %s137 = ssub.s32 %s19, %s31
    %s138 = ssub.s32 %s20, %s27
    %s139 = sor.u32 %s137, %s138
    %p140 = scmp.eq.s32.totalorder %s139, 0
    %s142 = sadd.s32 %s141, 1
    %s143 = scalar_select %p140, %s141, %s142
    %p146 = pneg %p140
    %p147 = scmp.eq.s32.totalorder %s12, 1
    %p148 = por %p146, %p147
    %p149 = scmp.ne.s32.totalorder %s141, %s144
    %p150 = scmp.eq.s32.totalorder %s12, 0
    %p151 = por %p149, %p150
    %p152 = scmp.ne.s32.totalorder %s141, %s144
    %p153 = scmp.eq.s32.totalorder %s17, 1
    %p154 = por %p152, %p153
    %p155 = scmp.ne.s32.totalorder %s144, %s145
    %p156 = scmp.eq.s32.totalorder %s17, 0
    %p157 = por %p155, %p156
    %p158 = scmp.ne.s32.totalorder %s144, %s145
    %p159 = scmp.eq.s32.totalorder %s18, 1
    %p160 = por %p158, %p159
    %p162 = scmp.ne.s32.totalorder %s145, %s161
    %p163 = scmp.eq.s32.totalorder %s18, 0
    %p164 = por %p162, %p163
    %s165 = ssub.s32 %s19, %s31
    %s166 = ssub.s32 %s20, %s27
    %s167 = sor.u32 %s165, %s166
    %p168 = scmp.eq.s32.totalorder %s167, 0
    %s170 = sadd.s32 %s169, 1
    %s171 = scalar_select %p168, %s169, %s170
    %p174 = pneg %p168
    %p175 = scmp.eq.s32.totalorder %s12, 1
    %p176 = por %p174, %p175
    %p177 = scmp.ne.s32.totalorder %s169, %s172
    %p178 = scmp.eq.s32.totalorder %s12, 0
    %p179 = por %p177, %p178
    %p180 = scmp.ne.s32.totalorder %s169, %s172
    %p181 = scmp.eq.s32.totalorder %s17, 1
    %p182 = por %p180, %p181
    %p183 = scmp.ne.s32.totalorder %s172, %s173
    %p184 = scmp.eq.s32.totalorder %s17, 0
    %p185 = por %p183, %p184
    %p186 = scmp.ne.s32.totalorder %s172, %s173
    %p187 = scmp.eq.s32.totalorder %s18, 1
    %p188 = por %p186, %p187
    %p190 = scmp.ne.s32.totalorder %s173, %s189
    %p191 = scmp.eq.s32.totalorder %s18, 0
    %p192 = por %p190, %p191
    %p193 = scmp.le.s32.totalorder 1, %s12
    %p194 = scmp.lt.s32.totalorder %s12, 3
    %p195 = pnand %p193, %p194
    %p196 = pneg %p195
    // Predicated region
    $region9: #{three_scale_block_forward.8} parent=5 // pred_check
      _
    $region10: #{three_scale_block_forward.8} parent=5 // pred_check_branch
      %198 = sbr.rel (%p195) target = $region12
    $region11: #{three_scale_block_forward.8} parent=5 // pred_region
      %s199 = ssub.s32 %s12, 1
      // Predicated region
      $region13: #{three_scale_block_forward.8} parent=11 // pred_check
        %p200 = pneg %p129
      $region14: #{three_scale_block_forward.8} parent=11 // pred_check_branch
        %202 = sbr.rel (%p200) target = $region16
      $region15: #{three_scale_block_forward.8} parent=11 // pred_region
        _
      $region16: #{three_scale_block_forward.8} parent=11 // pred_fallthru
        _
    $region12: #{three_scale_block_forward.8} parent=5 // pred_fallthru
      _
    %p203 = scmp.lt.s32.totalorder %s12, 2
    // Predicated region
    $region17: #{three_scale_block_forward.8} parent=5 // pred_check
      %p204 = pneg %p203
    $region18: #{three_scale_block_forward.8} parent=5 // pred_check_branch
      %206 = sbr.rel (%p204) target = $region20
    $region19: #{three_scale_block_forward.8} parent=5 // pred_region
      // Predicated region
      $region21: #{three_scale_block_forward.8} parent=19 // pred_check
        %p207 = pneg %p46
      $region22: #{three_scale_block_forward.8} parent=19 // pred_check_branch
        %209 = sbr.rel (%p207) target = $region24
      $region23: #{three_scale_block_forward.8} parent=19 // pred_region
        %p210 = scmp.lt.s32.totalorder %s19, 1
        %s211 = scalar_select %p210, %s19, 1
        %p212 = scmp.lt.s32.totalorder %s20, 0
        %s213 = scalar_select %p212, %s20, 0
        %s214 = smul.addr %s211, 4
        %s215 = sadd.s32 %s213, %s214
        %s216 = smul.addr %s215, 4
        %s217 = scalar_lea.vmem %s0, %s216
      $region24: #{three_scale_block_forward.8} parent=19 // pred_fallthru
        _
      // Predicated region
      $region25: #{three_scale_block_forward.8} parent=19 // pred_check
        %p218 = pneg %p74
      $region26: #{three_scale_block_forward.8} parent=19 // pred_check_branch
        %220 = sbr.rel (%p218) target = $region28
      $region27: #{three_scale_block_forward.8} parent=19 // pred_region
        %p221 = scmp.lt.s32.totalorder %s19, 1
        %s222 = scalar_select %p221, %s19, 1
        %p223 = scmp.lt.s32.totalorder %s20, 0
        %s224 = scalar_select %p223, %s20, 0
        %s225 = sadd.s32 %s224, %s222
        %s226 = scalar_lea.vmem %s1, %s225
      $region28: #{three_scale_block_forward.8} parent=19 // pred_fallthru
        _
      // Predicated region
      $region29: #{three_scale_block_forward.8} parent=19 // pred_check
        %p227 = pneg %p102
      $region30: #{three_scale_block_forward.8} parent=19 // pred_check_branch
        %229 = sbr.rel (%p227) target = $region32
      $region31: #{three_scale_block_forward.8} parent=19 // pred_region
        %p230 = scmp.lt.s32.totalorder %s19, 1
        %s231 = scalar_select %p230, %s19, 1
        %p232 = scmp.lt.s32.totalorder %s20, 0
        %s233 = scalar_select %p232, %s20, 0
        %s234 = sadd.s32 %s233, %s231
        %s235 = scalar_lea.vmem %s2, %s234
      $region32: #{three_scale_block_forward.8} parent=19 // pred_fallthru
        _
    $region20: #{three_scale_block_forward.8} parent=5 // pred_fallthru
      _
    %p236 = scmp.le.s32.totalorder 1, %s12
    %p237 = scmp.lt.s32.totalorder %s12, 3
    %p238 = pnand %p236, %p237
    %p239 = pneg %p238
    // Predicated region
    $region33: #{three_scale_block_forward.8} parent=5 // pred_check
      _
    $region34: #{three_scale_block_forward.8} parent=5 // pred_check_branch
      %241 = sbr.rel (%p238) target = $region36
    $region35: #{three_scale_block_forward.8} parent=5 // pred_region
      %s242 = ssub.s32 %s12, 1
      %p243 = scmp.lt.s32.totalorder %s21, 1
      %s244 = scalar_select %p243, %s21, 1
      %p245 = scmp.lt.s32.totalorder %s22, 0
      %s246 = scalar_select %p245, %s22, 0
      %s247 = smul.addr %s244, 4
      %s248 = sadd.s32 %s246, %s247
      %s249 = smul.addr %s248, 4
      %s250 = scalar_lea.vmem %s0, %s249
      %p251 = pneg %p52
      %p252 = pneg %p49
      %p253 = scmp.lt.s32.totalorder %s21, 1
      %s254 = scalar_select %p253, %s21, 1
      %p255 = scmp.lt.s32.totalorder %s22, 0
      %s256 = scalar_select %p255, %s22, 0
      %s257 = sadd.s32 %s256, %s254
      %s258 = scalar_lea.vmem %s1, %s257
      %p259 = pneg %p80
      %p260 = pneg %p77
      %p261 = scmp.lt.s32.totalorder %s21, 1
      %s262 = scalar_select %p261, %s21, 1
      %p263 = scmp.lt.s32.totalorder %s22, 0
      %s264 = scalar_select %p263, %s22, 0
      %s265 = sadd.s32 %s264, %s262
      %s266 = scalar_lea.vmem %s2, %s265
      %p267 = pneg %p108
      %p268 = pneg %p105
      %p269 = pneg %p129
      %p270 = pneg %p126
      %p271 = pneg %p157
      %p272 = pneg %p154
      %p273 = scmp.lt.s32.totalorder %s21, 1
      %s274 = scalar_select %p273, %s21, 1
      %p275 = scmp.lt.s32.totalorder %s22, 0
      %s276 = scalar_select %p275, %s22, 0
      %s277 = smul.addr %s274, 2
      %s278 = sadd.s32 %s276, %s277
      %s279 = smul.addr %s278, 8
      %s280 = scalar_lea.vmem %s4, %s279
      %p281 = pneg %p185
      %p282 = pneg %p182
      %p283 = scmp.lt.s32.totalorder %s21, 1
      %s284 = scalar_select %p283, %s21, 1
      %p285 = scmp.lt.s32.totalorder %s22, 0
      %s286 = scalar_select %p285, %s22, 0
      %s287 = sadd.s32 %s286, %s284
      %s288 = scalar_lea.vmem %s5, %s287
      %p289 = scmp.lt.s32.totalorder %s21, 1
      %s290 = scalar_select %p289, %s21, 1
      %p291 = scmp.lt.s32.totalorder %s22, 0
      %s292 = scalar_select %p291, %s22, 0
      %s293 = smul.addr %s290, 4
      %s294 = sadd.s32 %s292, %s293
      %s295 = smul.addr %s294, 4
      %s296 = scalar_lea.vmem %s0, %s295
      %p297 = scmp.lt.s32.totalorder %s21, 1
      %s298 = scalar_select %p297, %s21, 1
      %p299 = scmp.lt.s32.totalorder %s22, 0
      %s300 = scalar_select %p299, %s22, 0
      %s301 = sadd.s32 %s300, %s298
      %s302 = scalar_lea.vmem %s1, %s301
      %p303 = scmp.lt.s32.totalorder %s21, 1
      %s304 = scalar_select %p303, %s21, 1
      %p305 = scmp.lt.s32.totalorder %s22, 0
      %s306 = scalar_select %p305, %s22, 0
      %s307 = sadd.s32 %s306, %s304
      %s308 = scalar_lea.vmem %s2, %s307
      %p309 = scmp.lt.s32.totalorder %s21, 1
      %s310 = scalar_select %p309, %s21, 1
      %p311 = scmp.lt.s32.totalorder %s22, 0
      %s312 = scalar_select %p311, %s22, 0
      %s313 = smul.addr %s310, 2
      %s314 = sadd.s32 %s312, %s313
      %s315 = smul.addr %s314, 8
      %s316 = scalar_lea.vmem %s4, %s315
      %p317 = scmp.lt.s32.totalorder %s21, 1
      %s318 = scalar_select %p317, %s21, 1
      %p319 = scmp.lt.s32.totalorder %s22, 0
      %s320 = scalar_select %p319, %s22, 0
      %s321 = sadd.s32 %s320, %s318
      %s322 = scalar_lea.vmem %s5, %s321
      %v324 = vld [vmem:[%s3] sm:$0xf]
      %v325 = vld [vmem:[%s3 + $0x4] sm:$0xf]
      %v326 = vld [vmem:[%s3 + $0x8] sm:$0xf]
      %v327 = vld [vmem:[%s3 + $0xc] sm:$0xf]
      %v328 = vld [vmem:[%s3 + $0x10] sm:$0xf]
      %v329 = vld [vmem:[%s3 + $0x14] sm:$0xf]
      %v330 = vld [vmem:[%s296] sm:$0xf]
      %v331 = vld [vmem:[%s296 + $0x4] sm:$0xf]
      %v332 = vld [vmem:[%s296 + $0x8] sm:$0xf]
      %v333 = vld [vmem:[%s296 + $0xc] sm:$0xf]
      %v340 = vunpack.c.l.b16 %v324
      %v341 = vunpack.c.l.b16 %v325
      %v342 = vunpack.c.l.b16 %v326
      %v343 = vunpack.c.l.b16 %v327
      %v344 = vunpack.c.l.b16 %v328
      %v345 = vunpack.c.l.b16 %v329
      %v346 = vpack.c.b16 %v341, %v340
      %v347 = vpack.c.b16 %v343, %v342
      %v348 = vpack.c.b16 %v345, %v344
      %v353 = vunpack.c.l.b16 %v330
      %v354 = vunpack.c.l.b16 %v331
      %v355 = vunpack.c.l.b16 %v332
      %v356 = vunpack.c.l.b16 %v333
      %v357 = vpack.c.b16 %v354, %v353
      %v358 = vpack.c.b16 %v356, %v355
      %vm361 = vcmask 261120
      %v363 = vsel %vm361, %v346, 0
      %v366 = vsel %vm361, %v347, 0
      %v369 = vsel %vm361, %v348, 0
      %371 = vmatprep.subr.bf16.mxu0 0
      %372 = vmatpush1.bf16.msra.mxu0 %v357
      %373 = vmatprep.subr.bf16.mxu0 0
      %374 = vmatpush1.bf16.msra.mxu0 %v358
      %375 = vmatprep.subr.bf16.mxu0 0
      %376 = vmatpush1.bf16.msra.mxu0 0
      %377 = vmatprep.subr.bf16.mxu0 0
      %378 = vmatpush1.bf16.msra.mxu0 0
      %379 = vmatprep.subr.bf16.mxu0 0
      %380 = vmatpush1.bf16.msra.mxu0 0
      %381 = vmatprep.subr.bf16.mxu0 0
      %382 = vmatpush1.bf16.msra.mxu0 0
      %383 = vmatprep.subr.bf16.mxu0 0
      %384 = vmatpush1.bf16.msra.mxu0 0
      %385 = vmatprep.subr.bf16.mxu0 0
      %386 = vmatpush1.bf16.msra.mxu0 0
      %387 = vmatprep.subr.bf16.mxu0 0
      %388 = vmatpush1.bf16.msra.mxu0 0
      %389 = vmatprep.subr.bf16.mxu0 0
      %390 = vmatpush1.bf16.msra.mxu0 0
      %391 = vmatprep.subr.bf16.mxu0 0
      %392 = vmatpush1.bf16.msra.mxu0 0
      %393 = vmatprep.subr.bf16.mxu0 0
      %394 = vmatpush1.bf16.msra.mxu0 0
      %395 = vmatprep.subr.bf16.mxu0 0
      %396 = vmatpush1.bf16.msra.mxu0 0
      %397 = vmatprep.subr.bf16.mxu0 0
      %398 = vmatpush1.bf16.msra.mxu0 0
      %399 = vmatprep.subr.bf16.mxu0 0
      %400 = vmatpush1.bf16.msra.mxu0 0
      %401 = vmatprep.subr.bf16.mxu0 0
      %402 = vmatpush1.bf16.msra.mxu0 0
      %403 = vmatprep.mubr.bf16.mxu0 0
      %404 = vmatmul.mubr.bf16.gmra.mrb[0].mxu0 %v363
      %v405 = vpop.f32.mrb[0].mxu0
      %v406 = vadd.f32 0.0, %v405
      %v407 = vpop.f32.mrb[0].mxu0
      %v408 = vpop.f32.mrb[0].mxu0
      %v409 = vadd.f32 0.0, %v408
      %v410 = vpop.f32.mrb[0].mxu0
      %411 = vmatprep.mubr.bf16.mxu0 0
      %412 = vmatmul.mubr.bf16.gmra.mrb[0].mxu0 %v366
      %v413 = vpop.f32.mrb[0].mxu0
      %v414 = vadd.f32 0.0, %v413
      %v415 = vpop.f32.mrb[0].mxu0
      %v416 = vpop.f32.mrb[0].mxu0
      %v417 = vadd.f32 0.0, %v416
      %v418 = vpop.f32.mrb[0].mxu0
      %419 = vmatprep.mubr.bf16.mxu0 0
      %420 = vmatmul.mubr.bf16.gmra.mrb[0].mxu0 %v369
      %v421 = vpop.f32.mrb[0].mxu0
      %v422 = vadd.f32 0.0, %v421
      %v423 = vpop.f32.mrb[0].mxu0
      %v424 = vpop.f32.mrb[0].mxu0
      %v425 = vadd.f32 0.0, %v424
      %v426 = vpop.f32.mrb[0].mxu0
      %427 = vdwg.mxu0
      %v428 = vld [vmem:[%s302] sm:$0x1]
      %v429 = vld [vmem:[%s308] sm:$0x1]
      %vm430 = vcmp.gt.f32.partialorder %v428, 0.0
      %v431 = vsel %vm430, 1, 0
      %v432 = vcvt.s32.f32 %v431
      %vm433 = vcmp.gt.f32.partialorder %v429, 0.0
      %v434 = vsel %vm433, 1, 0
      %v435 = vcvt.s32.f32 %v434
      %vm436 = vcmp.eq.f32.partialorder %v428, 0.0
      %v437 = vsel %vm436, 1, 0
      %v438 = vcvt.s32.f32 %v437
      %vm439 = vcmp.eq.f32.partialorder %v429, 0.0
      %v440 = vsel %vm439, 1, 0
      %v441 = vcvt.s32.f32 %v440
      %v442 = vmul.f32 %v432, %v441
      %v444 = vlaneseq
      %v445 = vshrl.u32 %v444, 7
      %v446 = vsub.s32 0, %v445
      %v447 = vrot.slane %v442, %v446
      %v449 = vmul.f32 %v447, %v406
      %v450 = vmul.f32 %v447, %v409
      %v451 = vmul.f32 %v438, %v435
      %v453 = vlaneseq
      %v454 = vshrl.u32 %v453, 7
      %v455 = vsub.s32 0, %v454
      %v456 = vrot.slane %v451, %v455
      %v458 = vmul.f32 %v456, %v414
      %v459 = vmul.f32 %v456, %v417
      %v460 = vadd.f32 %v449, %v458
      %v461 = vadd.f32 %v450, %v459
      %v462 = vmul.f32 %v432, %v435
      %v464 = vlaneseq
      %v465 = vshrl.u32 %v464, 7
      %v466 = vsub.s32 0, %v465
      %v467 = vrot.slane %v462, %v466
      %v469 = vmul.f32 %v467, %v422
      %v470 = vmul.f32 %v467, %v425
      %v471 = vadd.f32 %v460, %v469
      %v472 = vadd.f32 %v461, %v470
      %vm473 = vcmask 130048
      %474 = vst.msk [vmem:[%s316] sm:$0xff] %vm473, %v471
      %475 = vst.msk [vmem:[%s316 + $0x8] sm:$0xff] %vm473, %v472
      %v476 = vadd.f32 %v428, %v429
      %vm477 = vcmp.gt.f32.partialorder %v476, 0.0
      %v478 = vsel %vm477, 1, 0
      %v479 = vcvt.s32.f32 %v478
      %vm480 = vcmask 122880
      %481 = vst.msk [vmem:[%s322] sm:$0x1] %vm480, %v479
      %p482 = scmp.lt.s32.totalorder %s21, 1
      %s483 = scalar_select %p482, %s21, 1
      %p484 = scmp.lt.s32.totalorder %s22, 0
      %s485 = scalar_select %p484, %s22, 0
      %s486 = smul.addr %s483, 2
      %s487 = sadd.s32 %s485, %s486
      %s488 = smul.addr %s487, 8
      %s489 = scalar_lea.vmem %s4, %s488
      %p490 = scmp.lt.s32.totalorder %s21, 1
      %s491 = scalar_select %p490, %s21, 1
      %p492 = scmp.lt.s32.totalorder %s22, 0
      %s493 = scalar_select %p492, %s22, 0
      %s494 = sadd.s32 %s493, %s491
      %s495 = scalar_lea.vmem %s5, %s494
      // Predicated region
      $region37: #{three_scale_block_forward.8} parent=35 // pred_check
        %p496 = pneg %p154
      $region38: #{three_scale_block_forward.8} parent=35 // pred_check_branch
        %498 = sbr.rel (%p496) target = $region40
      $region39: #{three_scale_block_forward.8} parent=35 // pred_region
        _
      $region40: #{three_scale_block_forward.8} parent=35 // pred_fallthru
        _
      // Predicated region
      $region41: #{three_scale_block_forward.8} parent=35 // pred_check
        %p499 = pneg %p182
      $region42: #{three_scale_block_forward.8} parent=35 // pred_check_branch
        %501 = sbr.rel (%p499) target = $region44
      $region43: #{three_scale_block_forward.8} parent=35 // pred_region
        _
      $region44: #{three_scale_block_forward.8} parent=35 // pred_fallthru
        _
    $region36: #{three_scale_block_forward.8} parent=5 // pred_fallthru
      _
    %p502 = scmp.le.s32.totalorder 2, %s12
    // Predicated region
    $region45: #{three_scale_block_forward.8} parent=5 // pred_check
      %p503 = pneg %p502
    $region46: #{three_scale_block_forward.8} parent=5 // pred_check_branch
      %505 = sbr.rel (%p503) target = $region48
    $region47: #{three_scale_block_forward.8} parent=5 // pred_region
      %s506 = ssub.s32 %s12, 2
      // Predicated region
      $region49: #{three_scale_block_forward.8} parent=47 // pred_check
        %p507 = pneg %p160
      $region50: #{three_scale_block_forward.8} parent=47 // pred_check_branch
        %509 = sbr.rel (%p507) target = $region52
      $region51: #{three_scale_block_forward.8} parent=47 // pred_region
        %p510 = scmp.lt.s32.totalorder %s23, 1
        %s511 = scalar_select %p510, %s23, 1
        %p512 = scmp.lt.s32.totalorder %s24, 0
        %s513 = scalar_select %p512, %s24, 0
        %s514 = smul.addr %s511, 2
        %s515 = sadd.s32 %s513, %s514
        %s516 = smul.addr %s515, 8
        %s517 = scalar_lea.vmem %s4, %s516
      $region52: #{three_scale_block_forward.8} parent=47 // pred_fallthru
        _
      // Predicated region
      $region53: #{three_scale_block_forward.8} parent=47 // pred_check
        %p518 = pneg %p188
      $region54: #{three_scale_block_forward.8} parent=47 // pred_check_branch
        %520 = sbr.rel (%p518) target = $region56
      $region55: #{three_scale_block_forward.8} parent=47 // pred_region
        %p521 = scmp.lt.s32.totalorder %s23, 1
        %s522 = scalar_select %p521, %s23, 1
        %p523 = scmp.lt.s32.totalorder %s24, 0
        %s524 = scalar_select %p523, %s24, 0
        %s525 = sadd.s32 %s524, %s522
        %s526 = scalar_lea.vmem %s5, %s525
      $region56: #{three_scale_block_forward.8} parent=47 // pred_fallthru
        _
    $region48: #{three_scale_block_forward.8} parent=5 // pred_fallthru
      _
  $region6: #{three_scale_block_forward.8} parent=0 // loop_footer
    %s16 = sadd.s32 1, %s12
  $region7: #{three_scale_block_forward.8} parent=0 // loop_footer_branch
    %11 = sbr.rel target = $region3
  $region8: #{three_scale_block_forward.8} parent=0 // loop_exit
    _

// kernel: three_scale_block_forward.10
$region0: #{three_scale_block_forward.10}
  #allocation0 [shape = 'u32[]', space=smem, size = 0x4, offset = 0x4, fixed_abs, tag = 'smem constant byte address 0x4 - core index']
  #allocation1 [shape = 'u32[144,128]{1,0:T(1,128)}', space=vmem, size = 0x12000, scoped, tag = 'internal scratch']
  %s0 = inlined_call_operand.vmem [shape: bf16[2,400,16], index: 0, kind: input, shape index: {}]
  %s1 = inlined_call_operand.vmem [shape: f32[2,25,16], index: 1, kind: input, shape index: {}]
  %s2 = inlined_call_operand.vmem [shape: bf16[16,400], index: 2, kind: input, shape index: {}]
  %s3 = inlined_call_operand.vmem [shape: f32[16,1], index: 3, kind: input, shape index: {}]
  %s4 = inlined_call_operand.vmem [shape: bf16[16,16], index: 4, kind: input, shape index: {}]
  %s5 = inlined_call_operand.vmem [shape: f32[16,1], index: 5, kind: input, shape index: {}]
  %s6 = inlined_call_operand.vmem [shape: f32[2,16,16], index: 6, kind: output, shape index: {0}]
  %s7 = inlined_call_operand.vmem [shape: f32[2,1,16], index: 7, kind: output, shape index: {1}]
  %s8 = inlined_call_operand.vmem [shape: f32[2,16,16], index: 8, kind: output, shape index: {2}]
  %9 = xla_tuple %s6, %s7, %s8
  %s10 = sld [smem:[#allocation0]]
  $region73: #{three_scale_block_forward.10} parent=0
    _
  %s12 = ssub.s32 1, %s10
  %s13 = scalar_select 0, %s12, %s10
  loop: start=0, step=1, limit=4
  $region2: #{three_scale_block_forward.10} parent=0 // loop_pre_header
    _
  $region3: #{three_scale_block_forward.10} parent=0 // loop_header
    %s15 = sphi 0, %s19
    %p16 = scmp.ge.s32.totalorder %s15, 4
    %s22 = sphi 0, %s34
    %s23 = sphi 0, %s30
    %s24 = sphi 0, %s22
    %s25 = sphi 0, %s23
    %s26 = sphi 0, %s24
    %s27 = sphi 0, %s25
    %s39 = sphi 0, %s41
    %s42 = sphi 0, %s39
    %s43 = sphi 0, %s42
    %s59 = sphi 0, %s43
    %s67 = sphi 0, %s69
    %s70 = sphi 0, %s67
    %s71 = sphi 0, %s70
    %s87 = sphi 0, %s71
    %s91 = sphi 0, %s91
    %s93 = sphi 0, %s91
    %s94 = sphi 0, %s93
    %s108 = sphi 0, %s94
    %s112 = sphi 0, %s112
    %s114 = sphi 0, %s112
    %s115 = sphi 0, %s114
    %s129 = sphi 0, %s115
    %s133 = sphi 0, %s133
    %s135 = sphi 0, %s133
    %s136 = sphi 0, %s135
    %s150 = sphi 0, %s136
    %s154 = sphi 0, %s154
    %s156 = sphi 0, %s154
    %s157 = sphi 0, %s156
    %s171 = sphi 0, %s157
    %s179 = sphi 0, %s181
    %s182 = sphi 0, %s179
    %s183 = sphi 0, %s182
    %s199 = sphi 0, %s183
    %s207 = sphi 0, %s209
    %s210 = sphi 0, %s207
    %s211 = sphi 0, %s210
    %s227 = sphi 0, %s211
    %s235 = sphi 0, %s237
    %s238 = sphi 0, %s235
    %s239 = sphi 0, %s238
    %s255 = sphi 0, %s239
  $region4: #{three_scale_block_forward.10} parent=0 // loop_header_branch
    %18 = sbr.rel (%p16) target = $region8
  $region5: #{three_scale_block_forward.10} parent=0 // loop_body
    %s20 = ssub.s32 %s15, 1
    %s21 = ssub.s32 %s15, 2
    %s28 = sadd.s32 1, %s23
    %p29 = scmp.ge.s32.totalorder %s28, 1
    %s30 = scalar_select %p29, 0, %s28
    %s31 = sadd.s32 1, %s22
    %s32 = scalar_select %p29, %s31, %s22
    %p33 = scmp.ge.s32.totalorder %s32, 2
    %s34 = scalar_select %p33, 0, %s32
    %s35 = ssub.s32 %s22, %s34
    %s36 = ssub.s32 %s23, %s30
    %s37 = sor.u32 %s35, %s36
    %p38 = scmp.eq.s32.totalorder %s37, 0
    %s40 = sadd.s32 %s39, 1
    %s41 = scalar_select %p38, %s39, %s40
    %p44 = pneg %p38
    %p45 = scmp.eq.s32.totalorder %s15, 1
    %p46 = por %p44, %p45
    %p47 = scmp.ne.s32.totalorder %s39, %s42
    %p48 = scmp.eq.s32.totalorder %s15, 0
    %p49 = por %p47, %p48
    %p50 = scmp.ne.s32.totalorder %s39, %s42
    %p51 = scmp.eq.s32.totalorder %s20, 1
    %p52 = por %p50, %p51
    %p53 = scmp.ne.s32.totalorder %s42, %s43
    %p54 = scmp.eq.s32.totalorder %s20, 0
    %p55 = por %p53, %p54
    %p56 = scmp.ne.s32.totalorder %s42, %s43
    %p57 = scmp.eq.s32.totalorder %s21, 1
    %p58 = por %p56, %p57
    %p60 = scmp.ne.s32.totalorder %s43, %s59
    %p61 = scmp.eq.s32.totalorder %s21, 0
    %p62 = por %p60, %p61
    %s63 = ssub.s32 %s22, %s34
    %s64 = ssub.s32 %s23, %s30
    %s65 = sor.u32 %s63, %s64
    %p66 = scmp.eq.s32.totalorder %s65, 0
    %s68 = sadd.s32 %s67, 1
    %s69 = scalar_select %p66, %s67, %s68
    %p72 = pneg %p66
    %p73 = scmp.eq.s32.totalorder %s15, 1
    %p74 = por %p72, %p73
    %p75 = scmp.ne.s32.totalorder %s67, %s70
    %p76 = scmp.eq.s32.totalorder %s15, 0
    %p77 = por %p75, %p76
    %p78 = scmp.ne.s32.totalorder %s67, %s70
    %p79 = scmp.eq.s32.totalorder %s20, 1
    %p80 = por %p78, %p79
    %p81 = scmp.ne.s32.totalorder %s70, %s71
    %p82 = scmp.eq.s32.totalorder %s20, 0
    %p83 = por %p81, %p82
    %p84 = scmp.ne.s32.totalorder %s70, %s71
    %p85 = scmp.eq.s32.totalorder %s21, 1
    %p86 = por %p84, %p85
    %p88 = scmp.ne.s32.totalorder %s71, %s87
    %p89 = scmp.eq.s32.totalorder %s21, 0
    %p90 = por %p88, %p89
    %s92 = sadd.s32 %s91, 1
    %p95 = scmp.eq.s32.totalorder %s15, 1
    %p96 = scmp.ne.s32.totalorder %s91, %s93
    %p97 = scmp.eq.s32.totalorder %s15, 0
    %p98 = por %p96, %p97
    %p99 = scmp.ne.s32.totalorder %s91, %s93
    %p100 = scmp.eq.s32.totalorder %s20, 1
    %p101 = por %p99, %p100
    %p102 = scmp.ne.s32.totalorder %s93, %s94
    %p103 = scmp.eq.s32.totalorder %s20, 0
    %p104 = por %p102, %p103
    %p105 = scmp.ne.s32.totalorder %s93, %s94
    %p106 = scmp.eq.s32.totalorder %s21, 1
    %p107 = por %p105, %p106
    %p109 = scmp.ne.s32.totalorder %s94, %s108
    %p110 = scmp.eq.s32.totalorder %s21, 0
    %p111 = por %p109, %p110
    %s113 = sadd.s32 %s112, 1
    %p116 = scmp.eq.s32.totalorder %s15, 1
    %p117 = scmp.ne.s32.totalorder %s112, %s114
    %p118 = scmp.eq.s32.totalorder %s15, 0
    %p119 = por %p117, %p118
    %p120 = scmp.ne.s32.totalorder %s112, %s114
    %p121 = scmp.eq.s32.totalorder %s20, 1
    %p122 = por %p120, %p121
    %p123 = scmp.ne.s32.totalorder %s114, %s115
    %p124 = scmp.eq.s32.totalorder %s20, 0
    %p125 = por %p123, %p124
    %p126 = scmp.ne.s32.totalorder %s114, %s115
    %p127 = scmp.eq.s32.totalorder %s21, 1
    %p128 = por %p126, %p127
    %p130 = scmp.ne.s32.totalorder %s115, %s129
    %p131 = scmp.eq.s32.totalorder %s21, 0
    %p132 = por %p130, %p131
    %s134 = sadd.s32 %s133, 1
    %p137 = scmp.eq.s32.totalorder %s15, 1
    %p138 = scmp.ne.s32.totalorder %s133, %s135
    %p139 = scmp.eq.s32.totalorder %s15, 0
    %p140 = por %p138, %p139
    %p141 = scmp.ne.s32.totalorder %s133, %s135
    %p142 = scmp.eq.s32.totalorder %s20, 1
    %p143 = por %p141, %p142
    %p144 = scmp.ne.s32.totalorder %s135, %s136
    %p145 = scmp.eq.s32.totalorder %s20, 0
    %p146 = por %p144, %p145
    %p147 = scmp.ne.s32.totalorder %s135, %s136
    %p148 = scmp.eq.s32.totalorder %s21, 1
    %p149 = por %p147, %p148
    %p151 = scmp.ne.s32.totalorder %s136, %s150
    %p152 = scmp.eq.s32.totalorder %s21, 0
    %p153 = por %p151, %p152
    %s155 = sadd.s32 %s154, 1
    %p158 = scmp.eq.s32.totalorder %s15, 1
    %p159 = scmp.ne.s32.totalorder %s154, %s156
    %p160 = scmp.eq.s32.totalorder %s15, 0
    %p161 = por %p159, %p160
    %p162 = scmp.ne.s32.totalorder %s154, %s156
    %p163 = scmp.eq.s32.totalorder %s20, 1
    %p164 = por %p162, %p163
    %p165 = scmp.ne.s32.totalorder %s156, %s157
    %p166 = scmp.eq.s32.totalorder %s20, 0
    %p167 = por %p165, %p166
    %p168 = scmp.ne.s32.totalorder %s156, %s157
    %p169 = scmp.eq.s32.totalorder %s21, 1
    %p170 = por %p168, %p169
    %p172 = scmp.ne.s32.totalorder %s157, %s171
    %p173 = scmp.eq.s32.totalorder %s21, 0
    %p174 = por %p172, %p173
    %s175 = ssub.s32 %s22, %s34
    %s176 = ssub.s32 %s23, %s30
    %s177 = sor.u32 %s175, %s176
    %p178 = scmp.eq.s32.totalorder %s177, 0
    %s180 = sadd.s32 %s179, 1
    %s181 = scalar_select %p178, %s179, %s180
    %p184 = pneg %p178
    %p185 = scmp.eq.s32.totalorder %s15, 1
    %p186 = por %p184, %p185
    %p187 = scmp.ne.s32.totalorder %s179, %s182
    %p188 = scmp.eq.s32.totalorder %s15, 0
    %p189 = por %p187, %p188
    %p190 = scmp.ne.s32.totalorder %s179, %s182
    %p191 = scmp.eq.s32.totalorder %s20, 1
    %p192 = por %p190, %p191
    %p193 = scmp.ne.s32.totalorder %s182, %s183
    %p194 = scmp.eq.s32.totalorder %s20, 0
    %p195 = por %p193, %p194
    %p196 = scmp.ne.s32.totalorder %s182, %s183
    %p197 = scmp.eq.s32.totalorder %s21, 1
    %p198 = por %p196, %p197
    %p200 = scmp.ne.s32.totalorder %s183, %s199
    %p201 = scmp.eq.s32.totalorder %s21, 0
    %p202 = por %p200, %p201
    %s203 = ssub.s32 %s22, %s34
    %s204 = ssub.s32 %s23, %s30
    %s205 = sor.u32 %s203, %s204
    %p206 = scmp.eq.s32.totalorder %s205, 0
    %s208 = sadd.s32 %s207, 1
    %s209 = scalar_select %p206, %s207, %s208
    %p212 = pneg %p206
    %p213 = scmp.eq.s32.totalorder %s15, 1
    %p214 = por %p212, %p213
    %p215 = scmp.ne.s32.totalorder %s207, %s210
    %p216 = scmp.eq.s32.totalorder %s15, 0
    %p217 = por %p215, %p216
    %p218 = scmp.ne.s32.totalorder %s207, %s210
    %p219 = scmp.eq.s32.totalorder %s20, 1
    %p220 = por %p218, %p219
    %p221 = scmp.ne.s32.totalorder %s210, %s211
    %p222 = scmp.eq.s32.totalorder %s20, 0
    %p223 = por %p221, %p222
    %p224 = scmp.ne.s32.totalorder %s210, %s211
    %p225 = scmp.eq.s32.totalorder %s21, 1
    %p226 = por %p224, %p225
    %p228 = scmp.ne.s32.totalorder %s211, %s227
    %p229 = scmp.eq.s32.totalorder %s21, 0
    %p230 = por %p228, %p229
    %s231 = ssub.s32 %s22, %s34
    %s232 = ssub.s32 %s23, %s30
    %s233 = sor.u32 %s231, %s232
    %p234 = scmp.eq.s32.totalorder %s233, 0
    %s236 = sadd.s32 %s235, 1
    %s237 = scalar_select %p234, %s235, %s236
    %p240 = pneg %p234
    %p241 = scmp.eq.s32.totalorder %s15, 1
    %p242 = por %p240, %p241
    %p243 = scmp.ne.s32.totalorder %s235, %s238
    %p244 = scmp.eq.s32.totalorder %s15, 0
    %p245 = por %p243, %p244
    %p246 = scmp.ne.s32.totalorder %s235, %s238
    %p247 = scmp.eq.s32.totalorder %s20, 1
    %p248 = por %p246, %p247
    %p249 = scmp.ne.s32.totalorder %s238, %s239
    %p250 = scmp.eq.s32.totalorder %s20, 0
    %p251 = por %p249, %p250
    %p252 = scmp.ne.s32.totalorder %s238, %s239
    %p253 = scmp.eq.s32.totalorder %s21, 1
    %p254 = por %p252, %p253
    %p256 = scmp.ne.s32.totalorder %s239, %s255
    %p257 = scmp.eq.s32.totalorder %s21, 0
    %p258 = por %p256, %p257
    %p259 = scmp.le.s32.totalorder 1, %s15
    %p260 = scmp.lt.s32.totalorder %s15, 3
    %p261 = pnand %p259, %p260
    %p262 = pneg %p261
    // Predicated region
    $region9: #{three_scale_block_forward.10} parent=5 // pred_check
      _
    $region10: #{three_scale_block_forward.10} parent=5 // pred_check_branch
      %264 = sbr.rel (%p261) target = $region12
    $region11: #{three_scale_block_forward.10} parent=5 // pred_region
      %s265 = ssub.s32 %s15, 1
      // Predicated region
      $region13: #{three_scale_block_forward.10} parent=11 // pred_check
        %p266 = pneg %p104
      $region14: #{three_scale_block_forward.10} parent=11 // pred_check_branch
        %268 = sbr.rel (%p266) target = $region16
      $region15: #{three_scale_block_forward.10} parent=11 // pred_region
        _
      $region16: #{three_scale_block_forward.10} parent=11 // pred_fallthru
        _
      // Predicated region
      $region17: #{three_scale_block_forward.10} parent=11 // pred_check
        %p269 = pneg %p125
      $region18: #{three_scale_block_forward.10} parent=11 // pred_check_branch
        %271 = sbr.rel (%p269) target = $region20
      $region19: #{three_scale_block_forward.10} parent=11 // pred_region
        _
      $region20: #{three_scale_block_forward.10} parent=11 // pred_fallthru
        _
      // Predicated region
      $region21: #{three_scale_block_forward.10} parent=11 // pred_check
        %p272 = pneg %p146
      $region22: #{three_scale_block_forward.10} parent=11 // pred_check_branch
        %274 = sbr.rel (%p272) target = $region24
      $region23: #{three_scale_block_forward.10} parent=11 // pred_region
        _
      $region24: #{three_scale_block_forward.10} parent=11 // pred_fallthru
        _
      // Predicated region
      $region25: #{three_scale_block_forward.10} parent=11 // pred_check
        %p275 = pneg %p167
      $region26: #{three_scale_block_forward.10} parent=11 // pred_check_branch
        %277 = sbr.rel (%p275) target = $region28
      $region27: #{three_scale_block_forward.10} parent=11 // pred_region
        _
      $region28: #{three_scale_block_forward.10} parent=11 // pred_fallthru
        _
    $region12: #{three_scale_block_forward.10} parent=5 // pred_fallthru
      _
    %p278 = scmp.lt.s32.totalorder %s15, 2
    // Predicated region
    $region29: #{three_scale_block_forward.10} parent=5 // pred_check
      %p279 = pneg %p278
    $region30: #{three_scale_block_forward.10} parent=5 // pred_check_branch
      %281 = sbr.rel (%p279) target = $region32
    $region31: #{three_scale_block_forward.10} parent=5 // pred_region
      // Predicated region
      $region33: #{three_scale_block_forward.10} parent=31 // pred_check
        %p282 = pneg %p49
      $region34: #{three_scale_block_forward.10} parent=31 // pred_check_branch
        %284 = sbr.rel (%p282) target = $region36
      $region35: #{three_scale_block_forward.10} parent=31 // pred_region
        %p285 = scmp.lt.s32.totalorder %s22, 1
        %s286 = scalar_select %p285, %s22, 1
        %p287 = scmp.lt.s32.totalorder %s23, 0
        %s288 = scalar_select %p287, %s23, 0
        %s289 = smul.addr %s286, 50
        %s290 = sadd.s32 %s288, %s289
        %s291 = smul.addr %s290, 4
        %s292 = scalar_lea.vmem %s0, %s291
      $region36: #{three_scale_block_forward.10} parent=31 // pred_fallthru
        _
      // Predicated region
      $region37: #{three_scale_block_forward.10} parent=31 // pred_check
        %p293 = pneg %p77
      $region38: #{three_scale_block_forward.10} parent=31 // pred_check_branch
        %295 = sbr.rel (%p293) target = $region40
      $region39: #{three_scale_block_forward.10} parent=31 // pred_region
        %p296 = scmp.lt.s32.totalorder %s22, 1
        %s297 = scalar_select %p296, %s22, 1
        %p298 = scmp.lt.s32.totalorder %s23, 0
        %s299 = scalar_select %p298, %s23, 0
        %s300 = smul.addr %s297, 4
        %s301 = sadd.s32 %s299, %s300
        %s302 = smul.addr %s301, 8
        %s303 = scalar_lea.vmem %s1, %s302
      $region40: #{three_scale_block_forward.10} parent=31 // pred_fallthru
        _
    $region32: #{three_scale_block_forward.10} parent=5 // pred_fallthru
      _
    %p304 = scmp.le.s32.totalorder 1, %s15
    %p305 = scmp.lt.s32.totalorder %s15, 3
    %p306 = pnand %p304, %p305
    %p307 = pneg %p306
    // Predicated region
    $region41: #{three_scale_block_forward.10} parent=5 // pred_check
      _
    $region42: #{three_scale_block_forward.10} parent=5 // pred_check_branch
      %309 = sbr.rel (%p306) target = $region44
    $region43: #{three_scale_block_forward.10} parent=5 // pred_region
      %s310 = ssub.s32 %s15, 1
      %p311 = scmp.lt.s32.totalorder %s24, 1
      %s312 = scalar_select %p311, %s24, 1
      %p313 = scmp.lt.s32.totalorder %s25, 0
      %s314 = scalar_select %p313, %s25, 0
      %s315 = smul.addr %s312, 50
      %s316 = sadd.s32 %s314, %s315
      %s317 = smul.addr %s316, 4
      %s318 = scalar_lea.vmem %s0, %s317
      %p319 = pneg %p55
      %p320 = pneg %p52
      %p321 = scmp.lt.s32.totalorder %s24, 1
      %s322 = scalar_select %p321, %s24, 1
      %p323 = scmp.lt.s32.totalorder %s25, 0
      %s324 = scalar_select %p323, %s25, 0
      %s325 = smul.addr %s322, 4
      %s326 = sadd.s32 %s324, %s325
      %s327 = smul.addr %s326, 8
      %s328 = scalar_lea.vmem %s1, %s327
      %p329 = pneg %p83
      %p330 = pneg %p80
      %p331 = pneg %p104
      %p332 = pneg %p101
      %p333 = pneg %p125
      %p334 = pneg %p122
      %p335 = pneg %p146
      %p336 = pneg %p143
      %p337 = pneg %p167
      %p338 = pneg %p164
      %p339 = pneg %p195
      %p340 = pneg %p192
      %p341 = scmp.lt.s32.totalorder %s24, 1
      %s342 = scalar_select %p341, %s24, 1
      %p343 = scmp.lt.s32.totalorder %s25, 0
      %s344 = scalar_select %p343, %s25, 0
      %s345 = smul.addr %s342, 2
      %s346 = sadd.s32 %s344, %s345
      %s347 = smul.addr %s346, 8
      %s348 = scalar_lea.vmem %s6, %s347
      %p349 = pneg %p223
      %p350 = pneg %p220
      %p351 = scmp.lt.s32.totalorder %s24, 1
      %s352 = scalar_select %p351, %s24, 1
      %p353 = scmp.lt.s32.totalorder %s25, 0
      %s354 = scalar_select %p353, %s25, 0
      %s355 = sadd.s32 %s354, %s352
      %s356 = scalar_lea.vmem %s7, %s355
      %p357 = pneg %p251
      %p358 = pneg %p248
      %p359 = scmp.lt.s32.totalorder %s24, 1
      %s360 = scalar_select %p359, %s24, 1
      %p361 = scmp.lt.s32.totalorder %s25, 0
      %s362 = scalar_select %p361, %s25, 0
      %s363 = smul.addr %s360, 2
      %s364 = sadd.s32 %s362, %s363
      %s365 = smul.addr %s364, 8
      %s366 = scalar_lea.vmem %s8, %s365
      %p367 = scmp.lt.s32.totalorder %s24, 1
      %s368 = scalar_select %p367, %s24, 1
      %p369 = scmp.lt.s32.totalorder %s25, 0
      %s370 = scalar_select %p369, %s25, 0
      %s371 = smul.addr %s368, 50
      %s372 = sadd.s32 %s370, %s371
      %s373 = smul.addr %s372, 4
      %s374 = scalar_lea.vmem %s0, %s373
      %p375 = scmp.lt.s32.totalorder %s24, 1
      %s376 = scalar_select %p375, %s24, 1
      %p377 = scmp.lt.s32.totalorder %s25, 0
      %s378 = scalar_select %p377, %s25, 0
      %s379 = smul.addr %s376, 4
      %s380 = sadd.s32 %s378, %s379
      %s381 = smul.addr %s380, 8
      %s382 = scalar_lea.vmem %s1, %s381
      %p383 = scmp.lt.s32.totalorder %s24, 1
      %s384 = scalar_select %p383, %s24, 1
      %p385 = scmp.lt.s32.totalorder %s25, 0
      %s386 = scalar_select %p385, %s25, 0
      %s387 = smul.addr %s384, 2
      %s388 = sadd.s32 %s386, %s387
      %s389 = smul.addr %s388, 8
      %s390 = scalar_lea.vmem %s6, %s389
      %p391 = scmp.lt.s32.totalorder %s24, 1
      %s392 = scalar_select %p391, %s24, 1
      %p393 = scmp.lt.s32.totalorder %s25, 0
      %s394 = scalar_select %p393, %s25, 0
      %s395 = sadd.s32 %s394, %s392
      %s396 = scalar_lea.vmem %s7, %s395
      %p397 = scmp.lt.s32.totalorder %s24, 1
      %s398 = scalar_select %p397, %s24, 1
      %p399 = scmp.lt.s32.totalorder %s25, 0
      %s400 = scalar_select %p399, %s25, 0
      %s401 = smul.addr %s398, 2
      %s402 = sadd.s32 %s400, %s401
      %s403 = smul.addr %s402, 8
      %s404 = scalar_lea.vmem %s8, %s403
      %v406 = vld [vmem:[%s2] sm:$0xff]
      %v407 = vld [vmem:[%s2 + $0x8] sm:$0xff]
      %v408 = vld [vmem:[%s2 + $0x10] sm:$0xff]
      %v409 = vld [vmem:[%s2 + $0x18] sm:$0xff]
      %v410 = vld [vmem:[%s374] sm:$0xf]
      %v411 = vld [vmem:[%s374 + $0x4] sm:$0xf]
      %v412 = vld [vmem:[%s374 + $0x8] sm:$0xf]
      %v413 = vld [vmem:[%s374 + $0xc] sm:$0xf]
      %v414 = vld [vmem:[%s374 + $0x10] sm:$0xf]
      %v415 = vld [vmem:[%s374 + $0x14] sm:$0xf]
      %v416 = vld [vmem:[%s374 + $0x18] sm:$0xf]
      %v417 = vld [vmem:[%s374 + $0x1c] sm:$0xf]
      %v418 = vld [vmem:[%s374 + $0x20] sm:$0xf]
      %v419 = vld [vmem:[%s374 + $0x24] sm:$0xf]
      %v420 = vld [vmem:[%s374 + $0x28] sm:$0xf]
      %v421 = vld [vmem:[%s374 + $0x2c] sm:$0xf]
      %v422 = vld [vmem:[%s374 + $0x30] sm:$0xf]
      %v423 = vld [vmem:[%s374 + $0x34] sm:$0xf]
      %v424 = vld [vmem:[%s374 + $0x38] sm:$0xf]
      %v425 = vld [vmem:[%s374 + $0x3c] sm:$0xf]
      %v426 = vld [vmem:[%s374 + $0x40] sm:$0xf]
      %v427 = vld [vmem:[%s374 + $0x44] sm:$0xf]
      %v428 = vld [vmem:[%s374 + $0x48] sm:$0xf]
      %v429 = vld [vmem:[%s374 + $0x4c] sm:$0xf]
      %v430 = vld [vmem:[%s374 + $0x50] sm:$0xf]
      %v431 = vld [vmem:[%s374 + $0x54] sm:$0xf]
      %v432 = vld [vmem:[%s374 + $0x58] sm:$0xf]
      %v433 = vld [vmem:[%s374 + $0x5c] sm:$0xf]
      %v434 = vld [vmem:[%s374 + $0x60] sm:$0xf]
      %v435 = vld [vmem:[%s374 + $0x64] sm:$0xf]
      %v436 = vld [vmem:[%s374 + $0x68] sm:$0xf]
      %v437 = vld [vmem:[%s374 + $0x6c] sm:$0xf]
      %v438 = vld [vmem:[%s374 + $0x70] sm:$0xf]
      %v439 = vld [vmem:[%s374 + $0x74] sm:$0xf]
      %v440 = vld [vmem:[%s374 + $0x78] sm:$0xf]
      %v441 = vld [vmem:[%s374 + $0x7c] sm:$0xf]
      %v442 = vld [vmem:[%s374 + $0x80] sm:$0xf]
      %v443 = vld [vmem:[%s374 + $0x84] sm:$0xf]
      %v444 = vld [vmem:[%s374 + $0x88] sm:$0xf]
      %v445 = vld [vmem:[%s374 + $0x8c] sm:$0xf]
      %v446 = vld [vmem:[%s374 + $0x90] sm:$0xf]
      %v447 = vld [vmem:[%s374 + $0x94] sm:$0xf]
      %v448 = vld [vmem:[%s374 + $0x98] sm:$0xf]
      %v449 = vld [vmem:[%s374 + $0x9c] sm:$0xf]
      %v450 = vld [vmem:[%s374 + $0xa0] sm:$0xf]
      %v451 = vld [vmem:[%s374 + $0xa4] sm:$0xf]
      %v452 = vld [vmem:[%s374 + $0xa8] sm:$0xf]
      %v453 = vld [vmem:[%s374 + $0xac] sm:$0xf]
      %v454 = vld [vmem:[%s374 + $0xb0] sm:$0xf]
      %v455 = vld [vmem:[%s374 + $0xb4] sm:$0xf]
      %v456 = vld [vmem:[%s374 + $0xb8] sm:$0xf]
      %v457 = vld [vmem:[%s374 + $0xbc] sm:$0xf]
      %v458 = vld [vmem:[%s374 + $0xc0] sm:$0xf]
      %v459 = vld [vmem:[%s374 + $0xc4] sm:$0xf]
      %v464 = vunpack.c.l.b16 %v406
      %v465 = vunpack.c.h.b16 %v406
      %v466 = vunpack.c.l.b16 %v407
      %v467 = vunpack.c.h.b16 %v407
      %v468 = vunpack.c.l.b16 %v408
      %v469 = vunpack.c.h.b16 %v408
      %v470 = vunpack.c.l.b16 %v409
      %v471 = vunpack.c.h.b16 %v409
      %v472 = vpack.c.b16 %v468, %v464
      %v473 = vpack.c.b16 %v469, %v465
      %v474 = vpack.c.b16 %v470, %v466
      %v475 = vpack.c.b16 %v471, %v467
      %v529 = vunpack.c.l.b16 %v410
      %v530 = vunpack.c.l.b16 %v411
      %v531 = vunpack.c.l.b16 %v412
      %v532 = vunpack.c.l.b16 %v413
      %v533 = vunpack.c.l.b16 %v414
      %v534 = vunpack.c.l.b16 %v415
      %v535 = vunpack.c.l.b16 %v416
      %v536 = vunpack.c.l.b16 %v417
      %v537 = vunpack.c.l.b16 %v418
      %v538 = vunpack.c.l.b16 %v419
      %v539 = vunpack.c.l.b16 %v420
      %v540 = vunpack.c.l.b16 %v421
      %v541 = vunpack.c.l.b16 %v422
      %v542 = vunpack.c.l.b16 %v423
      %v543 = vunpack.c.l.b16 %v424
      %v544 = vunpack.c.l.b16 %v425
      %v545 = vunpack.c.l.b16 %v426
      %v546 = vunpack.c.l.b16 %v427
      %v547 = vunpack.c.l.b16 %v428
      %v548 = vunpack.c.l.b16 %v429
      %v549 = vunpack.c.l.b16 %v430
      %v550 = vunpack.c.l.b16 %v431
      %v551 = vunpack.c.l.b16 %v432
      %v552 = vunpack.c.l.b16 %v433
      %v553 = vunpack.c.l.b16 %v434
      %v554 = vunpack.c.l.b16 %v435
      %v555 = vunpack.c.l.b16 %v436
      %v556 = vunpack.c.l.b16 %v437
      %v557 = vunpack.c.l.b16 %v438
      %v558 = vunpack.c.l.b16 %v439
      %v559 = vunpack.c.l.b16 %v440
      %v560 = vunpack.c.l.b16 %v441
      %v561 = vunpack.c.l.b16 %v442
      %v562 = vunpack.c.l.b16 %v443
      %v563 = vunpack.c.l.b16 %v444
      %v564 = vunpack.c.l.b16 %v445
      %v565 = vunpack.c.l.b16 %v446
      %v566 = vunpack.c.l.b16 %v447
      %v567 = vunpack.c.l.b16 %v448
      %v568 = vunpack.c.l.b16 %v449
      %v569 = vunpack.c.l.b16 %v450
      %v570 = vunpack.c.l.b16 %v451
      %v571 = vunpack.c.l.b16 %v452
      %v572 = vunpack.c.l.b16 %v453
      %v573 = vunpack.c.l.b16 %v454
      %v574 = vunpack.c.l.b16 %v455
      %v575 = vunpack.c.l.b16 %v456
      %v576 = vunpack.c.l.b16 %v457
      %v577 = vunpack.c.l.b16 %v458
      %v578 = vunpack.c.l.b16 %v459
      %v579 = vpack.c.b16 %v530, %v529
      %v580 = vpack.c.b16 %v532, %v531
      %v581 = vpack.c.b16 %v534, %v533
      %v582 = vpack.c.b16 %v536, %v535
      %v583 = vpack.c.b16 %v538, %v537
      %v584 = vpack.c.b16 %v540, %v539
      %v585 = vpack.c.b16 %v542, %v541
      %v586 = vpack.c.b16 %v544, %v543
      %v587 = vpack.c.b16 %v546, %v545
      %v588 = vpack.c.b16 %v548, %v547
      %v589 = vpack.c.b16 %v550, %v549
      %v590 = vpack.c.b16 %v552, %v551
      %v591 = vpack.c.b16 %v554, %v553
      %v592 = vpack.c.b16 %v556, %v555
      %v593 = vpack.c.b16 %v558, %v557
      %v594 = vpack.c.b16 %v560, %v559
      %v595 = vpack.c.b16 %v562, %v561
      %v596 = vpack.c.b16 %v564, %v563
      %v597 = vpack.c.b16 %v566, %v565
      %v598 = vpack.c.b16 %v568, %v567
      %v599 = vpack.c.b16 %v570, %v569
      %v600 = vpack.c.b16 %v572, %v571
      %v601 = vpack.c.b16 %v574, %v573
      %v602 = vpack.c.b16 %v576, %v575
      %v603 = vpack.c.b16 %v578, %v577
      %vm629 = vcmask 130048
      %v631 = vsel %vm629, %v475, 0
      %633 = vmatprep.subr.bf16.mxu0 0
      %634 = vmatpush1.bf16.msra.mxu0 %v579
      %635 = vmatprep.subr.bf16.mxu0 0
      %636 = vmatpush1.bf16.msra.mxu0 %v580
      %637 = vmatprep.subr.bf16.mxu0 0
      %638 = vmatpush1.bf16.msra.mxu0 %v581
      %639 = vmatprep.subr.bf16.mxu0 0
      %640 = vmatpush1.bf16.msra.mxu0 %v582
      %641 = vmatprep.subr.bf16.mxu0 0
      %642 = vmatpush1.bf16.msra.mxu0 %v583
      %643 = vmatprep.subr.bf16.mxu0 0
      %644 = vmatpush1.bf16.msra.mxu0 %v584
      %645 = vmatprep.subr.bf16.mxu0 0
      %646 = vmatpush1.bf16.msra.mxu0 %v585
      %647 = vmatprep.subr.bf16.mxu0 0
      %648 = vmatpush1.bf16.msra.mxu0 %v586
      %649 = vmatprep.subr.bf16.mxu0 0
      %650 = vmatpush1.bf16.msra.mxu0 %v587
      %651 = vmatprep.subr.bf16.mxu0 0
      %652 = vmatpush1.bf16.msra.mxu0 %v588
      %653 = vmatprep.subr.bf16.mxu0 0
      %654 = vmatpush1.bf16.msra.mxu0 %v589
      %655 = vmatprep.subr.bf16.mxu0 0
      %656 = vmatpush1.bf16.msra.mxu0 %v590
      %657 = vmatprep.subr.bf16.mxu0 0
      %658 = vmatpush1.bf16.msra.mxu0 %v591
      %659 = vmatprep.subr.bf16.mxu0 0
      %660 = vmatpush1.bf16.msra.mxu0 %v592
      %661 = vmatprep.subr.bf16.mxu0 0
      %662 = vmatpush1.bf16.msra.mxu0 %v593
      %663 = vmatprep.subr.bf16.mxu0 0
      %664 = vmatpush1.bf16.msra.mxu0 %v594
      %665 = vmatprep.mubr.bf16.mxu0 %v473
      %666 = vmatmul.mubr.bf16.gmra.mrb[0].mxu0 %v472
      %v667 = vpop.f32.mrb[0].mxu0
      %v668 = vadd.f32 0.0, %v667
      %v669 = vpop.f32.mrb[0].mxu0
      %v670 = vpop.f32.mrb[0].mxu0
      %v671 = vadd.f32 0.0, %v670
      %v672 = vpop.f32.mrb[0].mxu0
      %673 = vdwg.mxu0
      %674 = vmatprep.subr.bf16.mxu0 0
      %675 = vmatpush1.bf16.msra.mxu0 %v595
      %676 = vmatprep.subr.bf16.mxu0 0
      %677 = vmatpush1.bf16.msra.mxu0 %v596
      %678 = vmatprep.subr.bf16.mxu0 0
      %679 = vmatpush1.bf16.msra.mxu0 %v597
      %680 = vmatprep.subr.bf16.mxu0 0
      %681 = vmatpush1.bf16.msra.mxu0 %v598
      %682 = vmatprep.subr.bf16.mxu0 0
      %683 = vmatpush1.bf16.msra.mxu0 %v599
      %684 = vmatprep.subr.bf16.mxu0 0
      %685 = vmatpush1.bf16.msra.mxu0 %v600
      %686 = vmatprep.subr.bf16.mxu0 0
      %687 = vmatpush1.bf16.msra.mxu0 %v601
      %688 = vmatprep.subr.bf16.mxu0 0
      %689 = vmatpush1.bf16.msra.mxu0 %v602
      %690 = vmatprep.subr.bf16.mxu0 0
      %691 = vmatpush1.bf16.msra.mxu0 %v603
      %692 = vmatprep.subr.bf16.mxu0 0
      %693 = vmatpush1.bf16.msra.mxu0 0
      %694 = vmatprep.subr.bf16.mxu0 0
      %695 = vmatpush1.bf16.msra.mxu0 0
      %696 = vmatprep.subr.bf16.mxu0 0
      %697 = vmatpush1.bf16.msra.mxu0 0
      %698 = vmatprep.subr.bf16.mxu0 0
      %699 = vmatpush1.bf16.msra.mxu0 0
      %700 = vmatprep.subr.bf16.mxu0 0
      %701 = vmatpush1.bf16.msra.mxu0 0
      %702 = vmatprep.subr.bf16.mxu0 0
      %703 = vmatpush1.bf16.msra.mxu0 0
      %704 = vmatprep.subr.bf16.mxu0 0
      %705 = vmatpush1.bf16.msra.mxu0 0
      %706 = vmatprep.mubr.bf16.mxu0 %v631
      %707 = vmatmul.mubr.bf16.gmra.mrb[0].mxu0 %v474
      %v708 = vpop.f32.mrb[0].mxu0
      %v709 = vadd.f32 %v668, %v708
      %v710 = vpop.f32.mrb[0].mxu0
      %v711 = vpop.f32.mrb[0].mxu0
      %v712 = vadd.f32 %v671, %v711
      %v713 = vpop.f32.mrb[0].mxu0
      %714 = vdwg.mxu0
      %v715 = vld [vmem:[%s382] sm:$0xff]
      %v716 = vld [vmem:[%s382 + $0x8] sm:$0xff]
      %v717 = vld [vmem:[%s382 + $0x10] sm:$0xff]
      %v718 = vld [vmem:[%s382 + $0x18] sm:$0x1]
      %v719 = vsel %vm629, %v715, 0.0
      %v720 = vsel %vm629, %v716, 0.0
      %v721 = vadd.f32 %v719, %v720
      %v722 = vsel %vm629, %v717, 0.0
      %v723 = vadd.f32 %v721, %v722
      %vm724 = vcmask 122880
      %v725 = vsel %vm724, %v718, 0.0
      %v726 = vadd.f32 %v723, %v725
      %v727 = vrot.slane %v726, 4
      %v728 = vadd.f32 %v726, %v727
      %v729 = vrot.slane %v728, 2
      %v730 = vadd.f32 %v728, %v729
      %v731 = vrot.slane %v730, 1
      %v732 = vadd.f32 %v730, %v731
      %v733 = vmax.f32 %v732, 1e-05
      %v734 = vrcp.pop %v733
      %v735 = vmul.f32 1.0, %v734
      %v736 = vmul.f32 %v709, %v735
      %v737 = vmul.f32 %v712, %v735
      %v738 = vld [vmem:[%s3] sm:$0xff]
      %v739 = vld [vmem:[%s3 + $0x8] sm:$0xff]
      %741 = vset.pattern.permute.xlu0 0
      %742 = vperm.xlu0 %741, %v738
      %v743 = vpop.permute.xlu0 %742
      %746 = vset.pattern.permute.xlu0 0
      %747 = vperm.xlu0 %746, %v739
      %v748 = vpop.permute.xlu0 %747
      %v750 = vadd.f32 %v736, %v743
      %v751 = vadd.f32 %v737, %v748
      %752 = vst.msk [vmem:[%s390] sm:$0xff] %vm629, %v750
      %753 = vst.msk [vmem:[%s390 + $0x8] sm:$0xff] %vm629, %v751
      %vm754 = vcmp.gt.f32.partialorder %v732, 0.0
      %v755 = vsel %vm754, 1, 0
      %v756 = vcvt.s32.f32 %v755
      %757 = vst.msk [vmem:[%s396] sm:$0x1] %vm724, %v756
      %v758 = vld [vmem:[%s4] sm:$0xf]
      %v759 = vld [vmem:[%s4 + $0x4] sm:$0xf]
      %v760 = vpack.c.bf16 %v751, %v750
      %v761 = vld [vmem:[%s5] sm:$0xff]
      %v762 = vld [vmem:[%s5 + $0x8] sm:$0xff]
      %764 = vset.pattern.permute.xlu0 0
      %765 = vperm.xlu0 %764, %v761
      %v766 = vpop.permute.xlu0 %765
      %769 = vset.pattern.permute.xlu0 0
      %770 = vperm.xlu0 %769, %v762
      %v771 = vpop.permute.xlu0 %770
      %v775 = vunpack.c.l.b16 %v758
      %v776 = vunpack.c.l.b16 %v759
      %v777 = vpack.c.b16 %v776, %v775
      %v779 = vsel %vm629, %v777, 0
      %781 = vmatprep.subr.bf16.mxu0 0
      %782 = vmatpush1.bf16.msra.mxu0 %v760
      %783 = vmatprep.subr.bf16.mxu0 0
      %784 = vmatpush1.bf16.msra.mxu0 0
      %785 = vmatprep.subr.bf16.mxu0 0
      %786 = vmatpush1.bf16.msra.mxu0 0
      %787 = vmatprep.subr.bf16.mxu0 0
      %788 = vmatpush1.bf16.msra.mxu0 0
      %789 = vmatprep.subr.bf16.mxu0 0
      %790 = vmatpush1.bf16.msra.mxu0 0
      %791 = vmatprep.subr.bf16.mxu0 0
      %792 = vmatpush1.bf16.msra.mxu0 0
      %793 = vmatprep.subr.bf16.mxu0 0
      %794 = vmatpush1.bf16.msra.mxu0 0
      %795 = vmatprep.subr.bf16.mxu0 0
      %796 = vmatpush1.bf16.msra.mxu0 0
      %797 = vmatprep.subr.bf16.mxu0 0
      %798 = vmatpush1.bf16.msra.mxu0 0
      %799 = vmatprep.subr.bf16.mxu0 0
      %800 = vmatpush1.bf16.msra.mxu0 0
      %801 = vmatprep.subr.bf16.mxu0 0
      %802 = vmatpush1.bf16.msra.mxu0 0
      %803 = vmatprep.subr.bf16.mxu0 0
      %804 = vmatpush1.bf16.msra.mxu0 0
      %805 = vmatprep.subr.bf16.mxu0 0
      %806 = vmatpush1.bf16.msra.mxu0 0
      %807 = vmatprep.subr.bf16.mxu0 0
      %808 = vmatpush1.bf16.msra.mxu0 0
      %809 = vmatprep.subr.bf16.mxu0 0
      %810 = vmatpush1.bf16.msra.mxu0 0
      %811 = vmatprep.subr.bf16.mxu0 0
      %812 = vmatpush1.bf16.msra.mxu0 0
      %813 = vmatprep.mubr.bf16.mxu0 0
      %814 = vmatmul.mubr.bf16.gmra.mrb[0].mxu0 %v779
      %v815 = vpop.f32.mrb[0].mxu0
      %v816 = vadd.f32 %v766, %v815
      %v817 = vpop.f32.mrb[0].mxu0
      %v818 = vpop.f32.mrb[0].mxu0
      %v819 = vadd.f32 %v771, %v818
      %v820 = vpop.f32.mrb[0].mxu0
      %821 = vdwg.mxu0
      %822 = vst.msk [vmem:[%s404] sm:$0xff] %vm629, %v816
      %823 = vst.msk [vmem:[%s404 + $0x8] sm:$0xff] %vm629, %v819
      %p824 = scmp.lt.s32.totalorder %s24, 1
      %s825 = scalar_select %p824, %s24, 1
      %p826 = scmp.lt.s32.totalorder %s25, 0
      %s827 = scalar_select %p826, %s25, 0
      %s828 = smul.addr %s825, 2
      %s829 = sadd.s32 %s827, %s828
      %s830 = smul.addr %s829, 8
      %s831 = scalar_lea.vmem %s6, %s830
      %p832 = scmp.lt.s32.totalorder %s24, 1
      %s833 = scalar_select %p832, %s24, 1
      %p834 = scmp.lt.s32.totalorder %s25, 0
      %s835 = scalar_select %p834, %s25, 0
      %s836 = sadd.s32 %s835, %s833
      %s837 = scalar_lea.vmem %s7, %s836
      %p838 = scmp.lt.s32.totalorder %s24, 1
      %s839 = scalar_select %p838, %s24, 1
      %p840 = scmp.lt.s32.totalorder %s25, 0
      %s841 = scalar_select %p840, %s25, 0
      %s842 = smul.addr %s839, 2
      %s843 = sadd.s32 %s841, %s842
      %s844 = smul.addr %s843, 8
      %s845 = scalar_lea.vmem %s8, %s844
      // Predicated region
      $region45: #{three_scale_block_forward.10} parent=43 // pred_check
        %p846 = pneg %p192
      $region46: #{three_scale_block_forward.10} parent=43 // pred_check_branch
        %848 = sbr.rel (%p846) target = $region48
      $region47: #{three_scale_block_forward.10} parent=43 // pred_region
        _
      $region48: #{three_scale_block_forward.10} parent=43 // pred_fallthru
        _
      // Predicated region
      $region49: #{three_scale_block_forward.10} parent=43 // pred_check
        %p849 = pneg %p220
      $region50: #{three_scale_block_forward.10} parent=43 // pred_check_branch
        %851 = sbr.rel (%p849) target = $region52
      $region51: #{three_scale_block_forward.10} parent=43 // pred_region
        _
      $region52: #{three_scale_block_forward.10} parent=43 // pred_fallthru
        _
      // Predicated region
      $region53: #{three_scale_block_forward.10} parent=43 // pred_check
        %p852 = pneg %p248
      $region54: #{three_scale_block_forward.10} parent=43 // pred_check_branch
        %854 = sbr.rel (%p852) target = $region56
      $region55: #{three_scale_block_forward.10} parent=43 // pred_region
        _
      $region56: #{three_scale_block_forward.10} parent=43 // pred_fallthru
        _
    $region44: #{three_scale_block_forward.10} parent=5 // pred_fallthru
      _
    %p855 = scmp.le.s32.totalorder 2, %s15
    // Predicated region
    $region57: #{three_scale_block_forward.10} parent=5 // pred_check
      %p856 = pneg %p855
    $region58: #{three_scale_block_forward.10} parent=5 // pred_check_branch
      %858 = sbr.rel (%p856) target = $region60
    $region59: #{three_scale_block_forward.10} parent=5 // pred_region
      %s859 = ssub.s32 %s15, 2
      // Predicated region
      $region61: #{three_scale_block_forward.10} parent=59 // pred_check
        %p860 = pneg %p198
      $region62: #{three_scale_block_forward.10} parent=59 // pred_check_branch
        %862 = sbr.rel (%p860) target = $region64
      $region63: #{three_scale_block_forward.10} parent=59 // pred_region
        %p863 = scmp.lt.s32.totalorder %s26, 1
        %s864 = scalar_select %p863, %s26, 1
        %p865 = scmp.lt.s32.totalorder %s27, 0
        %s866 = scalar_select %p865, %s27, 0
        %s867 = smul.addr %s864, 2
        %s868 = sadd.s32 %s866, %s867
        %s869 = smul.addr %s868, 8
        %s870 = scalar_lea.vmem %s6, %s869
      $region64: #{three_scale_block_forward.10} parent=59 // pred_fallthru
        _
      // Predicated region
      $region65: #{three_scale_block_forward.10} parent=59 // pred_check
        %p871 = pneg %p226
      $region66: #{three_scale_block_forward.10} parent=59 // pred_check_branch
        %873 = sbr.rel (%p871) target = $region68
      $region67: #{three_scale_block_forward.10} parent=59 // pred_region
        %p874 = scmp.lt.s32.totalorder %s26, 1
        %s875 = scalar_select %p874, %s26, 1
        %p876 = scmp.lt.s32.totalorder %s27, 0
        %s877 = scalar_select %p876, %s27, 0
        %s878 = sadd.s32 %s877, %s875
        %s879 = scalar_lea.vmem %s7, %s878
      $region68: #{three_scale_block_forward.10} parent=59 // pred_fallthru
        _
      // Predicated region
      $region69: #{three_scale_block_forward.10} parent=59 // pred_check
        %p880 = pneg %p254
      $region70: #{three_scale_block_forward.10} parent=59 // pred_check_branch
        %882 = sbr.rel (%p880) target = $region72
      $region71: #{three_scale_block_forward.10} parent=59 // pred_region
        %p883 = scmp.lt.s32.totalorder %s26, 1
        %s884 = scalar_select %p883, %s26, 1
        %p885 = scmp.lt.s32.totalorder %s27, 0
        %s886 = scalar_select %p885, %s27, 0
        %s887 = smul.addr %s884, 2
        %s888 = sadd.s32 %s886, %s887
        %s889 = smul.addr %s888, 8
        %s890 = scalar_lea.vmem %s8, %s889
      $region72: #{three_scale_block_forward.10} parent=59 // pred_fallthru
        _
    $region60: #{three_scale_block_forward.10} parent=5 // pred_fallthru
      _
  $region6: #{three_scale_block_forward.10} parent=0 // loop_footer
    %s19 = sadd.s32 1, %s15
  $region7: #{three_scale_block_forward.10} parent=0 // loop_footer_branch
    %14 = sbr.rel target = $region3
  $region8: #{three_scale_block_forward.10} parent=0 // loop_exit
    _

// kernel: mul.73
$region0: #{mul.73}
  %s0 = inlined_call_operand.vmem [shape: f32[2,64], index: 0, kind: input, shape index: {}]
  %s1 = inlined_call_operand.vmem [shape: f32[2,8,8], index: 1, kind: output, shape index: {}]
  $region1: #{mul.73} parent=0
    #allocation0 [shape = 'u8[4096]{0}', space=vmem, size = 0x1000, scoped, tag = 'scoped mem for input reshape']
    %s3 = sshllo.u32 0, 2
    %v4 = vld [vmem:[%s0] sm:%s3]
    %5 = vst [vmem:[#allocation0] sm:%s3] %v4
    %v6 = vld [vmem:[#allocation0] sm:$0x3]
    %vm7 = vcmask 64512
    %8 = vst.msk [vmem:[%s1] ss:$8 sm:$0x3] %vm7, %v6
    %v9 = vld [vmem:[#allocation0] sm:$0x3]
    %10 = vrot.lane.b32.xlu0 %v9, 120
    %v11 = vpop.permute.xlu0 %10
    %vm12 = vcmask 64512
    %s13 = scalar_lea.vmem %s1, 1
    %14 = vst.msk [vmem:[%s13] ss:$8 sm:$0x3] %vm12, %v11
    %v15 = vld [vmem:[#allocation0] sm:$0x3]
    %16 = vrot.lane.b32.xlu0 %v15, 112
    %v17 = vpop.permute.xlu0 %16
    %vm18 = vcmask 64512
    %s19 = scalar_lea.vmem %s1, 2
    %20 = vst.msk [vmem:[%s19] ss:$8 sm:$0x3] %vm18, %v17
    %v21 = vld [vmem:[#allocation0] sm:$0x3]
    %22 = vrot.lane.b32.xlu0 %v21, 104
    %v23 = vpop.permute.xlu0 %22
    %vm24 = vcmask 64512
    %s25 = scalar_lea.vmem %s1, 3
    %26 = vst.msk [vmem:[%s25] ss:$8 sm:$0x3] %vm24, %v23
    %v27 = vld [vmem:[#allocation0] sm:$0x3]
    %28 = vrot.lane.b32.xlu0 %v27, 96
    %v29 = vpop.permute.xlu0 %28
    %vm30 = vcmask 64512
    %s31 = scalar_lea.vmem %s1, 4
    %32 = vst.msk [vmem:[%s31] ss:$8 sm:$0x3] %vm30, %v29
    %v33 = vld [vmem:[#allocation0] sm:$0x3]
    %34 = vrot.lane.b32.xlu0 %v33, 88
    %v35 = vpop.permute.xlu0 %34
    %vm36 = vcmask 64512
    %s37 = scalar_lea.vmem %s1, 5
    %38 = vst.msk [vmem:[%s37] ss:$8 sm:$0x3] %vm36, %v35
    %v39 = vld [vmem:[#allocation0] sm:$0x3]
    %40 = vrot.lane.b32.xlu0 %v39, 80
    %v41 = vpop.permute.xlu0 %40
    %vm42 = vcmask 64512
    %s43 = scalar_lea.vmem %s1, 6
    %44 = vst.msk [vmem:[%s43] ss:$8 sm:$0x3] %vm42, %v41
    %v45 = vld [vmem:[#allocation0] sm:$0x3]
    %46 = vrot.lane.b32.xlu0 %v45, 72
    %v47 = vpop.permute.xlu0 %46
    %vm48 = vcmask 64512
    %s49 = scalar_lea.vmem %s1, 7
    %50 = vst.msk [vmem:[%s49] ss:$8 sm:$0x3] %vm48, %v47

// kernel: three_scale_block_forward.7
$region0: #{three_scale_block_forward.7}
  #allocation0 [shape = 'u32[]', space=smem, size = 0x4, offset = 0x4, fixed_abs, tag = 'smem constant byte address 0x4 - core index']
  #allocation1 [shape = 'u32[144,128]{1,0:T(1,128)}', space=vmem, size = 0x12000, scoped, tag = 'internal scratch']
  %s0 = inlined_call_operand.vmem [shape: bf16[2,32,64], index: 0, kind: input, shape index: {}]
  %s1 = inlined_call_operand.vmem [shape: f32[2,1,64], index: 1, kind: input, shape index: {}]
  %s2 = inlined_call_operand.vmem [shape: f32[2,1,64], index: 2, kind: input, shape index: {}]
  %s3 = inlined_call_operand.vmem [shape: bf16[48,32], index: 3, kind: input, shape index: {}]
  %s4 = inlined_call_operand.vmem [shape: f32[2,16,64], index: 4, kind: output, shape index: {0}]
  %s5 = inlined_call_operand.vmem [shape: f32[2,1,64], index: 5, kind: output, shape index: {1}]
  %6 = xla_tuple %s4, %s5
  %s7 = sld [smem:[#allocation0]]
  $region57: #{three_scale_block_forward.7} parent=0
    _
  %s9 = ssub.s32 1, %s7
  %s10 = scalar_select 0, %s9, %s7
  loop: start=0, step=1, limit=4
  $region2: #{three_scale_block_forward.7} parent=0 // loop_pre_header
    _
  $region3: #{three_scale_block_forward.7} parent=0 // loop_header
    %s12 = sphi 0, %s16
    %p13 = scmp.ge.s32.totalorder %s12, 4
    %s19 = sphi 0, %s31
    %s20 = sphi 0, %s27
    %s21 = sphi 0, %s19
    %s22 = sphi 0, %s20
    %s23 = sphi 0, %s21
    %s24 = sphi 0, %s22
    %s36 = sphi 0, %s38
    %s39 = sphi 0, %s36
    %s40 = sphi 0, %s39
    %s56 = sphi 0, %s40
    %s64 = sphi 0, %s66
    %s67 = sphi 0, %s64
    %s68 = sphi 0, %s67
    %s84 = sphi 0, %s68
    %s92 = sphi 0, %s94
    %s95 = sphi 0, %s92
    %s96 = sphi 0, %s95
    %s112 = sphi 0, %s96
    %s116 = sphi 0, %s116
    %s118 = sphi 0, %s116
    %s119 = sphi 0, %s118
    %s133 = sphi 0, %s119
    %s141 = sphi 0, %s143
    %s144 = sphi 0, %s141
    %s145 = sphi 0, %s144
    %s161 = sphi 0, %s145
    %s169 = sphi 0, %s171
    %s172 = sphi 0, %s169
    %s173 = sphi 0, %s172
    %s189 = sphi 0, %s173
  $region4: #{three_scale_block_forward.7} parent=0 // loop_header_branch
    %15 = sbr.rel (%p13) target = $region8
  $region5: #{three_scale_block_forward.7} parent=0 // loop_body
    %s17 = ssub.s32 %s12, 1
    %s18 = ssub.s32 %s12, 2
    %s25 = sadd.s32 1, %s20
    %p26 = scmp.ge.s32.totalorder %s25, 1
    %s27 = scalar_select %p26, 0, %s25
    %s28 = sadd.s32 1, %s19
    %s29 = scalar_select %p26, %s28, %s19
    %p30 = scmp.ge.s32.totalorder %s29, 2
    %s31 = scalar_select %p30, 0, %s29
    %s32 = ssub.s32 %s19, %s31
    %s33 = ssub.s32 %s20, %s27
    %s34 = sor.u32 %s32, %s33
    %p35 = scmp.eq.s32.totalorder %s34, 0
    %s37 = sadd.s32 %s36, 1
    %s38 = scalar_select %p35, %s36, %s37
    %p41 = pneg %p35
    %p42 = scmp.eq.s32.totalorder %s12, 1
    %p43 = por %p41, %p42
    %p44 = scmp.ne.s32.totalorder %s36, %s39
    %p45 = scmp.eq.s32.totalorder %s12, 0
    %p46 = por %p44, %p45
    %p47 = scmp.ne.s32.totalorder %s36, %s39
    %p48 = scmp.eq.s32.totalorder %s17, 1
    %p49 = por %p47, %p48
    %p50 = scmp.ne.s32.totalorder %s39, %s40
    %p51 = scmp.eq.s32.totalorder %s17, 0
    %p52 = por %p50, %p51
    %p53 = scmp.ne.s32.totalorder %s39, %s40
    %p54 = scmp.eq.s32.totalorder %s18, 1
    %p55 = por %p53, %p54
    %p57 = scmp.ne.s32.totalorder %s40, %s56
    %p58 = scmp.eq.s32.totalorder %s18, 0
    %p59 = por %p57, %p58
    %s60 = ssub.s32 %s19, %s31
    %s61 = ssub.s32 %s20, %s27
    %s62 = sor.u32 %s60, %s61
    %p63 = scmp.eq.s32.totalorder %s62, 0
    %s65 = sadd.s32 %s64, 1
    %s66 = scalar_select %p63, %s64, %s65
    %p69 = pneg %p63
    %p70 = scmp.eq.s32.totalorder %s12, 1
    %p71 = por %p69, %p70
    %p72 = scmp.ne.s32.totalorder %s64, %s67
    %p73 = scmp.eq.s32.totalorder %s12, 0
    %p74 = por %p72, %p73
    %p75 = scmp.ne.s32.totalorder %s64, %s67
    %p76 = scmp.eq.s32.totalorder %s17, 1
    %p77 = por %p75, %p76
    %p78 = scmp.ne.s32.totalorder %s67, %s68
    %p79 = scmp.eq.s32.totalorder %s17, 0
    %p80 = por %p78, %p79
    %p81 = scmp.ne.s32.totalorder %s67, %s68
    %p82 = scmp.eq.s32.totalorder %s18, 1
    %p83 = por %p81, %p82
    %p85 = scmp.ne.s32.totalorder %s68, %s84
    %p86 = scmp.eq.s32.totalorder %s18, 0
    %p87 = por %p85, %p86
    %s88 = ssub.s32 %s19, %s31
    %s89 = ssub.s32 %s20, %s27
    %s90 = sor.u32 %s88, %s89
    %p91 = scmp.eq.s32.totalorder %s90, 0
    %s93 = sadd.s32 %s92, 1
    %s94 = scalar_select %p91, %s92, %s93
    %p97 = pneg %p91
    %p98 = scmp.eq.s32.totalorder %s12, 1
    %p99 = por %p97, %p98
    %p100 = scmp.ne.s32.totalorder %s92, %s95
    %p101 = scmp.eq.s32.totalorder %s12, 0
    %p102 = por %p100, %p101
    %p103 = scmp.ne.s32.totalorder %s92, %s95
    %p104 = scmp.eq.s32.totalorder %s17, 1
    %p105 = por %p103, %p104
    %p106 = scmp.ne.s32.totalorder %s95, %s96
    %p107 = scmp.eq.s32.totalorder %s17, 0
    %p108 = por %p106, %p107
    %p109 = scmp.ne.s32.totalorder %s95, %s96
    %p110 = scmp.eq.s32.totalorder %s18, 1
    %p111 = por %p109, %p110
    %p113 = scmp.ne.s32.totalorder %s96, %s112
    %p114 = scmp.eq.s32.totalorder %s18, 0
    %p115 = por %p113, %p114
    %s117 = sadd.s32 %s116, 1
    %p120 = scmp.eq.s32.totalorder %s12, 1
    %p121 = scmp.ne.s32.totalorder %s116, %s118
    %p122 = scmp.eq.s32.totalorder %s12, 0
    %p123 = por %p121, %p122
    %p124 = scmp.ne.s32.totalorder %s116, %s118
    %p125 = scmp.eq.s32.totalorder %s17, 1
    %p126 = por %p124, %p125
    %p127 = scmp.ne.s32.totalorder %s118, %s119
    %p128 = scmp.eq.s32.totalorder %s17, 0
    %p129 = por %p127, %p128
    %p130 = scmp.ne.s32.totalorder %s118, %s119
    %p131 = scmp.eq.s32.totalorder %s18, 1
    %p132 = por %p130, %p131
    %p134 = scmp.ne.s32.totalorder %s119, %s133
    %p135 = scmp.eq.s32.totalorder %s18, 0
    %p136 = por %p134, %p135
    %s137 = ssub.s32 %s19, %s31
    %s138 = ssub.s32 %s20, %s27
    %s139 = sor.u32 %s137, %s138
    %p140 = scmp.eq.s32.totalorder %s139, 0
    %s142 = sadd.s32 %s141, 1
    %s143 = scalar_select %p140, %s141, %s142
    %p146 = pneg %p140
    %p147 = scmp.eq.s32.totalorder %s12, 1
    %p148 = por %p146, %p147
    %p149 = scmp.ne.s32.totalorder %s141, %s144
    %p150 = scmp.eq.s32.totalorder %s12, 0
    %p151 = por %p149, %p150
    %p152 = scmp.ne.s32.totalorder %s141, %s144
    %p153 = scmp.eq.s32.totalorder %s17, 1
    %p154 = por %p152, %p153
    %p155 = scmp.ne.s32.totalorder %s144, %s145
    %p156 = scmp.eq.s32.totalorder %s17, 0
    %p157 = por %p155, %p156
    %p158 = scmp.ne.s32.totalorder %s144, %s145
    %p159 = scmp.eq.s32.totalorder %s18, 1
    %p160 = por %p158, %p159
    %p162 = scmp.ne.s32.totalorder %s145, %s161
    %p163 = scmp.eq.s32.totalorder %s18, 0
    %p164 = por %p162, %p163
    %s165 = ssub.s32 %s19, %s31
    %s166 = ssub.s32 %s20, %s27
    %s167 = sor.u32 %s165, %s166
    %p168 = scmp.eq.s32.totalorder %s167, 0
    %s170 = sadd.s32 %s169, 1
    %s171 = scalar_select %p168, %s169, %s170
    %p174 = pneg %p168
    %p175 = scmp.eq.s32.totalorder %s12, 1
    %p176 = por %p174, %p175
    %p177 = scmp.ne.s32.totalorder %s169, %s172
    %p178 = scmp.eq.s32.totalorder %s12, 0
    %p179 = por %p177, %p178
    %p180 = scmp.ne.s32.totalorder %s169, %s172
    %p181 = scmp.eq.s32.totalorder %s17, 1
    %p182 = por %p180, %p181
    %p183 = scmp.ne.s32.totalorder %s172, %s173
    %p184 = scmp.eq.s32.totalorder %s17, 0
    %p185 = por %p183, %p184
    %p186 = scmp.ne.s32.totalorder %s172, %s173
    %p187 = scmp.eq.s32.totalorder %s18, 1
    %p188 = por %p186, %p187
    %p190 = scmp.ne.s32.totalorder %s173, %s189
    %p191 = scmp.eq.s32.totalorder %s18, 0
    %p192 = por %p190, %p191
    %p193 = scmp.le.s32.totalorder 1, %s12
    %p194 = scmp.lt.s32.totalorder %s12, 3
    %p195 = pnand %p193, %p194
    %p196 = pneg %p195
    // Predicated region
    $region9: #{three_scale_block_forward.7} parent=5 // pred_check
      _
    $region10: #{three_scale_block_forward.7} parent=5 // pred_check_branch
      %198 = sbr.rel (%p195) target = $region12
    $region11: #{three_scale_block_forward.7} parent=5 // pred_region
      %s199 = ssub.s32 %s12, 1
      // Predicated region
      $region13: #{three_scale_block_forward.7} parent=11 // pred_check
        %p200 = pneg %p129
      $region14: #{three_scale_block_forward.7} parent=11 // pred_check_branch
        %202 = sbr.rel (%p200) target = $region16
      $region15: #{three_scale_block_forward.7} parent=11 // pred_region
        _
      $region16: #{three_scale_block_forward.7} parent=11 // pred_fallthru
        _
    $region12: #{three_scale_block_forward.7} parent=5 // pred_fallthru
      _
    %p203 = scmp.lt.s32.totalorder %s12, 2
    // Predicated region
    $region17: #{three_scale_block_forward.7} parent=5 // pred_check
      %p204 = pneg %p203
    $region18: #{three_scale_block_forward.7} parent=5 // pred_check_branch
      %206 = sbr.rel (%p204) target = $region20
    $region19: #{three_scale_block_forward.7} parent=5 // pred_region
      // Predicated region
      $region21: #{three_scale_block_forward.7} parent=19 // pred_check
        %p207 = pneg %p46
      $region22: #{three_scale_block_forward.7} parent=19 // pred_check_branch
        %209 = sbr.rel (%p207) target = $region24
      $region23: #{three_scale_block_forward.7} parent=19 // pred_region
        %p210 = scmp.lt.s32.totalorder %s19, 1
        %s211 = scalar_select %p210, %s19, 1
        %p212 = scmp.lt.s32.totalorder %s20, 0
        %s213 = scalar_select %p212, %s20, 0
        %s214 = smul.addr %s211, 4
        %s215 = sadd.s32 %s213, %s214
        %s216 = smul.addr %s215, 4
        %s217 = scalar_lea.vmem %s0, %s216
      $region24: #{three_scale_block_forward.7} parent=19 // pred_fallthru
        _
      // Predicated region
      $region25: #{three_scale_block_forward.7} parent=19 // pred_check
        %p218 = pneg %p74
      $region26: #{three_scale_block_forward.7} parent=19 // pred_check_branch
        %220 = sbr.rel (%p218) target = $region28
      $region27: #{three_scale_block_forward.7} parent=19 // pred_region
        %p221 = scmp.lt.s32.totalorder %s19, 1
        %s222 = scalar_select %p221, %s19, 1
        %p223 = scmp.lt.s32.totalorder %s20, 0
        %s224 = scalar_select %p223, %s20, 0
        %s225 = sadd.s32 %s224, %s222
        %s226 = scalar_lea.vmem %s1, %s225
      $region28: #{three_scale_block_forward.7} parent=19 // pred_fallthru
        _
      // Predicated region
      $region29: #{three_scale_block_forward.7} parent=19 // pred_check
        %p227 = pneg %p102
      $region30: #{three_scale_block_forward.7} parent=19 // pred_check_branch
        %229 = sbr.rel (%p227) target = $region32
      $region31: #{three_scale_block_forward.7} parent=19 // pred_region
        %p230 = scmp.lt.s32.totalorder %s19, 1
        %s231 = scalar_select %p230, %s19, 1
        %p232 = scmp.lt.s32.totalorder %s20, 0
        %s233 = scalar_select %p232, %s20, 0
        %s234 = sadd.s32 %s233, %s231
        %s235 = scalar_lea.vmem %s2, %s234
      $region32: #{three_scale_block_forward.7} parent=19 // pred_fallthru
        _
    $region20: #{three_scale_block_forward.7} parent=5 // pred_fallthru
      _
    %p236 = scmp.le.s32.totalorder 1, %s12
    %p237 = scmp.lt.s32.totalorder %s12, 3
    %p238 = pnand %p236, %p237
    %p239 = pneg %p238
    // Predicated region
    $region33: #{three_scale_block_forward.7} parent=5 // pred_check
      _
    $region34: #{three_scale_block_forward.7} parent=5 // pred_check_branch
      %241 = sbr.rel (%p238) target = $region36
    $region35: #{three_scale_block_forward.7} parent=5 // pred_region
      %s242 = ssub.s32 %s12, 1
      %p243 = scmp.lt.s32.totalorder %s21, 1
      %s244 = scalar_select %p243, %s21, 1
      %p245 = scmp.lt.s32.totalorder %s22, 0
      %s246 = scalar_select %p245, %s22, 0
      %s247 = smul.addr %s244, 4
      %s248 = sadd.s32 %s246, %s247
      %s249 = smul.addr %s248, 4
      %s250 = scalar_lea.vmem %s0, %s249
      %p251 = pneg %p52
      %p252 = pneg %p49
      %p253 = scmp.lt.s32.totalorder %s21, 1
      %s254 = scalar_select %p253, %s21, 1
      %p255 = scmp.lt.s32.totalorder %s22, 0
      %s256 = scalar_select %p255, %s22, 0
      %s257 = sadd.s32 %s256, %s254
      %s258 = scalar_lea.vmem %s1, %s257
      %p259 = pneg %p80
      %p260 = pneg %p77
      %p261 = scmp.lt.s32.totalorder %s21, 1
      %s262 = scalar_select %p261, %s21, 1
      %p263 = scmp.lt.s32.totalorder %s22, 0
      %s264 = scalar_select %p263, %s22, 0
      %s265 = sadd.s32 %s264, %s262
      %s266 = scalar_lea.vmem %s2, %s265
      %p267 = pneg %p108
      %p268 = pneg %p105
      %p269 = pneg %p129
      %p270 = pneg %p126
      %p271 = pneg %p157
      %p272 = pneg %p154
      %p273 = scmp.lt.s32.totalorder %s21, 1
      %s274 = scalar_select %p273, %s21, 1
      %p275 = scmp.lt.s32.totalorder %s22, 0
      %s276 = scalar_select %p275, %s22, 0
      %s277 = smul.addr %s274, 2
      %s278 = sadd.s32 %s276, %s277
      %s279 = smul.addr %s278, 8
      %s280 = scalar_lea.vmem %s4, %s279
      %p281 = pneg %p185
      %p282 = pneg %p182
      %p283 = scmp.lt.s32.totalorder %s21, 1
      %s284 = scalar_select %p283, %s21, 1
      %p285 = scmp.lt.s32.totalorder %s22, 0
      %s286 = scalar_select %p285, %s22, 0
      %s287 = sadd.s32 %s286, %s284
      %s288 = scalar_lea.vmem %s5, %s287
      %p289 = scmp.lt.s32.totalorder %s21, 1
      %s290 = scalar_select %p289, %s21, 1
      %p291 = scmp.lt.s32.totalorder %s22, 0
      %s292 = scalar_select %p291, %s22, 0
      %s293 = smul.addr %s290, 4
      %s294 = sadd.s32 %s292, %s293
      %s295 = smul.addr %s294, 4
      %s296 = scalar_lea.vmem %s0, %s295
      %p297 = scmp.lt.s32.totalorder %s21, 1
      %s298 = scalar_select %p297, %s21, 1
      %p299 = scmp.lt.s32.totalorder %s22, 0
      %s300 = scalar_select %p299, %s22, 0
      %s301 = sadd.s32 %s300, %s298
      %s302 = scalar_lea.vmem %s1, %s301
      %p303 = scmp.lt.s32.totalorder %s21, 1
      %s304 = scalar_select %p303, %s21, 1
      %p305 = scmp.lt.s32.totalorder %s22, 0
      %s306 = scalar_select %p305, %s22, 0
      %s307 = sadd.s32 %s306, %s304
      %s308 = scalar_lea.vmem %s2, %s307
      %p309 = scmp.lt.s32.totalorder %s21, 1
      %s310 = scalar_select %p309, %s21, 1
      %p311 = scmp.lt.s32.totalorder %s22, 0
      %s312 = scalar_select %p311, %s22, 0
      %s313 = smul.addr %s310, 2
      %s314 = sadd.s32 %s312, %s313
      %s315 = smul.addr %s314, 8
      %s316 = scalar_lea.vmem %s4, %s315
      %p317 = scmp.lt.s32.totalorder %s21, 1
      %s318 = scalar_select %p317, %s21, 1
      %p319 = scmp.lt.s32.totalorder %s22, 0
      %s320 = scalar_select %p319, %s22, 0
      %s321 = sadd.s32 %s320, %s318
      %s322 = scalar_lea.vmem %s5, %s321
      %v324 = vld [vmem:[%s3] sm:$0xf]
      %v325 = vld [vmem:[%s3 + $0x4] sm:$0xf]
      %v326 = vld [vmem:[%s3 + $0x8] sm:$0xf]
      %v327 = vld [vmem:[%s3 + $0xc] sm:$0xf]
      %v328 = vld [vmem:[%s3 + $0x10] sm:$0xf]
      %v329 = vld [vmem:[%s3 + $0x14] sm:$0xf]
      %v330 = vld [vmem:[%s296] sm:$0xf]
      %v331 = vld [vmem:[%s296 + $0x4] sm:$0xf]
      %v332 = vld [vmem:[%s296 + $0x8] sm:$0xf]
      %v333 = vld [vmem:[%s296 + $0xc] sm:$0xf]
      %v340 = vunpack.c.l.b16 %v324
      %v341 = vunpack.c.l.b16 %v325
      %v342 = vunpack.c.l.b16 %v326
      %v343 = vunpack.c.l.b16 %v327
      %v344 = vunpack.c.l.b16 %v328
      %v345 = vunpack.c.l.b16 %v329
      %v346 = vpack.c.b16 %v341, %v340
      %v347 = vpack.c.b16 %v343, %v342
      %v348 = vpack.c.b16 %v345, %v344
      %v353 = vunpack.c.l.b16 %v330
      %v354 = vunpack.c.l.b16 %v331
      %v355 = vunpack.c.l.b16 %v332
      %v356 = vunpack.c.l.b16 %v333
      %v357 = vpack.c.b16 %v354, %v353
      %v358 = vpack.c.b16 %v356, %v355
      %vm361 = vcmask 261120
      %v363 = vsel %vm361, %v346, 0
      %v366 = vsel %vm361, %v347, 0
      %v369 = vsel %vm361, %v348, 0
      %371 = vmatprep.subr.bf16.mxu0 0
      %372 = vmatpush1.bf16.msra.mxu0 %v357
      %373 = vmatprep.subr.bf16.mxu0 0
      %374 = vmatpush1.bf16.msra.mxu0 %v358
      %375 = vmatprep.subr.bf16.mxu0 0
      %376 = vmatpush1.bf16.msra.mxu0 0
      %377 = vmatprep.subr.bf16.mxu0 0
      %378 = vmatpush1.bf16.msra.mxu0 0
      %379 = vmatprep.subr.bf16.mxu0 0
      %380 = vmatpush1.bf16.msra.mxu0 0
      %381 = vmatprep.subr.bf16.mxu0 0
      %382 = vmatpush1.bf16.msra.mxu0 0
      %383 = vmatprep.subr.bf16.mxu0 0
      %384 = vmatpush1.bf16.msra.mxu0 0
      %385 = vmatprep.subr.bf16.mxu0 0
      %386 = vmatpush1.bf16.msra.mxu0 0
      %387 = vmatprep.subr.bf16.mxu0 0
      %388 = vmatpush1.bf16.msra.mxu0 0
      %389 = vmatprep.subr.bf16.mxu0 0
      %390 = vmatpush1.bf16.msra.mxu0 0
      %391 = vmatprep.subr.bf16.mxu0 0
      %392 = vmatpush1.bf16.msra.mxu0 0
      %393 = vmatprep.subr.bf16.mxu0 0
      %394 = vmatpush1.bf16.msra.mxu0 0
      %395 = vmatprep.subr.bf16.mxu0 0
      %396 = vmatpush1.bf16.msra.mxu0 0
      %397 = vmatprep.subr.bf16.mxu0 0
      %398 = vmatpush1.bf16.msra.mxu0 0
      %399 = vmatprep.subr.bf16.mxu0 0
      %400 = vmatpush1.bf16.msra.mxu0 0
      %401 = vmatprep.subr.bf16.mxu0 0
      %402 = vmatpush1.bf16.msra.mxu0 0
      %403 = vmatprep.mubr.bf16.mxu0 0
      %404 = vmatmul.mubr.bf16.gmra.mrb[0].mxu0 %v363
      %v405 = vpop.f32.mrb[0].mxu0
      %v406 = vadd.f32 0.0, %v405
      %v407 = vpop.f32.mrb[0].mxu0
      %v408 = vpop.f32.mrb[0].mxu0
      %v409 = vadd.f32 0.0, %v408
      %v410 = vpop.f32.mrb[0].mxu0
      %411 = vmatprep.mubr.bf16.mxu0 0
      %412 = vmatmul.mubr.bf16.gmra.mrb[0].mxu0 %v366
      %v413 = vpop.f32.mrb[0].mxu0
      %v414 = vadd.f32 0.0, %v413
      %v415 = vpop.f32.mrb[0].mxu0
      %v416 = vpop.f32.mrb[0].mxu0
      %v417 = vadd.f32 0.0, %v416
      %v418 = vpop.f32.mrb[0].mxu0
      %419 = vmatprep.mubr.bf16.mxu0 0
      %420 = vmatmul.mubr.bf16.gmra.mrb[0].mxu0 %v369
      %v421 = vpop.f32.mrb[0].mxu0
      %v422 = vadd.f32 0.0, %v421
      %v423 = vpop.f32.mrb[0].mxu0
      %v424 = vpop.f32.mrb[0].mxu0
      %v425 = vadd.f32 0.0, %v424
      %v426 = vpop.f32.mrb[0].mxu0
      %427 = vdwg.mxu0
      %v428 = vld [vmem:[%s302] sm:$0x1]
      %v429 = vld [vmem:[%s308] sm:$0x1]
      %vm430 = vcmp.gt.f32.partialorder %v428, 0.0
      %v431 = vsel %vm430, 1, 0
      %v432 = vcvt.s32.f32 %v431
      %vm433 = vcmp.gt.f32.partialorder %v429, 0.0
      %v434 = vsel %vm433, 1, 0
      %v435 = vcvt.s32.f32 %v434
      %vm436 = vcmp.eq.f32.partialorder %v428, 0.0
      %v437 = vsel %vm436, 1, 0
      %v438 = vcvt.s32.f32 %v437
      %vm439 = vcmp.eq.f32.partialorder %v429, 0.0
      %v440 = vsel %vm439, 1, 0
      %v441 = vcvt.s32.f32 %v440
      %v442 = vmul.f32 %v432, %v441
      %v444 = vlaneseq
      %v445 = vshrl.u32 %v444, 7
      %v446 = vsub.s32 0, %v445
      %v447 = vrot.slane %v442, %v446
      %v449 = vmul.f32 %v447, %v406
      %v450 = vmul.f32 %v447, %v409
      %v451 = vmul.f32 %v438, %v435
      %v453 = vlaneseq
      %v454 = vshrl.u32 %v453, 7
      %v455 = vsub.s32 0, %v454
      %v456 = vrot.slane %v451, %v455
      %v458 = vmul.f32 %v456, %v414
      %v459 = vmul.f32 %v456, %v417
      %v460 = vadd.f32 %v449, %v458
      %v461 = vadd.f32 %v450, %v459
      %v462 = vmul.f32 %v432, %v435
      %v464 = vlaneseq
      %v465 = vshrl.u32 %v464, 7
      %v466 = vsub.s32 0, %v465
      %v467 = vrot.slane %v462, %v466
      %v469 = vmul.f32 %v467, %v422
      %v470 = vmul.f32 %v467, %v425
      %v471 = vadd.f32 %v460, %v469
      %v472 = vadd.f32 %v461, %v470
      %vm473 = vcmask 523264
      %474 = vst.msk [vmem:[%s316] sm:$0xff] %vm473, %v471
      %475 = vst.msk [vmem:[%s316 + $0x8] sm:$0xff] %vm473, %v472
      %v476 = vadd.f32 %v428, %v429
      %vm477 = vcmp.gt.f32.partialorder %v476, 0.0
      %v478 = vsel %vm477, 1, 0
      %v479 = vcvt.s32.f32 %v478
      %vm480 = vcmask 516096
      %481 = vst.msk [vmem:[%s322] sm:$0x1] %vm480, %v479
      %p482 = scmp.lt.s32.totalorder %s21, 1
      %s483 = scalar_select %p482, %s21, 1
      %p484 = scmp.lt.s32.totalorder %s22, 0
      %s485 = scalar_select %p484, %s22, 0
      %s486 = smul.addr %s483, 2
      %s487 = sadd.s32 %s485, %s486
      %s488 = smul.addr %s487, 8
      %s489 = scalar_lea.vmem %s4, %s488
      %p490 = scmp.lt.s32.totalorder %s21, 1
      %s491 = scalar_select %p490, %s21, 1
      %p492 = scmp.lt.s32.totalorder %s22, 0
      %s493 = scalar_select %p492, %s22, 0
      %s494 = sadd.s32 %s493, %s491
      %s495 = scalar_lea.vmem %s5, %s494
      // Predicated region
      $region37: #{three_scale_block_forward.7} parent=35 // pred_check
        %p496 = pneg %p154
      $region38: #{three_scale_block_forward.7} parent=35 // pred_check_branch
        %498 = sbr.rel (%p496) target = $region40
      $region39: #{three_scale_block_forward.7} parent=35 // pred_region
        _
      $region40: #{three_scale_block_forward.7} parent=35 // pred_fallthru
        _
      // Predicated region
      $region41: #{three_scale_block_forward.7} parent=35 // pred_check
        %p499 = pneg %p182
      $region42: #{three_scale_block_forward.7} parent=35 // pred_check_branch
        %501 = sbr.rel (%p499) target = $region44
      $region43: #{three_scale_block_forward.7} parent=35 // pred_region
        _
      $region44: #{three_scale_block_forward.7} parent=35 // pred_fallthru
        _
    $region36: #{three_scale_block_forward.7} parent=5 // pred_fallthru
      _
    %p502 = scmp.le.s32.totalorder 2, %s12
    // Predicated region
    $region45: #{three_scale_block_forward.7} parent=5 // pred_check
      %p503 = pneg %p502
    $region46: #{three_scale_block_forward.7} parent=5 // pred_check_branch
      %505 = sbr.rel (%p503) target = $region48
    $region47: #{three_scale_block_forward.7} parent=5 // pred_region
      %s506 = ssub.s32 %s12, 2
      // Predicated region
      $region49: #{three_scale_block_forward.7} parent=47 // pred_check
        %p507 = pneg %p160
      $region50: #{three_scale_block_forward.7} parent=47 // pred_check_branch
        %509 = sbr.rel (%p507) target = $region52
      $region51: #{three_scale_block_forward.7} parent=47 // pred_region
        %p510 = scmp.lt.s32.totalorder %s23, 1
        %s511 = scalar_select %p510, %s23, 1
        %p512 = scmp.lt.s32.totalorder %s24, 0
        %s513 = scalar_select %p512, %s24, 0
        %s514 = smul.addr %s511, 2
        %s515 = sadd.s32 %s513, %s514
        %s516 = smul.addr %s515, 8
        %s517 = scalar_lea.vmem %s4, %s516
      $region52: #{three_scale_block_forward.7} parent=47 // pred_fallthru
        _
      // Predicated region
      $region53: #{three_scale_block_forward.7} parent=47 // pred_check
        %p518 = pneg %p188
      $region54: #{three_scale_block_forward.7} parent=47 // pred_check_branch
        %520 = sbr.rel (%p518) target = $region56
      $region55: #{three_scale_block_forward.7} parent=47 // pred_region
        %p521 = scmp.lt.s32.totalorder %s23, 1
        %s522 = scalar_select %p521, %s23, 1
        %p523 = scmp.lt.s32.totalorder %s24, 0
        %s524 = scalar_select %p523, %s24, 0
        %s525 = sadd.s32 %s524, %s522
        %s526 = scalar_lea.vmem %s5, %s525
      $region56: #{three_scale_block_forward.7} parent=47 // pred_fallthru
        _
    $region48: #{three_scale_block_forward.7} parent=5 // pred_fallthru
      _
  $region6: #{three_scale_block_forward.7} parent=0 // loop_footer
    %s16 = sadd.s32 1, %s12
  $region7: #{three_scale_block_forward.7} parent=0 // loop_footer_branch
    %11 = sbr.rel target = $region3
  $region8: #{three_scale_block_forward.7} parent=0 // loop_exit
    _

// kernel: three_scale_block_forward.9
$region0: #{three_scale_block_forward.9}
  #allocation0 [shape = 'u32[]', space=smem, size = 0x4, offset = 0x4, fixed_abs, tag = 'smem constant byte address 0x4 - core index']
  #allocation1 [shape = 'u32[144,128]{1,0:T(1,128)}', space=vmem, size = 0x12000, scoped, tag = 'internal scratch']
  %s0 = inlined_call_operand.vmem [shape: bf16[2,400,64], index: 0, kind: input, shape index: {}]
  %s1 = inlined_call_operand.vmem [shape: f32[2,25,64], index: 1, kind: input, shape index: {}]
  %s2 = inlined_call_operand.vmem [shape: bf16[16,400], index: 2, kind: input, shape index: {}]
  %s3 = inlined_call_operand.vmem [shape: f32[16,1], index: 3, kind: input, shape index: {}]
  %s4 = inlined_call_operand.vmem [shape: bf16[16,16], index: 4, kind: input, shape index: {}]
  %s5 = inlined_call_operand.vmem [shape: f32[16,1], index: 5, kind: input, shape index: {}]
  %s6 = inlined_call_operand.vmem [shape: f32[2,16,64], index: 6, kind: output, shape index: {0}]
  %s7 = inlined_call_operand.vmem [shape: f32[2,1,64], index: 7, kind: output, shape index: {1}]
  %s8 = inlined_call_operand.vmem [shape: f32[2,16,64], index: 8, kind: output, shape index: {2}]
  %9 = xla_tuple %s6, %s7, %s8
  %s10 = sld [smem:[#allocation0]]
  $region73: #{three_scale_block_forward.9} parent=0
    _
  %s12 = ssub.s32 1, %s10
  %s13 = scalar_select 0, %s12, %s10
  loop: start=0, step=1, limit=4
  $region2: #{three_scale_block_forward.9} parent=0 // loop_pre_header
    _
  $region3: #{three_scale_block_forward.9} parent=0 // loop_header
    %s15 = sphi 0, %s19
    %p16 = scmp.ge.s32.totalorder %s15, 4
    %s22 = sphi 0, %s34
    %s23 = sphi 0, %s30
    %s24 = sphi 0, %s22
    %s25 = sphi 0, %s23
    %s26 = sphi 0, %s24
    %s27 = sphi 0, %s25
    %s39 = sphi 0, %s41
    %s42 = sphi 0, %s39
    %s43 = sphi 0, %s42
    %s59 = sphi 0, %s43
    %s67 = sphi 0, %s69
    %s70 = sphi 0, %s67
    %s71 = sphi 0, %s70
    %s87 = sphi 0, %s71
    %s91 = sphi 0, %s91
    %s93 = sphi 0, %s91
    %s94 = sphi 0, %s93
    %s108 = sphi 0, %s94
    %s112 = sphi 0, %s112
    %s114 = sphi 0, %s112
    %s115 = sphi 0, %s114
    %s129 = sphi 0, %s115
    %s133 = sphi 0, %s133
    %s135 = sphi 0, %s133
    %s136 = sphi 0, %s135
    %s150 = sphi 0, %s136
    %s154 = sphi 0, %s154
    %s156 = sphi 0, %s154
    %s157 = sphi 0, %s156
    %s171 = sphi 0, %s157
    %s179 = sphi 0, %s181
    %s182 = sphi 0, %s179
    %s183 = sphi 0, %s182
    %s199 = sphi 0, %s183
    %s207 = sphi 0, %s209
    %s210 = sphi 0, %s207
    %s211 = sphi 0, %s210
    %s227 = sphi 0, %s211
    %s235 = sphi 0, %s237
    %s238 = sphi 0, %s235
    %s239 = sphi 0, %s238
    %s255 = sphi 0, %s239
  $region4: #{three_scale_block_forward.9} parent=0 // loop_header_branch
    %18 = sbr.rel (%p16) target = $region8
  $region5: #{three_scale_block_forward.9} parent=0 // loop_body
    %s20 = ssub.s32 %s15, 1
    %s21 = ssub.s32 %s15, 2
    %s28 = sadd.s32 1, %s23
    %p29 = scmp.ge.s32.totalorder %s28, 1
    %s30 = scalar_select %p29, 0, %s28
    %s31 = sadd.s32 1, %s22
    %s32 = scalar_select %p29, %s31, %s22
    %p33 = scmp.ge.s32.totalorder %s32, 2
    %s34 = scalar_select %p33, 0, %s32
    %s35 = ssub.s32 %s22, %s34
    %s36 = ssub.s32 %s23, %s30
    %s37 = sor.u32 %s35, %s36
    %p38 = scmp.eq.s32.totalorder %s37, 0
    %s40 = sadd.s32 %s39, 1
    %s41 = scalar_select %p38, %s39, %s40
    %p44 = pneg %p38
    %p45 = scmp.eq.s32.totalorder %s15, 1
    %p46 = por %p44, %p45
    %p47 = scmp.ne.s32.totalorder %s39, %s42
    %p48 = scmp.eq.s32.totalorder %s15, 0
    %p49 = por %p47, %p48
    %p50 = scmp.ne.s32.totalorder %s39, %s42
    %p51 = scmp.eq.s32.totalorder %s20, 1
    %p52 = por %p50, %p51
    %p53 = scmp.ne.s32.totalorder %s42, %s43
    %p54 = scmp.eq.s32.totalorder %s20, 0
    %p55 = por %p53, %p54
    %p56 = scmp.ne.s32.totalorder %s42, %s43
    %p57 = scmp.eq.s32.totalorder %s21, 1
    %p58 = por %p56, %p57
    %p60 = scmp.ne.s32.totalorder %s43, %s59
    %p61 = scmp.eq.s32.totalorder %s21, 0
    %p62 = por %p60, %p61
    %s63 = ssub.s32 %s22, %s34
    %s64 = ssub.s32 %s23, %s30
    %s65 = sor.u32 %s63, %s64
    %p66 = scmp.eq.s32.totalorder %s65, 0
    %s68 = sadd.s32 %s67, 1
    %s69 = scalar_select %p66, %s67, %s68
    %p72 = pneg %p66
    %p73 = scmp.eq.s32.totalorder %s15, 1
    %p74 = por %p72, %p73
    %p75 = scmp.ne.s32.totalorder %s67, %s70
    %p76 = scmp.eq.s32.totalorder %s15, 0
    %p77 = por %p75, %p76
    %p78 = scmp.ne.s32.totalorder %s67, %s70
    %p79 = scmp.eq.s32.totalorder %s20, 1
    %p80 = por %p78, %p79
    %p81 = scmp.ne.s32.totalorder %s70, %s71
    %p82 = scmp.eq.s32.totalorder %s20, 0
    %p83 = por %p81, %p82
    %p84 = scmp.ne.s32.totalorder %s70, %s71
    %p85 = scmp.eq.s32.totalorder %s21, 1
    %p86 = por %p84, %p85
    %p88 = scmp.ne.s32.totalorder %s71, %s87
    %p89 = scmp.eq.s32.totalorder %s21, 0
    %p90 = por %p88, %p89
    %s92 = sadd.s32 %s91, 1
    %p95 = scmp.eq.s32.totalorder %s15, 1
    %p96 = scmp.ne.s32.totalorder %s91, %s93
    %p97 = scmp.eq.s32.totalorder %s15, 0
    %p98 = por %p96, %p97
    %p99 = scmp.ne.s32.totalorder %s91, %s93
    %p100 = scmp.eq.s32.totalorder %s20, 1
    %p101 = por %p99, %p100
    %p102 = scmp.ne.s32.totalorder %s93, %s94
    %p103 = scmp.eq.s32.totalorder %s20, 0
    %p104 = por %p102, %p103
    %p105 = scmp.ne.s32.totalorder %s93, %s94
    %p106 = scmp.eq.s32.totalorder %s21, 1
    %p107 = por %p105, %p106
    %p109 = scmp.ne.s32.totalorder %s94, %s108
    %p110 = scmp.eq.s32.totalorder %s21, 0
    %p111 = por %p109, %p110
    %s113 = sadd.s32 %s112, 1
    %p116 = scmp.eq.s32.totalorder %s15, 1
    %p117 = scmp.ne.s32.totalorder %s112, %s114
    %p118 = scmp.eq.s32.totalorder %s15, 0
    %p119 = por %p117, %p118
    %p120 = scmp.ne.s32.totalorder %s112, %s114
    %p121 = scmp.eq.s32.totalorder %s20, 1
    %p122 = por %p120, %p121
    %p123 = scmp.ne.s32.totalorder %s114, %s115
    %p124 = scmp.eq.s32.totalorder %s20, 0
    %p125 = por %p123, %p124
    %p126 = scmp.ne.s32.totalorder %s114, %s115
    %p127 = scmp.eq.s32.totalorder %s21, 1
    %p128 = por %p126, %p127
    %p130 = scmp.ne.s32.totalorder %s115, %s129
    %p131 = scmp.eq.s32.totalorder %s21, 0
    %p132 = por %p130, %p131
    %s134 = sadd.s32 %s133, 1
    %p137 = scmp.eq.s32.totalorder %s15, 1
    %p138 = scmp.ne.s32.totalorder %s133, %s135
    %p139 = scmp.eq.s32.totalorder %s15, 0
    %p140 = por %p138, %p139
    %p141 = scmp.ne.s32.totalorder %s133, %s135
    %p142 = scmp.eq.s32.totalorder %s20, 1
    %p143 = por %p141, %p142
    %p144 = scmp.ne.s32.totalorder %s135, %s136
    %p145 = scmp.eq.s32.totalorder %s20, 0
    %p146 = por %p144, %p145
    %p147 = scmp.ne.s32.totalorder %s135, %s136
    %p148 = scmp.eq.s32.totalorder %s21, 1
    %p149 = por %p147, %p148
    %p151 = scmp.ne.s32.totalorder %s136, %s150
    %p152 = scmp.eq.s32.totalorder %s21, 0
    %p153 = por %p151, %p152
    %s155 = sadd.s32 %s154, 1
    %p158 = scmp.eq.s32.totalorder %s15, 1
    %p159 = scmp.ne.s32.totalorder %s154, %s156
    %p160 = scmp.eq.s32.totalorder %s15, 0
    %p161 = por %p159, %p160
    %p162 = scmp.ne.s32.totalorder %s154, %s156
    %p163 = scmp.eq.s32.totalorder %s20, 1
    %p164 = por %p162, %p163
    %p165 = scmp.ne.s32.totalorder %s156, %s157
    %p166 = scmp.eq.s32.totalorder %s20, 0
    %p167 = por %p165, %p166
    %p168 = scmp.ne.s32.totalorder %s156, %s157
    %p169 = scmp.eq.s32.totalorder %s21, 1
    %p170 = por %p168, %p169
    %p172 = scmp.ne.s32.totalorder %s157, %s171
    %p173 = scmp.eq.s32.totalorder %s21, 0
    %p174 = por %p172, %p173
    %s175 = ssub.s32 %s22, %s34
    %s176 = ssub.s32 %s23, %s30
    %s177 = sor.u32 %s175, %s176
    %p178 = scmp.eq.s32.totalorder %s177, 0
    %s180 = sadd.s32 %s179, 1
    %s181 = scalar_select %p178, %s179, %s180
    %p184 = pneg %p178
    %p185 = scmp.eq.s32.totalorder %s15, 1
    %p186 = por %p184, %p185
    %p187 = scmp.ne.s32.totalorder %s179, %s182
    %p188 = scmp.eq.s32.totalorder %s15, 0
    %p189 = por %p187, %p188
    %p190 = scmp.ne.s32.totalorder %s179, %s182
    %p191 = scmp.eq.s32.totalorder %s20, 1
    %p192 = por %p190, %p191
    %p193 = scmp.ne.s32.totalorder %s182, %s183
    %p194 = scmp.eq.s32.totalorder %s20, 0
    %p195 = por %p193, %p194
    %p196 = scmp.ne.s32.totalorder %s182, %s183
    %p197 = scmp.eq.s32.totalorder %s21, 1
    %p198 = por %p196, %p197
    %p200 = scmp.ne.s32.totalorder %s183, %s199
    %p201 = scmp.eq.s32.totalorder %s21, 0
    %p202 = por %p200, %p201
    %s203 = ssub.s32 %s22, %s34
    %s204 = ssub.s32 %s23, %s30
    %s205 = sor.u32 %s203, %s204
    %p206 = scmp.eq.s32.totalorder %s205, 0
    %s208 = sadd.s32 %s207, 1
    %s209 = scalar_select %p206, %s207, %s208
    %p212 = pneg %p206
    %p213 = scmp.eq.s32.totalorder %s15, 1
    %p214 = por %p212, %p213
    %p215 = scmp.ne.s32.totalorder %s207, %s210
    %p216 = scmp.eq.s32.totalorder %s15, 0
    %p217 = por %p215, %p216
    %p218 = scmp.ne.s32.totalorder %s207, %s210
    %p219 = scmp.eq.s32.totalorder %s20, 1
    %p220 = por %p218, %p219
    %p221 = scmp.ne.s32.totalorder %s210, %s211
    %p222 = scmp.eq.s32.totalorder %s20, 0
    %p223 = por %p221, %p222
    %p224 = scmp.ne.s32.totalorder %s210, %s211
    %p225 = scmp.eq.s32.totalorder %s21, 1
    %p226 = por %p224, %p225
    %p228 = scmp.ne.s32.totalorder %s211, %s227
    %p229 = scmp.eq.s32.totalorder %s21, 0
    %p230 = por %p228, %p229
    %s231 = ssub.s32 %s22, %s34
    %s232 = ssub.s32 %s23, %s30
    %s233 = sor.u32 %s231, %s232
    %p234 = scmp.eq.s32.totalorder %s233, 0
    %s236 = sadd.s32 %s235, 1
    %s237 = scalar_select %p234, %s235, %s236
    %p240 = pneg %p234
    %p241 = scmp.eq.s32.totalorder %s15, 1
    %p242 = por %p240, %p241
    %p243 = scmp.ne.s32.totalorder %s235, %s238
    %p244 = scmp.eq.s32.totalorder %s15, 0
    %p245 = por %p243, %p244
    %p246 = scmp.ne.s32.totalorder %s235, %s238
    %p247 = scmp.eq.s32.totalorder %s20, 1
    %p248 = por %p246, %p247
    %p249 = scmp.ne.s32.totalorder %s238, %s239
    %p250 = scmp.eq.s32.totalorder %s20, 0
    %p251 = por %p249, %p250
    %p252 = scmp.ne.s32.totalorder %s238, %s239
    %p253 = scmp.eq.s32.totalorder %s21, 1
    %p254 = por %p252, %p253
    %p256 = scmp.ne.s32.totalorder %s239, %s255
    %p257 = scmp.eq.s32.totalorder %s21, 0
    %p258 = por %p256, %p257
    %p259 = scmp.le.s32.totalorder 1, %s15
    %p260 = scmp.lt.s32.totalorder %s15, 3
    %p261 = pnand %p259, %p260
    %p262 = pneg %p261
    // Predicated region
    $region9: #{three_scale_block_forward.9} parent=5 // pred_check
      _
    $region10: #{three_scale_block_forward.9} parent=5 // pred_check_branch
      %264 = sbr.rel (%p261) target = $region12
    $region11: #{three_scale_block_forward.9} parent=5 // pred_region
      %s265 = ssub.s32 %s15, 1
      // Predicated region
      $region13: #{three_scale_block_forward.9} parent=11 // pred_check
        %p266 = pneg %p104
      $region14: #{three_scale_block_forward.9} parent=11 // pred_check_branch
        %268 = sbr.rel (%p266) target = $region16
      $region15: #{three_scale_block_forward.9} parent=11 // pred_region
        _
      $region16: #{three_scale_block_forward.9} parent=11 // pred_fallthru
        _
      // Predicated region
      $region17: #{three_scale_block_forward.9} parent=11 // pred_check
        %p269 = pneg %p125
      $region18: #{three_scale_block_forward.9} parent=11 // pred_check_branch
        %271 = sbr.rel (%p269) target = $region20
      $region19: #{three_scale_block_forward.9} parent=11 // pred_region
        _
      $region20: #{three_scale_block_forward.9} parent=11 // pred_fallthru
        _
      // Predicated region
      $region21: #{three_scale_block_forward.9} parent=11 // pred_check
        %p272 = pneg %p146
      $region22: #{three_scale_block_forward.9} parent=11 // pred_check_branch
        %274 = sbr.rel (%p272) target = $region24
      $region23: #{three_scale_block_forward.9} parent=11 // pred_region
        _
      $region24: #{three_scale_block_forward.9} parent=11 // pred_fallthru
        _
      // Predicated region
      $region25: #{three_scale_block_forward.9} parent=11 // pred_check
        %p275 = pneg %p167
      $region26: #{three_scale_block_forward.9} parent=11 // pred_check_branch
        %277 = sbr.rel (%p275) target = $region28
      $region27: #{three_scale_block_forward.9} parent=11 // pred_region
        _
      $region28: #{three_scale_block_forward.9} parent=11 // pred_fallthru
        _
    $region12: #{three_scale_block_forward.9} parent=5 // pred_fallthru
      _
    %p278 = scmp.lt.s32.totalorder %s15, 2
    // Predicated region
    $region29: #{three_scale_block_forward.9} parent=5 // pred_check
      %p279 = pneg %p278
    $region30: #{three_scale_block_forward.9} parent=5 // pred_check_branch
      %281 = sbr.rel (%p279) target = $region32
    $region31: #{three_scale_block_forward.9} parent=5 // pred_region
      // Predicated region
      $region33: #{three_scale_block_forward.9} parent=31 // pred_check
        %p282 = pneg %p49
      $region34: #{three_scale_block_forward.9} parent=31 // pred_check_branch
        %284 = sbr.rel (%p282) target = $region36
      $region35: #{three_scale_block_forward.9} parent=31 // pred_region
        %p285 = scmp.lt.s32.totalorder %s22, 1
        %s286 = scalar_select %p285, %s22, 1
        %p287 = scmp.lt.s32.totalorder %s23, 0
        %s288 = scalar_select %p287, %s23, 0
        %s289 = smul.addr %s286, 50
        %s290 = sadd.s32 %s288, %s289
        %s291 = smul.addr %s290, 4
        %s292 = scalar_lea.vmem %s0, %s291
      $region36: #{three_scale_block_forward.9} parent=31 // pred_fallthru
        _
      // Predicated region
      $region37: #{three_scale_block_forward.9} parent=31 // pred_check
        %p293 = pneg %p77
      $region38: #{three_scale_block_forward.9} parent=31 // pred_check_branch
        %295 = sbr.rel (%p293) target = $region40
      $region39: #{three_scale_block_forward.9} parent=31 // pred_region
        %p296 = scmp.lt.s32.totalorder %s22, 1
        %s297 = scalar_select %p296, %s22, 1
        %p298 = scmp.lt.s32.totalorder %s23, 0
        %s299 = scalar_select %p298, %s23, 0
        %s300 = smul.addr %s297, 4
        %s301 = sadd.s32 %s299, %s300
        %s302 = smul.addr %s301, 8
        %s303 = scalar_lea.vmem %s1, %s302
      $region40: #{three_scale_block_forward.9} parent=31 // pred_fallthru
        _
    $region32: #{three_scale_block_forward.9} parent=5 // pred_fallthru
      _
    %p304 = scmp.le.s32.totalorder 1, %s15
    %p305 = scmp.lt.s32.totalorder %s15, 3
    %p306 = pnand %p304, %p305
    %p307 = pneg %p306
    // Predicated region
    $region41: #{three_scale_block_forward.9} parent=5 // pred_check
      _
    $region42: #{three_scale_block_forward.9} parent=5 // pred_check_branch
      %309 = sbr.rel (%p306) target = $region44
    $region43: #{three_scale_block_forward.9} parent=5 // pred_region
      %s310 = ssub.s32 %s15, 1
      %p311 = scmp.lt.s32.totalorder %s24, 1
      %s312 = scalar_select %p311, %s24, 1
      %p313 = scmp.lt.s32.totalorder %s25, 0
      %s314 = scalar_select %p313, %s25, 0
      %s315 = smul.addr %s312, 50
      %s316 = sadd.s32 %s314, %s315
      %s317 = smul.addr %s316, 4
      %s318 = scalar_lea.vmem %s0, %s317
      %p319 = pneg %p55
      %p320 = pneg %p52
      %p321 = scmp.lt.s32.totalorder %s24, 1
      %s322 = scalar_select %p321, %s24, 1
      %p323 = scmp.lt.s32.totalorder %s25, 0
      %s324 = scalar_select %p323, %s25, 0
      %s325 = smul.addr %s322, 4
      %s326 = sadd.s32 %s324, %s325
      %s327 = smul.addr %s326, 8
      %s328 = scalar_lea.vmem %s1, %s327
      %p329 = pneg %p83
      %p330 = pneg %p80
      %p331 = pneg %p104
      %p332 = pneg %p101
      %p333 = pneg %p125
      %p334 = pneg %p122
      %p335 = pneg %p146
      %p336 = pneg %p143
      %p337 = pneg %p167
      %p338 = pneg %p164
      %p339 = pneg %p195
      %p340 = pneg %p192
      %p341 = scmp.lt.s32.totalorder %s24, 1
      %s342 = scalar_select %p341, %s24, 1
      %p343 = scmp.lt.s32.totalorder %s25, 0
      %s344 = scalar_select %p343, %s25, 0
      %s345 = smul.addr %s342, 2
      %s346 = sadd.s32 %s344, %s345
      %s347 = smul.addr %s346, 8
      %s348 = scalar_lea.vmem %s6, %s347
      %p349 = pneg %p223
      %p350 = pneg %p220
      %p351 = scmp.lt.s32.totalorder %s24, 1
      %s352 = scalar_select %p351, %s24, 1
      %p353 = scmp.lt.s32.totalorder %s25, 0
      %s354 = scalar_select %p353, %s25, 0
      %s355 = sadd.s32 %s354, %s352
      %s356 = scalar_lea.vmem %s7, %s355
      %p357 = pneg %p251
      %p358 = pneg %p248
      %p359 = scmp.lt.s32.totalorder %s24, 1
      %s360 = scalar_select %p359, %s24, 1
      %p361 = scmp.lt.s32.totalorder %s25, 0
      %s362 = scalar_select %p361, %s25, 0
      %s363 = smul.addr %s360, 2
      %s364 = sadd.s32 %s362, %s363
      %s365 = smul.addr %s364, 8
      %s366 = scalar_lea.vmem %s8, %s365
      %p367 = scmp.lt.s32.totalorder %s24, 1
      %s368 = scalar_select %p367, %s24, 1
      %p369 = scmp.lt.s32.totalorder %s25, 0
      %s370 = scalar_select %p369, %s25, 0
      %s371 = smul.addr %s368, 50
      %s372 = sadd.s32 %s370, %s371
      %s373 = smul.addr %s372, 4
      %s374 = scalar_lea.vmem %s0, %s373
      %p375 = scmp.lt.s32.totalorder %s24, 1
      %s376 = scalar_select %p375, %s24, 1
      %p377 = scmp.lt.s32.totalorder %s25, 0
      %s378 = scalar_select %p377, %s25, 0
      %s379 = smul.addr %s376, 4
      %s380 = sadd.s32 %s378, %s379
      %s381 = smul.addr %s380, 8
      %s382 = scalar_lea.vmem %s1, %s381
      %p383 = scmp.lt.s32.totalorder %s24, 1
      %s384 = scalar_select %p383, %s24, 1
      %p385 = scmp.lt.s32.totalorder %s25, 0
      %s386 = scalar_select %p385, %s25, 0
      %s387 = smul.addr %s384, 2
      %s388 = sadd.s32 %s386, %s387
      %s389 = smul.addr %s388, 8
      %s390 = scalar_lea.vmem %s6, %s389
      %p391 = scmp.lt.s32.totalorder %s24, 1
      %s392 = scalar_select %p391, %s24, 1
      %p393 = scmp.lt.s32.totalorder %s25, 0
      %s394 = scalar_select %p393, %s25, 0
      %s395 = sadd.s32 %s394, %s392
      %s396 = scalar_lea.vmem %s7, %s395
      %p397 = scmp.lt.s32.totalorder %s24, 1
      %s398 = scalar_select %p397, %s24, 1
      %p399 = scmp.lt.s32.totalorder %s25, 0
      %s400 = scalar_select %p399, %s25, 0
      %s401 = smul.addr %s398, 2
      %s402 = sadd.s32 %s400, %s401
      %s403 = smul.addr %s402, 8
      %s404 = scalar_lea.vmem %s8, %s403
      %v406 = vld [vmem:[%s2] sm:$0xff]
      %v407 = vld [vmem:[%s2 + $0x8] sm:$0xff]
      %v408 = vld [vmem:[%s2 + $0x10] sm:$0xff]
      %v409 = vld [vmem:[%s2 + $0x18] sm:$0xff]
      %v410 = vld [vmem:[%s374] sm:$0xf]
      %v411 = vld [vmem:[%s374 + $0x4] sm:$0xf]
      %v412 = vld [vmem:[%s374 + $0x8] sm:$0xf]
      %v413 = vld [vmem:[%s374 + $0xc] sm:$0xf]
      %v414 = vld [vmem:[%s374 + $0x10] sm:$0xf]
      %v415 = vld [vmem:[%s374 + $0x14] sm:$0xf]
      %v416 = vld [vmem:[%s374 + $0x18] sm:$0xf]
      %v417 = vld [vmem:[%s374 + $0x1c] sm:$0xf]
      %v418 = vld [vmem:[%s374 + $0x20] sm:$0xf]
      %v419 = vld [vmem:[%s374 + $0x24] sm:$0xf]
      %v420 = vld [vmem:[%s374 + $0x28] sm:$0xf]
      %v421 = vld [vmem:[%s374 + $0x2c] sm:$0xf]
      %v422 = vld [vmem:[%s374 + $0x30] sm:$0xf]
      %v423 = vld [vmem:[%s374 + $0x34] sm:$0xf]
      %v424 = vld [vmem:[%s374 + $0x38] sm:$0xf]
      %v425 = vld [vmem:[%s374 + $0x3c] sm:$0xf]
      %v426 = vld [vmem:[%s374 + $0x40] sm:$0xf]
      %v427 = vld [vmem:[%s374 + $0x44] sm:$0xf]
      %v428 = vld [vmem:[%s374 + $0x48] sm:$0xf]
      %v429 = vld [vmem:[%s374 + $0x4c] sm:$0xf]
      %v430 = vld [vmem:[%s374 + $0x50] sm:$0xf]
      %v431 = vld [vmem:[%s374 + $0x54] sm:$0xf]
      %v432 = vld [vmem:[%s374 + $0x58] sm:$0xf]
      %v433 = vld [vmem:[%s374 + $0x5c] sm:$0xf]
      %v434 = vld [vmem:[%s374 + $0x60] sm:$0xf]
      %v435 = vld [vmem:[%s374 + $0x64] sm:$0xf]
      %v436 = vld [vmem:[%s374 + $0x68] sm:$0xf]
      %v437 = vld [vmem:[%s374 + $0x6c] sm:$0xf]
      %v438 = vld [vmem:[%s374 + $0x70] sm:$0xf]
      %v439 = vld [vmem:[%s374 + $0x74] sm:$0xf]
      %v440 = vld [vmem:[%s374 + $0x78] sm:$0xf]
      %v441 = vld [vmem:[%s374 + $0x7c] sm:$0xf]
      %v442 = vld [vmem:[%s374 + $0x80] sm:$0xf]
      %v443 = vld [vmem:[%s374 + $0x84] sm:$0xf]
      %v444 = vld [vmem:[%s374 + $0x88] sm:$0xf]
      %v445 = vld [vmem:[%s374 + $0x8c] sm:$0xf]
      %v446 = vld [vmem:[%s374 + $0x90] sm:$0xf]
      %v447 = vld [vmem:[%s374 + $0x94] sm:$0xf]
      %v448 = vld [vmem:[%s374 + $0x98] sm:$0xf]
      %v449 = vld [vmem:[%s374 + $0x9c] sm:$0xf]
      %v450 = vld [vmem:[%s374 + $0xa0] sm:$0xf]
      %v451 = vld [vmem:[%s374 + $0xa4] sm:$0xf]
      %v452 = vld [vmem:[%s374 + $0xa8] sm:$0xf]
      %v453 = vld [vmem:[%s374 + $0xac] sm:$0xf]
      %v454 = vld [vmem:[%s374 + $0xb0] sm:$0xf]
      %v455 = vld [vmem:[%s374 + $0xb4] sm:$0xf]
      %v456 = vld [vmem:[%s374 + $0xb8] sm:$0xf]
      %v457 = vld [vmem:[%s374 + $0xbc] sm:$0xf]
      %v458 = vld [vmem:[%s374 + $0xc0] sm:$0xf]
      %v459 = vld [vmem:[%s374 + $0xc4] sm:$0xf]
      %v464 = vunpack.c.l.b16 %v406
      %v465 = vunpack.c.h.b16 %v406
      %v466 = vunpack.c.l.b16 %v407
      %v467 = vunpack.c.h.b16 %v407
      %v468 = vunpack.c.l.b16 %v408
      %v469 = vunpack.c.h.b16 %v408
      %v470 = vunpack.c.l.b16 %v409
      %v471 = vunpack.c.h.b16 %v409
      %v472 = vpack.c.b16 %v468, %v464
      %v473 = vpack.c.b16 %v469, %v465
      %v474 = vpack.c.b16 %v470, %v466
      %v475 = vpack.c.b16 %v471, %v467
      %v529 = vunpack.c.l.b16 %v410
      %v530 = vunpack.c.l.b16 %v411
      %v531 = vunpack.c.l.b16 %v412
      %v532 = vunpack.c.l.b16 %v413
      %v533 = vunpack.c.l.b16 %v414
      %v534 = vunpack.c.l.b16 %v415
      %v535 = vunpack.c.l.b16 %v416
      %v536 = vunpack.c.l.b16 %v417
      %v537 = vunpack.c.l.b16 %v418
      %v538 = vunpack.c.l.b16 %v419
      %v539 = vunpack.c.l.b16 %v420
      %v540 = vunpack.c.l.b16 %v421
      %v541 = vunpack.c.l.b16 %v422
      %v542 = vunpack.c.l.b16 %v423
      %v543 = vunpack.c.l.b16 %v424
      %v544 = vunpack.c.l.b16 %v425
      %v545 = vunpack.c.l.b16 %v426
      %v546 = vunpack.c.l.b16 %v427
      %v547 = vunpack.c.l.b16 %v428
      %v548 = vunpack.c.l.b16 %v429
      %v549 = vunpack.c.l.b16 %v430
      %v550 = vunpack.c.l.b16 %v431
      %v551 = vunpack.c.l.b16 %v432
      %v552 = vunpack.c.l.b16 %v433
      %v553 = vunpack.c.l.b16 %v434
      %v554 = vunpack.c.l.b16 %v435
      %v555 = vunpack.c.l.b16 %v436
      %v556 = vunpack.c.l.b16 %v437
      %v557 = vunpack.c.l.b16 %v438
      %v558 = vunpack.c.l.b16 %v439
      %v559 = vunpack.c.l.b16 %v440
      %v560 = vunpack.c.l.b16 %v441
      %v561 = vunpack.c.l.b16 %v442
      %v562 = vunpack.c.l.b16 %v443
      %v563 = vunpack.c.l.b16 %v444
      %v564 = vunpack.c.l.b16 %v445
      %v565 = vunpack.c.l.b16 %v446
      %v566 = vunpack.c.l.b16 %v447
      %v567 = vunpack.c.l.b16 %v448
      %v568 = vunpack.c.l.b16 %v449
      %v569 = vunpack.c.l.b16 %v450
      %v570 = vunpack.c.l.b16 %v451
      %v571 = vunpack.c.l.b16 %v452
      %v572 = vunpack.c.l.b16 %v453
      %v573 = vunpack.c.l.b16 %v454
      %v574 = vunpack.c.l.b16 %v455
      %v575 = vunpack.c.l.b16 %v456
      %v576 = vunpack.c.l.b16 %v457
      %v577 = vunpack.c.l.b16 %v458
      %v578 = vunpack.c.l.b16 %v459
      %v579 = vpack.c.b16 %v530, %v529
      %v580 = vpack.c.b16 %v532, %v531
      %v581 = vpack.c.b16 %v534, %v533
      %v582 = vpack.c.b16 %v536, %v535
      %v583 = vpack.c.b16 %v538, %v537
      %v584 = vpack.c.b16 %v540, %v539
      %v585 = vpack.c.b16 %v542, %v541
      %v586 = vpack.c.b16 %v544, %v543
      %v587 = vpack.c.b16 %v546, %v545
      %v588 = vpack.c.b16 %v548, %v547
      %v589 = vpack.c.b16 %v550, %v549
      %v590 = vpack.c.b16 %v552, %v551
      %v591 = vpack.c.b16 %v554, %v553
      %v592 = vpack.c.b16 %v556, %v555
      %v593 = vpack.c.b16 %v558, %v557
      %v594 = vpack.c.b16 %v560, %v559
      %v595 = vpack.c.b16 %v562, %v561
      %v596 = vpack.c.b16 %v564, %v563
      %v597 = vpack.c.b16 %v566, %v565
      %v598 = vpack.c.b16 %v568, %v567
      %v599 = vpack.c.b16 %v570, %v569
      %v600 = vpack.c.b16 %v572, %v571
      %v601 = vpack.c.b16 %v574, %v573
      %v602 = vpack.c.b16 %v576, %v575
      %v603 = vpack.c.b16 %v578, %v577
      %vm629 = vcmask 130048
      %v631 = vsel %vm629, %v475, 0
      %633 = vmatprep.subr.bf16.mxu0 0
      %634 = vmatpush1.bf16.msra.mxu0 %v579
      %635 = vmatprep.subr.bf16.mxu0 0
      %636 = vmatpush1.bf16.msra.mxu0 %v580
      %637 = vmatprep.subr.bf16.mxu0 0
      %638 = vmatpush1.bf16.msra.mxu0 %v581
      %639 = vmatprep.subr.bf16.mxu0 0
      %640 = vmatpush1.bf16.msra.mxu0 %v582
      %641 = vmatprep.subr.bf16.mxu0 0
      %642 = vmatpush1.bf16.msra.mxu0 %v583
      %643 = vmatprep.subr.bf16.mxu0 0
      %644 = vmatpush1.bf16.msra.mxu0 %v584
      %645 = vmatprep.subr.bf16.mxu0 0
      %646 = vmatpush1.bf16.msra.mxu0 %v585
      %647 = vmatprep.subr.bf16.mxu0 0
      %648 = vmatpush1.bf16.msra.mxu0 %v586
      %649 = vmatprep.subr.bf16.mxu0 0
      %650 = vmatpush1.bf16.msra.mxu0 %v587
      %651 = vmatprep.subr.bf16.mxu0 0
      %652 = vmatpush1.bf16.msra.mxu0 %v588
      %653 = vmatprep.subr.bf16.mxu0 0
      %654 = vmatpush1.bf16.msra.mxu0 %v589
      %655 = vmatprep.subr.bf16.mxu0 0
      %656 = vmatpush1.bf16.msra.mxu0 %v590
      %657 = vmatprep.subr.bf16.mxu0 0
      %658 = vmatpush1.bf16.msra.mxu0 %v591
      %659 = vmatprep.subr.bf16.mxu0 0
      %660 = vmatpush1.bf16.msra.mxu0 %v592
      %661 = vmatprep.subr.bf16.mxu0 0
      %662 = vmatpush1.bf16.msra.mxu0 %v593
      %663 = vmatprep.subr.bf16.mxu0 0
      %664 = vmatpush1.bf16.msra.mxu0 %v594
      %665 = vmatprep.mubr.bf16.mxu0 %v473
      %666 = vmatmul.mubr.bf16.gmra.mrb[0].mxu0 %v472
      %v667 = vpop.f32.mrb[0].mxu0
      %v668 = vadd.f32 0.0, %v667
      %v669 = vpop.f32.mrb[0].mxu0
      %v670 = vpop.f32.mrb[0].mxu0
      %v671 = vadd.f32 0.0, %v670
      %v672 = vpop.f32.mrb[0].mxu0
      %673 = vdwg.mxu0
      %674 = vmatprep.subr.bf16.mxu0 0
      %675 = vmatpush1.bf16.msra.mxu0 %v595
      %676 = vmatprep.subr.bf16.mxu0 0
      %677 = vmatpush1.bf16.msra.mxu0 %v596
      %678 = vmatprep.subr.bf16.mxu0 0
      %679 = vmatpush1.bf16.msra.mxu0 %v597
      %680 = vmatprep.subr.bf16.mxu0 0
      %681 = vmatpush1.bf16.msra.mxu0 %v598
      %682 = vmatprep.subr.bf16.mxu0 0
      %683 = vmatpush1.bf16.msra.mxu0 %v599
      %684 = vmatprep.subr.bf16.mxu0 0
      %685 = vmatpush1.bf16.msra.mxu0 %v600
      %686 = vmatprep.subr.bf16.mxu0 0
      %687 = vmatpush1.bf16.msra.mxu0 %v601
      %688 = vmatprep.subr.bf16.mxu0 0
      %689 = vmatpush1.bf16.msra.mxu0 %v602
      %690 = vmatprep.subr.bf16.mxu0 0
      %691 = vmatpush1.bf16.msra.mxu0 %v603
      %692 = vmatprep.subr.bf16.mxu0 0
      %693 = vmatpush1.bf16.msra.mxu0 0
      %694 = vmatprep.subr.bf16.mxu0 0
      %695 = vmatpush1.bf16.msra.mxu0 0
      %696 = vmatprep.subr.bf16.mxu0 0
      %697 = vmatpush1.bf16.msra.mxu0 0
      %698 = vmatprep.subr.bf16.mxu0 0
      %699 = vmatpush1.bf16.msra.mxu0 0
      %700 = vmatprep.subr.bf16.mxu0 0
      %701 = vmatpush1.bf16.msra.mxu0 0
      %702 = vmatprep.subr.bf16.mxu0 0
      %703 = vmatpush1.bf16.msra.mxu0 0
      %704 = vmatprep.subr.bf16.mxu0 0
      %705 = vmatpush1.bf16.msra.mxu0 0
      %706 = vmatprep.mubr.bf16.mxu0 %v631
      %707 = vmatmul.mubr.bf16.gmra.mrb[0].mxu0 %v474
      %v708 = vpop.f32.mrb[0].mxu0
      %v709 = vadd.f32 %v668, %v708
      %v710 = vpop.f32.mrb[0].mxu0
      %v711 = vpop.f32.mrb[0].mxu0
      %v712 = vadd.f32 %v671, %v711
      %v713 = vpop.f32.mrb[0].mxu0
      %714 = vdwg.mxu0
      %v715 = vld [vmem:[%s382] sm:$0xff]
      %v716 = vld [vmem:[%s382 + $0x8] sm:$0xff]
      %v717 = vld [vmem:[%s382 + $0x10] sm:$0xff]
      %v718 = vld [vmem:[%s382 + $0x18] sm:$0x1]
      %vm719 = vcmask 523264
      %v720 = vsel %vm719, %v715, 0.0
      %v721 = vsel %vm719, %v716, 0.0
      %v722 = vadd.f32 %v720, %v721
      %v723 = vsel %vm719, %v717, 0.0
      %v724 = vadd.f32 %v722, %v723
      %vm725 = vcmask 516096
      %v726 = vsel %vm725, %v718, 0.0
      %v727 = vadd.f32 %v724, %v726
      %v728 = vrot.slane %v727, 4
      %v729 = vadd.f32 %v727, %v728
      %v730 = vrot.slane %v729, 2
      %v731 = vadd.f32 %v729, %v730
      %v732 = vrot.slane %v731, 1
      %v733 = vadd.f32 %v731, %v732
      %v734 = vmax.f32 %v733, 1e-05
      %v735 = vrcp.pop %v734
      %v736 = vmul.f32 1.0, %v735
      %v737 = vmul.f32 %v709, %v736
      %v738 = vmul.f32 %v712, %v736
      %v739 = vld [vmem:[%s3] sm:$0xff]
      %v740 = vld [vmem:[%s3 + $0x8] sm:$0xff]
      %742 = vset.pattern.permute.xlu0 0
      %743 = vperm.xlu0 %742, %v739
      %v744 = vpop.permute.xlu0 %743
      %747 = vset.pattern.permute.xlu0 0
      %748 = vperm.xlu0 %747, %v740
      %v749 = vpop.permute.xlu0 %748
      %v751 = vadd.f32 %v737, %v744
      %v752 = vadd.f32 %v738, %v749
      %753 = vst.msk [vmem:[%s390] sm:$0xff] %vm719, %v751
      %754 = vst.msk [vmem:[%s390 + $0x8] sm:$0xff] %vm719, %v752
      %vm755 = vcmp.gt.f32.partialorder %v733, 0.0
      %v756 = vsel %vm755, 1, 0
      %v757 = vcvt.s32.f32 %v756
      %758 = vst.msk [vmem:[%s396] sm:$0x1] %vm725, %v757
      %v759 = vld [vmem:[%s4] sm:$0xf]
      %v760 = vld [vmem:[%s4 + $0x4] sm:$0xf]
      %v761 = vpack.c.bf16 %v752, %v751
      %v762 = vld [vmem:[%s5] sm:$0xff]
      %v763 = vld [vmem:[%s5 + $0x8] sm:$0xff]
      %765 = vset.pattern.permute.xlu0 0
      %766 = vperm.xlu0 %765, %v762
      %v767 = vpop.permute.xlu0 %766
      %770 = vset.pattern.permute.xlu0 0
      %771 = vperm.xlu0 %770, %v763
      %v772 = vpop.permute.xlu0 %771
      %v776 = vunpack.c.l.b16 %v759
      %v777 = vunpack.c.l.b16 %v760
      %v778 = vpack.c.b16 %v777, %v776
      %v780 = vsel %vm629, %v778, 0
      %782 = vmatprep.subr.bf16.mxu0 0
      %783 = vmatpush1.bf16.msra.mxu0 %v761
      %784 = vmatprep.subr.bf16.mxu0 0
      %785 = vmatpush1.bf16.msra.mxu0 0
      %786 = vmatprep.subr.bf16.mxu0 0
      %787 = vmatpush1.bf16.msra.mxu0 0
      %788 = vmatprep.subr.bf16.mxu0 0
      %789 = vmatpush1.bf16.msra.mxu0 0
      %790 = vmatprep.subr.bf16.mxu0 0
      %791 = vmatpush1.bf16.msra.mxu0 0
      %792 = vmatprep.subr.bf16.mxu0 0
      %793 = vmatpush1.bf16.msra.mxu0 0
      %794 = vmatprep.subr.bf16.mxu0 0
      %795 = vmatpush1.bf16.msra.mxu0 0
      %796 = vmatprep.subr.bf16.mxu0 0
      %797 = vmatpush1.bf16.msra.mxu0 0
      %798 = vmatprep.subr.bf16.mxu0 0
      %799 = vmatpush1.bf16.msra.mxu0 0
      %800 = vmatprep.subr.bf16.mxu0 0
      %801 = vmatpush1.bf16.msra.mxu0 0
      %802 = vmatprep.subr.bf16.mxu0 0
      %803 = vmatpush1.bf16.msra.mxu0 0
      %804 = vmatprep.subr.bf16.mxu0 0
      %805 = vmatpush1.bf16.msra.mxu0 0
      %806 = vmatprep.subr.bf16.mxu0 0
      %807 = vmatpush1.bf16.msra.mxu0 0
      %808 = vmatprep.subr.bf16.mxu0 0
      %809 = vmatpush1.bf16.msra.mxu0 0
      %810 = vmatprep.subr.bf16.mxu0 0
      %811 = vmatpush1.bf16.msra.mxu0 0
      %812 = vmatprep.subr.bf16.mxu0 0
      %813 = vmatpush1.bf16.msra.mxu0 0
      %814 = vmatprep.mubr.bf16.mxu0 0
      %815 = vmatmul.mubr.bf16.gmra.mrb[0].mxu0 %v780
      %v816 = vpop.f32.mrb[0].mxu0
      %v817 = vadd.f32 %v767, %v816
      %v818 = vpop.f32.mrb[0].mxu0
      %v819 = vpop.f32.mrb[0].mxu0
      %v820 = vadd.f32 %v772, %v819
      %v821 = vpop.f32.mrb[0].mxu0
      %822 = vdwg.mxu0
      %823 = vst.msk [vmem:[%s404] sm:$0xff] %vm719, %v817
      %824 = vst.msk [vmem:[%s404 + $0x8] sm:$0xff] %vm719, %v820
      %p825 = scmp.lt.s32.totalorder %s24, 1
      %s826 = scalar_select %p825, %s24, 1
      %p827 = scmp.lt.s32.totalorder %s25, 0
      %s828 = scalar_select %p827, %s25, 0
      %s829 = smul.addr %s826, 2
      %s830 = sadd.s32 %s828, %s829
      %s831 = smul.addr %s830, 8
      %s832 = scalar_lea.vmem %s6, %s831
      %p833 = scmp.lt.s32.totalorder %s24, 1
      %s834 = scalar_select %p833, %s24, 1
      %p835 = scmp.lt.s32.totalorder %s25, 0
      %s836 = scalar_select %p835, %s25, 0
      %s837 = sadd.s32 %s836, %s834
      %s838 = scalar_lea.vmem %s7, %s837
      %p839 = scmp.lt.s32.totalorder %s24, 1
      %s840 = scalar_select %p839, %s24, 1
      %p841 = scmp.lt.s32.totalorder %s25, 0
      %s842 = scalar_select %p841, %s25, 0
      %s843 = smul.addr %s840, 2
      %s844 = sadd.s32 %s842, %s843
      %s845 = smul.addr %s844, 8
      %s846 = scalar_lea.vmem %s8, %s845
      // Predicated region
      $region45: #{three_scale_block_forward.9} parent=43 // pred_check
        %p847 = pneg %p192
      $region46: #{three_scale_block_forward.9} parent=43 // pred_check_branch
        %849 = sbr.rel (%p847) target = $region48
      $region47: #{three_scale_block_forward.9} parent=43 // pred_region
        _
      $region48: #{three_scale_block_forward.9} parent=43 // pred_fallthru
        _
      // Predicated region
      $region49: #{three_scale_block_forward.9} parent=43 // pred_check
        %p850 = pneg %p220
      $region50: #{three_scale_block_forward.9} parent=43 // pred_check_branch
        %852 = sbr.rel (%p850) target = $region52
      $region51: #{three_scale_block_forward.9} parent=43 // pred_region
        _
      $region52: #{three_scale_block_forward.9} parent=43 // pred_fallthru
        _
      // Predicated region
      $region53: #{three_scale_block_forward.9} parent=43 // pred_check
        %p853 = pneg %p248
      $region54: #{three_scale_block_forward.9} parent=43 // pred_check_branch
        %855 = sbr.rel (%p853) target = $region56
      $region55: #{three_scale_block_forward.9} parent=43 // pred_region
        _
      $region56: #{three_scale_block_forward.9} parent=43 // pred_fallthru
        _
    $region44: #{three_scale_block_forward.9} parent=5 // pred_fallthru
      _
    %p856 = scmp.le.s32.totalorder 2, %s15
    // Predicated region
    $region57: #{three_scale_block_forward.9} parent=5 // pred_check
      %p857 = pneg %p856
    $region58: #{three_scale_block_forward.9} parent=5 // pred_check_branch
      %859 = sbr.rel (%p857) target = $region60
    $region59: #{three_scale_block_forward.9} parent=5 // pred_region
      %s860 = ssub.s32 %s15, 2
      // Predicated region
      $region61: #{three_scale_block_forward.9} parent=59 // pred_check
        %p861 = pneg %p198
      $region62: #{three_scale_block_forward.9} parent=59 // pred_check_branch
        %863 = sbr.rel (%p861) target = $region64
      $region63: #{three_scale_block_forward.9} parent=59 // pred_region
        %p864 = scmp.lt.s32.totalorder %s26, 1
        %s865 = scalar_select %p864, %s26, 1
        %p866 = scmp.lt.s32.totalorder %s27, 0
        %s867 = scalar_select %p866, %s27, 0
        %s868 = smul.addr %s865, 2
        %s869 = sadd.s32 %s867, %s868
        %s870 = smul.addr %s869, 8
        %s871 = scalar_lea.vmem %s6, %s870
      $region64: #{three_scale_block_forward.9} parent=59 // pred_fallthru
        _
      // Predicated region
      $region65: #{three_scale_block_forward.9} parent=59 // pred_check
        %p872 = pneg %p226
      $region66: #{three_scale_block_forward.9} parent=59 // pred_check_branch
        %874 = sbr.rel (%p872) target = $region68
      $region67: #{three_scale_block_forward.9} parent=59 // pred_region
        %p875 = scmp.lt.s32.totalorder %s26, 1
        %s876 = scalar_select %p875, %s26, 1
        %p877 = scmp.lt.s32.totalorder %s27, 0
        %s878 = scalar_select %p877, %s27, 0
        %s879 = sadd.s32 %s878, %s876
        %s880 = scalar_lea.vmem %s7, %s879
      $region68: #{three_scale_block_forward.9} parent=59 // pred_fallthru
        _
      // Predicated region
      $region69: #{three_scale_block_forward.9} parent=59 // pred_check
        %p881 = pneg %p254
      $region70: #{three_scale_block_forward.9} parent=59 // pred_check_branch
        %883 = sbr.rel (%p881) target = $region72
      $region71: #{three_scale_block_forward.9} parent=59 // pred_region
        %p884 = scmp.lt.s32.totalorder %s26, 1
        %s885 = scalar_select %p884, %s26, 1
        %p886 = scmp.lt.s32.totalorder %s27, 0
        %s887 = scalar_select %p886, %s27, 0
        %s888 = smul.addr %s885, 2
        %s889 = sadd.s32 %s887, %s888
        %s890 = smul.addr %s889, 8
        %s891 = scalar_lea.vmem %s8, %s890
      $region72: #{three_scale_block_forward.9} parent=59 // pred_fallthru
        _
    $region60: #{three_scale_block_forward.9} parent=5 // pred_fallthru
      _
  $region6: #{three_scale_block_forward.9} parent=0 // loop_footer
    %s19 = sadd.s32 1, %s15
  $region7: #{three_scale_block_forward.9} parent=0 // loop_footer_branch
    %14 = sbr.rel target = $region3
  $region8: #{three_scale_block_forward.9} parent=0 // loop_exit
    _

// kernel: three_scale_block_forward.11
$region0: #{three_scale_block_forward.11}
  #allocation0 [shape = 'u32[]', space=smem, size = 0x4, offset = 0x4, fixed_abs, tag = 'smem constant byte address 0x4 - core index']
  #allocation1 [shape = 'u32[144,128]{1,0:T(1,128)}', space=vmem, size = 0x12000, scoped, tag = 'internal scratch']
  %s0 = inlined_call_operand.vmem [shape: f32[2,16,256], index: 0, kind: input, shape index: {}]
  %s1 = inlined_call_operand.vmem [shape: f32[2,1,256], index: 1, kind: input, shape index: {}]
  %s2 = inlined_call_operand.vmem [shape: f32[2,16,256], index: 2, kind: input, shape index: {}]
  %s3 = inlined_call_operand.vmem [shape: f32[2,1,256], index: 3, kind: input, shape index: {}]
  %s4 = inlined_call_operand.vmem [shape: f32[2,16,256], index: 4, kind: input, shape index: {}]
  %s5 = inlined_call_operand.vmem [shape: f32[2,1,256], index: 5, kind: input, shape index: {}]
  %s6 = inlined_call_operand.vmem [shape: f32[2,16,256], index: 6, kind: output, shape index: {0}]
  %s7 = inlined_call_operand.vmem [shape: f32[2,1,256], index: 7, kind: output, shape index: {1}]
  %8 = xla_tuple %s6, %s7
  %s9 = sld [smem:[#allocation0]]
  $region65: #{three_scale_block_forward.11} parent=0
    _
  %s11 = ssub.s32 1, %s9
  %s12 = scalar_select 0, %s11, %s9
  loop: start=0, step=1, limit=4
  $region2: #{three_scale_block_forward.11} parent=0 // loop_pre_header
    _
  $region3: #{three_scale_block_forward.11} parent=0 // loop_header
    %s14 = sphi 0, %s18
    %p15 = scmp.ge.s32.totalorder %s14, 4
    %s21 = sphi 0, %s33
    %s22 = sphi 0, %s29
    %s23 = sphi 0, %s21
    %s24 = sphi 0, %s22
    %s25 = sphi 0, %s23
    %s26 = sphi 0, %s24
    %s38 = sphi 0, %s40
    %s41 = sphi 0, %s38
    %s42 = sphi 0, %s41
    %s58 = sphi 0, %s42
    %s66 = sphi 0, %s68
    %s69 = sphi 0, %s66
    %s70 = sphi 0, %s69
    %s86 = sphi 0, %s70
    %s94 = sphi 0, %s96
    %s97 = sphi 0, %s94
    %s98 = sphi 0, %s97
    %s114 = sphi 0, %s98
    %s122 = sphi 0, %s124
    %s125 = sphi 0, %s122
    %s126 = sphi 0, %s125
    %s142 = sphi 0, %s126
    %s150 = sphi 0, %s152
    %s153 = sphi 0, %s150
    %s154 = sphi 0, %s153
    %s170 = sphi 0, %s154
    %s178 = sphi 0, %s180
    %s181 = sphi 0, %s178
    %s182 = sphi 0, %s181
    %s198 = sphi 0, %s182
    %s206 = sphi 0, %s208
    %s209 = sphi 0, %s206
    %s210 = sphi 0, %s209
    %s226 = sphi 0, %s210
    %s234 = sphi 0, %s236
    %s237 = sphi 0, %s234
    %s238 = sphi 0, %s237
    %s254 = sphi 0, %s238
  $region4: #{three_scale_block_forward.11} parent=0 // loop_header_branch
    %17 = sbr.rel (%p15) target = $region8
  $region5: #{three_scale_block_forward.11} parent=0 // loop_body
    %s19 = ssub.s32 %s14, 1
    %s20 = ssub.s32 %s14, 2
    %s27 = sadd.s32 1, %s22
    %p28 = scmp.ge.s32.totalorder %s27, 1
    %s29 = scalar_select %p28, 0, %s27
    %s30 = sadd.s32 1, %s21
    %s31 = scalar_select %p28, %s30, %s21
    %p32 = scmp.ge.s32.totalorder %s31, 2
    %s33 = scalar_select %p32, 0, %s31
    %s34 = ssub.s32 %s21, %s33
    %s35 = ssub.s32 %s22, %s29
    %s36 = sor.u32 %s34, %s35
    %p37 = scmp.eq.s32.totalorder %s36, 0
    %s39 = sadd.s32 %s38, 1
    %s40 = scalar_select %p37, %s38, %s39
    %p43 = pneg %p37
    %p44 = scmp.eq.s32.totalorder %s14, 1
    %p45 = por %p43, %p44
    %p46 = scmp.ne.s32.totalorder %s38, %s41
    %p47 = scmp.eq.s32.totalorder %s14, 0
    %p48 = por %p46, %p47
    %p49 = scmp.ne.s32.totalorder %s38, %s41
    %p50 = scmp.eq.s32.totalorder %s19, 1
    %p51 = por %p49, %p50
    %p52 = scmp.ne.s32.totalorder %s41, %s42
    %p53 = scmp.eq.s32.totalorder %s19, 0
    %p54 = por %p52, %p53
    %p55 = scmp.ne.s32.totalorder %s41, %s42
    %p56 = scmp.eq.s32.totalorder %s20, 1
    %p57 = por %p55, %p56
    %p59 = scmp.ne.s32.totalorder %s42, %s58
    %p60 = scmp.eq.s32.totalorder %s20, 0
    %p61 = por %p59, %p60
    %s62 = ssub.s32 %s21, %s33
    %s63 = ssub.s32 %s22, %s29
    %s64 = sor.u32 %s62, %s63
    %p65 = scmp.eq.s32.totalorder %s64, 0
    %s67 = sadd.s32 %s66, 1
    %s68 = scalar_select %p65, %s66, %s67
    %p71 = pneg %p65
    %p72 = scmp.eq.s32.totalorder %s14, 1
    %p73 = por %p71, %p72
    %p74 = scmp.ne.s32.totalorder %s66, %s69
    %p75 = scmp.eq.s32.totalorder %s14, 0
    %p76 = por %p74, %p75
    %p77 = scmp.ne.s32.totalorder %s66, %s69
    %p78 = scmp.eq.s32.totalorder %s19, 1
    %p79 = por %p77, %p78
    %p80 = scmp.ne.s32.totalorder %s69, %s70
    %p81 = scmp.eq.s32.totalorder %s19, 0
    %p82 = por %p80, %p81
    %p83 = scmp.ne.s32.totalorder %s69, %s70
    %p84 = scmp.eq.s32.totalorder %s20, 1
    %p85 = por %p83, %p84
    %p87 = scmp.ne.s32.totalorder %s70, %s86
    %p88 = scmp.eq.s32.totalorder %s20, 0
    %p89 = por %p87, %p88
    %s90 = ssub.s32 %s21, %s33
    %s91 = ssub.s32 %s22, %s29
    %s92 = sor.u32 %s90, %s91
    %p93 = scmp.eq.s32.totalorder %s92, 0
    %s95 = sadd.s32 %s94, 1
    %s96 = scalar_select %p93, %s94, %s95
    %p99 = pneg %p93
    %p100 = scmp.eq.s32.totalorder %s14, 1
    %p101 = por %p99, %p100
    %p102 = scmp.ne.s32.totalorder %s94, %s97
    %p103 = scmp.eq.s32.totalorder %s14, 0
    %p104 = por %p102, %p103
    %p105 = scmp.ne.s32.totalorder %s94, %s97
    %p106 = scmp.eq.s32.totalorder %s19, 1
    %p107 = por %p105, %p106
    %p108 = scmp.ne.s32.totalorder %s97, %s98
    %p109 = scmp.eq.s32.totalorder %s19, 0
    %p110 = por %p108, %p109
    %p111 = scmp.ne.s32.totalorder %s97, %s98
    %p112 = scmp.eq.s32.totalorder %s20, 1
    %p113 = por %p111, %p112
    %p115 = scmp.ne.s32.totalorder %s98, %s114
    %p116 = scmp.eq.s32.totalorder %s20, 0
    %p117 = por %p115, %p116
    %s118 = ssub.s32 %s21, %s33
    %s119 = ssub.s32 %s22, %s29
    %s120 = sor.u32 %s118, %s119
    %p121 = scmp.eq.s32.totalorder %s120, 0
    %s123 = sadd.s32 %s122, 1
    %s124 = scalar_select %p121, %s122, %s123
    %p127 = pneg %p121
    %p128 = scmp.eq.s32.totalorder %s14, 1
    %p129 = por %p127, %p128
    %p130 = scmp.ne.s32.totalorder %s122, %s125
    %p131 = scmp.eq.s32.totalorder %s14, 0
    %p132 = por %p130, %p131
    %p133 = scmp.ne.s32.totalorder %s122, %s125
    %p134 = scmp.eq.s32.totalorder %s19, 1
    %p135 = por %p133, %p134
    %p136 = scmp.ne.s32.totalorder %s125, %s126
    %p137 = scmp.eq.s32.totalorder %s19, 0
    %p138 = por %p136, %p137
    %p139 = scmp.ne.s32.totalorder %s125, %s126
    %p140 = scmp.eq.s32.totalorder %s20, 1
    %p141 = por %p139, %p140
    %p143 = scmp.ne.s32.totalorder %s126, %s142
    %p144 = scmp.eq.s32.totalorder %s20, 0
    %p145 = por %p143, %p144
    %s146 = ssub.s32 %s21, %s33
    %s147 = ssub.s32 %s22, %s29
    %s148 = sor.u32 %s146, %s147
    %p149 = scmp.eq.s32.totalorder %s148, 0
    %s151 = sadd.s32 %s150, 1
    %s152 = scalar_select %p149, %s150, %s151
    %p155 = pneg %p149
    %p156 = scmp.eq.s32.totalorder %s14, 1
    %p157 = por %p155, %p156
    %p158 = scmp.ne.s32.totalorder %s150, %s153
    %p159 = scmp.eq.s32.totalorder %s14, 0
    %p160 = por %p158, %p159
    %p161 = scmp.ne.s32.totalorder %s150, %s153
    %p162 = scmp.eq.s32.totalorder %s19, 1
    %p163 = por %p161, %p162
    %p164 = scmp.ne.s32.totalorder %s153, %s154
    %p165 = scmp.eq.s32.totalorder %s19, 0
    %p166 = por %p164, %p165
    %p167 = scmp.ne.s32.totalorder %s153, %s154
    %p168 = scmp.eq.s32.totalorder %s20, 1
    %p169 = por %p167, %p168
    %p171 = scmp.ne.s32.totalorder %s154, %s170
    %p172 = scmp.eq.s32.totalorder %s20, 0
    %p173 = por %p171, %p172
    %s174 = ssub.s32 %s21, %s33
    %s175 = ssub.s32 %s22, %s29
    %s176 = sor.u32 %s174, %s175
    %p177 = scmp.eq.s32.totalorder %s176, 0
    %s179 = sadd.s32 %s178, 1
    %s180 = scalar_select %p177, %s178, %s179
    %p183 = pneg %p177
    %p184 = scmp.eq.s32.totalorder %s14, 1
    %p185 = por %p183, %p184
    %p186 = scmp.ne.s32.totalorder %s178, %s181
    %p187 = scmp.eq.s32.totalorder %s14, 0
    %p188 = por %p186, %p187
    %p189 = scmp.ne.s32.totalorder %s178, %s181
    %p190 = scmp.eq.s32.totalorder %s19, 1
    %p191 = por %p189, %p190
    %p192 = scmp.ne.s32.totalorder %s181, %s182
    %p193 = scmp.eq.s32.totalorder %s19, 0
    %p194 = por %p192, %p193
    %p195 = scmp.ne.s32.totalorder %s181, %s182
    %p196 = scmp.eq.s32.totalorder %s20, 1
    %p197 = por %p195, %p196
    %p199 = scmp.ne.s32.totalorder %s182, %s198
    %p200 = scmp.eq.s32.totalorder %s20, 0
    %p201 = por %p199, %p200
    %s202 = ssub.s32 %s21, %s33
    %s203 = ssub.s32 %s22, %s29
    %s204 = sor.u32 %s202, %s203
    %p205 = scmp.eq.s32.totalorder %s204, 0
    %s207 = sadd.s32 %s206, 1
    %s208 = scalar_select %p205, %s206, %s207
    %p211 = pneg %p205
    %p212 = scmp.eq.s32.totalorder %s14, 1
    %p213 = por %p211, %p212
    %p214 = scmp.ne.s32.totalorder %s206, %s209
    %p215 = scmp.eq.s32.totalorder %s14, 0
    %p216 = por %p214, %p215
    %p217 = scmp.ne.s32.totalorder %s206, %s209
    %p218 = scmp.eq.s32.totalorder %s19, 1
    %p219 = por %p217, %p218
    %p220 = scmp.ne.s32.totalorder %s209, %s210
    %p221 = scmp.eq.s32.totalorder %s19, 0
    %p222 = por %p220, %p221
    %p223 = scmp.ne.s32.totalorder %s209, %s210
    %p224 = scmp.eq.s32.totalorder %s20, 1
    %p225 = por %p223, %p224
    %p227 = scmp.ne.s32.totalorder %s210, %s226
    %p228 = scmp.eq.s32.totalorder %s20, 0
    %p229 = por %p227, %p228
    %s230 = ssub.s32 %s21, %s33
    %s231 = ssub.s32 %s22, %s29
    %s232 = sor.u32 %s230, %s231
    %p233 = scmp.eq.s32.totalorder %s232, 0
    %s235 = sadd.s32 %s234, 1
    %s236 = scalar_select %p233, %s234, %s235
    %p239 = pneg %p233
    %p240 = scmp.eq.s32.totalorder %s14, 1
    %p241 = por %p239, %p240
    %p242 = scmp.ne.s32.totalorder %s234, %s237
    %p243 = scmp.eq.s32.totalorder %s14, 0
    %p244 = por %p242, %p243
    %p245 = scmp.ne.s32.totalorder %s234, %s237
    %p246 = scmp.eq.s32.totalorder %s19, 1
    %p247 = por %p245, %p246
    %p248 = scmp.ne.s32.totalorder %s237, %s238
    %p249 = scmp.eq.s32.totalorder %s19, 0
    %p250 = por %p248, %p249
    %p251 = scmp.ne.s32.totalorder %s237, %s238
    %p252 = scmp.eq.s32.totalorder %s20, 1
    %p253 = por %p251, %p252
    %p255 = scmp.ne.s32.totalorder %s238, %s254
    %p256 = scmp.eq.s32.totalorder %s20, 0
    %p257 = por %p255, %p256
    %p258 = scmp.le.s32.totalorder 1, %s14
    %p259 = scmp.lt.s32.totalorder %s14, 3
    %p260 = pnand %p258, %p259
    %p261 = pneg %p260
    // Predicated region
    $region9: #{three_scale_block_forward.11} parent=5 // pred_check
      _
    $region10: #{three_scale_block_forward.11} parent=5 // pred_check_branch
      %263 = sbr.rel (%p260) target = $region12
    $region11: #{three_scale_block_forward.11} parent=5 // pred_region
      %s264 = ssub.s32 %s14, 1
    $region12: #{three_scale_block_forward.11} parent=5 // pred_fallthru
      _
    %p265 = scmp.lt.s32.totalorder %s14, 2
    // Predicated region
    $region13: #{three_scale_block_forward.11} parent=5 // pred_check
      %p266 = pneg %p265
    $region14: #{three_scale_block_forward.11} parent=5 // pred_check_branch
      %268 = sbr.rel (%p266) target = $region16
    $region15: #{three_scale_block_forward.11} parent=5 // pred_region
      // Predicated region
      $region17: #{three_scale_block_forward.11} parent=15 // pred_check
        %p269 = pneg %p48
      $region18: #{three_scale_block_forward.11} parent=15 // pred_check_branch
        %271 = sbr.rel (%p269) target = $region20
      $region19: #{three_scale_block_forward.11} parent=15 // pred_region
        %s272 = smul.u32 2, %s22
        %p273 = scmp.lt.s32.totalorder %s21, 1
        %s274 = scalar_select %p273, %s21, 1
        %p275 = scmp.lt.s32.totalorder %s272, 1
        %s276 = scalar_select %p275, %s272, 1
        %s277 = smul.addr %s274, 4
        %s278 = sadd.s32 %s276, %s277
        %s279 = smul.addr %s278, 8
        %s280 = scalar_lea.vmem %s0, %s279
        %s281 = smul.u32 2, %s22
      $region20: #{three_scale_block_forward.11} parent=15 // pred_fallthru
        _
      // Predicated region
      $region21: #{three_scale_block_forward.11} parent=15 // pred_check
        %p282 = pneg %p76
      $region22: #{three_scale_block_forward.11} parent=15 // pred_check_branch
        %284 = sbr.rel (%p282) target = $region24
      $region23: #{three_scale_block_forward.11} parent=15 // pred_region
        %s285 = smul.u32 2, %s22
        %p286 = scmp.lt.s32.totalorder %s21, 1
        %s287 = scalar_select %p286, %s21, 1
        %p288 = scmp.lt.s32.totalorder %s285, 1
        %s289 = scalar_select %p288, %s285, 1
        %s290 = smul.addr %s287, 2
        %s291 = sadd.s32 %s289, %s290
        %s292 = scalar_lea.vmem %s1, %s291
        %s293 = smul.u32 2, %s22
      $region24: #{three_scale_block_forward.11} parent=15 // pred_fallthru
        _
      // Predicated region
      $region25: #{three_scale_block_forward.11} parent=15 // pred_check
        %p294 = pneg %p104
      $region26: #{three_scale_block_forward.11} parent=15 // pred_check_branch
        %296 = sbr.rel (%p294) target = $region28
      $region27: #{three_scale_block_forward.11} parent=15 // pred_region
        %s297 = smul.u32 2, %s22
        %p298 = scmp.lt.s32.totalorder %s21, 1
        %s299 = scalar_select %p298, %s21, 1
        %p300 = scmp.lt.s32.totalorder %s297, 1
        %s301 = scalar_select %p300, %s297, 1
        %s302 = smul.addr %s299, 4
        %s303 = sadd.s32 %s301, %s302
        %s304 = smul.addr %s303, 8
        %s305 = scalar_lea.vmem %s2, %s304
        %s306 = smul.u32 2, %s22
      $region28: #{three_scale_block_forward.11} parent=15 // pred_fallthru
        _
      // Predicated region
      $region29: #{three_scale_block_forward.11} parent=15 // pred_check
        %p307 = pneg %p132
      $region30: #{three_scale_block_forward.11} parent=15 // pred_check_branch
        %309 = sbr.rel (%p307) target = $region32
      $region31: #{three_scale_block_forward.11} parent=15 // pred_region
        %s310 = smul.u32 2, %s22
        %p311 = scmp.lt.s32.totalorder %s21, 1
        %s312 = scalar_select %p311, %s21, 1
        %p313 = scmp.lt.s32.totalorder %s310, 1
        %s314 = scalar_select %p313, %s310, 1
        %s315 = smul.addr %s312, 2
        %s316 = sadd.s32 %s314, %s315
        %s317 = scalar_lea.vmem %s3, %s316
        %s318 = smul.u32 2, %s22
      $region32: #{three_scale_block_forward.11} parent=15 // pred_fallthru
        _
      // Predicated region
      $region33: #{three_scale_block_forward.11} parent=15 // pred_check
        %p319 = pneg %p160
      $region34: #{three_scale_block_forward.11} parent=15 // pred_check_branch
        %321 = sbr.rel (%p319) target = $region36
      $region35: #{three_scale_block_forward.11} parent=15 // pred_region
        %s322 = smul.u32 2, %s22
        %p323 = scmp.lt.s32.totalorder %s21, 1
        %s324 = scalar_select %p323, %s21, 1
        %p325 = scmp.lt.s32.totalorder %s322, 1
        %s326 = scalar_select %p325, %s322, 1
        %s327 = smul.addr %s324, 4
        %s328 = sadd.s32 %s326, %s327
        %s329 = smul.addr %s328, 8
        %s330 = scalar_lea.vmem %s4, %s329
        %s331 = smul.u32 2, %s22
      $region36: #{three_scale_block_forward.11} parent=15 // pred_fallthru
        _
      // Predicated region
      $region37: #{three_scale_block_forward.11} parent=15 // pred_check
        %p332 = pneg %p188
      $region38: #{three_scale_block_forward.11} parent=15 // pred_check_branch
        %334 = sbr.rel (%p332) target = $region40
      $region39: #{three_scale_block_forward.11} parent=15 // pred_region
        %s335 = smul.u32 2, %s22
        %p336 = scmp.lt.s32.totalorder %s21, 1
        %s337 = scalar_select %p336, %s21, 1
        %p338 = scmp.lt.s32.totalorder %s335, 1
        %s339 = scalar_select %p338, %s335, 1
        %s340 = smul.addr %s337, 2
        %s341 = sadd.s32 %s339, %s340
        %s342 = scalar_lea.vmem %s5, %s341
        %s343 = smul.u32 2, %s22
      $region40: #{three_scale_block_forward.11} parent=15 // pred_fallthru
        _
    $region16: #{three_scale_block_forward.11} parent=5 // pred_fallthru
      _
    %p344 = scmp.le.s32.totalorder 1, %s14
    %p345 = scmp.lt.s32.totalorder %s14, 3
    %p346 = pnand %p344, %p345
    %p347 = pneg %p346
    // Predicated region
    $region41: #{three_scale_block_forward.11} parent=5 // pred_check
      _
    $region42: #{three_scale_block_forward.11} parent=5 // pred_check_branch
      %349 = sbr.rel (%p346) target = $region44
    $region43: #{three_scale_block_forward.11} parent=5 // pred_region
      %s350 = ssub.s32 %s14, 1
      %s351 = smul.u32 2, %s24
      %p352 = scmp.lt.s32.totalorder %s23, 1
      %s353 = scalar_select %p352, %s23, 1
      %p354 = scmp.lt.s32.totalorder %s351, 1
      %s355 = scalar_select %p354, %s351, 1
      %s356 = smul.addr %s353, 4
      %s357 = sadd.s32 %s355, %s356
      %s358 = smul.addr %s357, 8
      %s359 = scalar_lea.vmem %s0, %s358
      %p360 = pneg %p54
      %p361 = pneg %p51
      %s362 = smul.u32 2, %s24
      %p363 = scmp.lt.s32.totalorder %s23, 1
      %s364 = scalar_select %p363, %s23, 1
      %p365 = scmp.lt.s32.totalorder %s362, 1
      %s366 = scalar_select %p365, %s362, 1
      %s367 = smul.addr %s364, 2
      %s368 = sadd.s32 %s366, %s367
      %s369 = scalar_lea.vmem %s1, %s368
      %p370 = pneg %p82
      %p371 = pneg %p79
      %s372 = smul.u32 2, %s24
      %p373 = scmp.lt.s32.totalorder %s23, 1
      %s374 = scalar_select %p373, %s23, 1
      %p375 = scmp.lt.s32.totalorder %s372, 1
      %s376 = scalar_select %p375, %s372, 1
      %s377 = smul.addr %s374, 4
      %s378 = sadd.s32 %s376, %s377
      %s379 = smul.addr %s378, 8
      %s380 = scalar_lea.vmem %s2, %s379
      %p381 = pneg %p110
      %p382 = pneg %p107
      %s383 = smul.u32 2, %s24
      %p384 = scmp.lt.s32.totalorder %s23, 1
      %s385 = scalar_select %p384, %s23, 1
      %p386 = scmp.lt.s32.totalorder %s383, 1
      %s387 = scalar_select %p386, %s383, 1
      %s388 = smul.addr %s385, 2
      %s389 = sadd.s32 %s387, %s388
      %s390 = scalar_lea.vmem %s3, %s389
      %p391 = pneg %p138
      %p392 = pneg %p135
      %s393 = smul.u32 2, %s24
      %p394 = scmp.lt.s32.totalorder %s23, 1
      %s395 = scalar_select %p394, %s23, 1
      %p396 = scmp.lt.s32.totalorder %s393, 1
      %s397 = scalar_select %p396, %s393, 1
      %s398 = smul.addr %s395, 4
      %s399 = sadd.s32 %s397, %s398
      %s400 = smul.addr %s399, 8
      %s401 = scalar_lea.vmem %s4, %s400
      %p402 = pneg %p166
      %p403 = pneg %p163
      %s404 = smul.u32 2, %s24
      %p405 = scmp.lt.s32.totalorder %s23, 1
      %s406 = scalar_select %p405, %s23, 1
      %p407 = scmp.lt.s32.totalorder %s404, 1
      %s408 = scalar_select %p407, %s404, 1
      %s409 = smul.addr %s406, 2
      %s410 = sadd.s32 %s408, %s409
      %s411 = scalar_lea.vmem %s5, %s410
      %p412 = pneg %p194
      %p413 = pneg %p191
      %p414 = pneg %p222
      %p415 = pneg %p219
      %s416 = smul.u32 2, %s24
      %p417 = scmp.lt.s32.totalorder %s23, 1
      %s418 = scalar_select %p417, %s23, 1
      %p419 = scmp.lt.s32.totalorder %s416, 1
      %s420 = scalar_select %p419, %s416, 1
      %s421 = smul.addr %s418, 4
      %s422 = sadd.s32 %s420, %s421
      %s423 = smul.addr %s422, 8
      %s424 = scalar_lea.vmem %s6, %s423
      %p425 = pneg %p250
      %p426 = pneg %p247
      %s427 = smul.u32 2, %s24
      %p428 = scmp.lt.s32.totalorder %s23, 1
      %s429 = scalar_select %p428, %s23, 1
      %p430 = scmp.lt.s32.totalorder %s427, 1
      %s431 = scalar_select %p430, %s427, 1
      %s432 = smul.addr %s429, 2
      %s433 = sadd.s32 %s431, %s432
      %s434 = scalar_lea.vmem %s7, %s433
      %s435 = smul.u32 2, %s24
      %p436 = scmp.lt.s32.totalorder %s23, 1
      %s437 = scalar_select %p436, %s23, 1
      %p438 = scmp.lt.s32.totalorder %s435, 1
      %s439 = scalar_select %p438, %s435, 1
      %s440 = smul.addr %s437, 4
      %s441 = sadd.s32 %s439, %s440
      %s442 = smul.addr %s441, 8
      %s443 = scalar_lea.vmem %s0, %s442
      %s444 = smul.u32 2, %s24
      %s445 = smul.u32 2, %s24
      %p446 = scmp.lt.s32.totalorder %s23, 1
      %s447 = scalar_select %p446, %s23, 1
      %p448 = scmp.lt.s32.totalorder %s445, 1
      %s449 = scalar_select %p448, %s445, 1
      %s450 = smul.addr %s447, 2
      %s451 = sadd.s32 %s449, %s450
      %s452 = scalar_lea.vmem %s1, %s451
      %s453 = smul.u32 2, %s24
      %s454 = smul.u32 2, %s24
      %p455 = scmp.lt.s32.totalorder %s23, 1
      %s456 = scalar_select %p455, %s23, 1
      %p457 = scmp.lt.s32.totalorder %s454, 1
      %s458 = scalar_select %p457, %s454, 1
      %s459 = smul.addr %s456, 4
      %s460 = sadd.s32 %s458, %s459
      %s461 = smul.addr %s460, 8
      %s462 = scalar_lea.vmem %s2, %s461
      %s463 = smul.u32 2, %s24
      %s464 = smul.u32 2, %s24
      %p465 = scmp.lt.s32.totalorder %s23, 1
      %s466 = scalar_select %p465, %s23, 1
      %p467 = scmp.lt.s32.totalorder %s464, 1
      %s468 = scalar_select %p467, %s464, 1
      %s469 = smul.addr %s466, 2
      %s470 = sadd.s32 %s468, %s469
      %s471 = scalar_lea.vmem %s3, %s470
      %s472 = smul.u32 2, %s24
      %s473 = smul.u32 2, %s24
      %p474 = scmp.lt.s32.totalorder %s23, 1
      %s475 = scalar_select %p474, %s23, 1
      %p476 = scmp.lt.s32.totalorder %s473, 1
      %s477 = scalar_select %p476, %s473, 1
      %s478 = smul.addr %s475, 4
      %s479 = sadd.s32 %s477, %s478
      %s480 = smul.addr %s479, 8
      %s481 = scalar_lea.vmem %s4, %s480
      %s482 = smul.u32 2, %s24
      %s483 = smul.u32 2, %s24
      %p484 = scmp.lt.s32.totalorder %s23, 1
      %s485 = scalar_select %p484, %s23, 1
      %p486 = scmp.lt.s32.totalorder %s483, 1
      %s487 = scalar_select %p486, %s483, 1
      %s488 = smul.addr %s485, 2
      %s489 = sadd.s32 %s487, %s488
      %s490 = scalar_lea.vmem %s5, %s489
      %s491 = smul.u32 2, %s24
      %s492 = smul.u32 2, %s24
      %p493 = scmp.lt.s32.totalorder %s23, 1
      %s494 = scalar_select %p493, %s23, 1
      %p495 = scmp.lt.s32.totalorder %s492, 1
      %s496 = scalar_select %p495, %s492, 1
      %s497 = smul.addr %s494, 4
      %s498 = sadd.s32 %s496, %s497
      %s499 = smul.addr %s498, 8
      %s500 = scalar_lea.vmem %s6, %s499
      %s501 = smul.u32 2, %s24
      %s502 = smul.u32 2, %s24
      %p503 = scmp.lt.s32.totalorder %s23, 1
      %s504 = scalar_select %p503, %s23, 1
      %p505 = scmp.lt.s32.totalorder %s502, 1
      %s506 = scalar_select %p505, %s502, 1
      %s507 = smul.addr %s504, 2
      %s508 = sadd.s32 %s506, %s507
      %s509 = scalar_lea.vmem %s7, %s508
      %s510 = smul.u32 2, %s24
      %v511 = vld [vmem:[%s452] sm:$0x3]
      %v512 = vld [vmem:[%s471] sm:$0x3]
      %v513 = vld [vmem:[%s490] sm:$0x3]
      %v514 = vld [vmem:[%s462] sm:$0xff]
      %v515 = vld [vmem:[%s462 + $0x8] sm:$0xff]
      %v516 = vld [vmem:[%s462 + $0x10] sm:$0xff]
      %v517 = vld [vmem:[%s462 + $0x18] sm:$0xff]
      %v518 = vmax.f32 %v512, 1e-05
      %v519 = vrcp.pop %v518
      %v520 = vmul.f32 1.0, %v519
      %v522 = vlaneseq
      %v523 = vshrl.u32 %v522, 7
      %v524 = vsub.s32 0, %v523
      %v525 = vrot.slane %v520, %v524
      %v526 = vlaneseq
      %v527 = vshrl.u32 %v526, 7
      %v528 = vsub.s32 1, %v527
      %v529 = vrot.slane %v520, %v528
      %v532 = vmul.f32 %v514, %v525
      %v533 = vmul.f32 %v515, %v529
      %v534 = vmul.f32 %v516, %v525
      %v535 = vmul.f32 %v517, %v529
      %vm536 = vcmp.gt.f32.partialorder %v512, 0.0
      %v537 = vsel %vm536, 1, 0
      %v538 = vcvt.s32.f32 %v537
      %v539 = vld [vmem:[%s481] sm:$0xff]
      %v540 = vld [vmem:[%s481 + $0x8] sm:$0xff]
      %v541 = vld [vmem:[%s481 + $0x10] sm:$0xff]
      %v542 = vld [vmem:[%s481 + $0x18] sm:$0xff]
      %v543 = vmax.f32 %v513, 1e-05
      %v544 = vrcp.pop %v543
      %v545 = vmul.f32 1.0, %v544
      %v547 = vlaneseq
      %v548 = vshrl.u32 %v547, 7
      %v549 = vsub.s32 0, %v548
      %v550 = vrot.slane %v545, %v549
      %v551 = vlaneseq
      %v552 = vshrl.u32 %v551, 7
      %v553 = vsub.s32 1, %v552
      %v554 = vrot.slane %v545, %v553
      %v557 = vmul.f32 %v539, %v550
      %v558 = vmul.f32 %v540, %v554
      %v559 = vmul.f32 %v541, %v550
      %v560 = vmul.f32 %v542, %v554
      %vm561 = vcmp.gt.f32.partialorder %v513, 0.0
      %v562 = vsel %vm561, 1, 0
      %v563 = vcvt.s32.f32 %v562
      %v564 = vadd.f32 %v511, %v538
      %v565 = vld [vmem:[%s443] sm:$0xff]
      %v566 = vld [vmem:[%s443 + $0x8] sm:$0xff]
      %v567 = vld [vmem:[%s443 + $0x10] sm:$0xff]
      %v568 = vld [vmem:[%s443 + $0x18] sm:$0xff]
      %v570 = vlaneseq
      %v571 = vshrl.u32 %v570, 7
      %v572 = vsub.s32 0, %v571
      %v573 = vrot.slane %v511, %v572
      %v574 = vlaneseq
      %v575 = vshrl.u32 %v574, 7
      %v576 = vsub.s32 1, %v575
      %v577 = vrot.slane %v511, %v576
      %v580 = vmul.f32 %v565, %v573
      %v581 = vmul.f32 %v566, %v577
      %v582 = vmul.f32 %v567, %v573
      %v583 = vmul.f32 %v568, %v577
      %v585 = vlaneseq
      %v586 = vshrl.u32 %v585, 7
      %v587 = vsub.s32 0, %v586
      %v588 = vrot.slane %v538, %v587
      %v589 = vlaneseq
      %v590 = vshrl.u32 %v589, 7
      %v591 = vsub.s32 1, %v590
      %v592 = vrot.slane %v538, %v591
      %v595 = vmul.f32 %v532, %v588
      %v596 = vmul.f32 %v533, %v592
      %v597 = vmul.f32 %v534, %v588
      %v598 = vmul.f32 %v535, %v592
      %v599 = vadd.f32 %v580, %v595
      %v600 = vadd.f32 %v581, %v596
      %v601 = vadd.f32 %v582, %v597
      %v602 = vadd.f32 %v583, %v598
      %v603 = vmax.f32 %v564, 1e-05
      %v604 = vrcp.pop %v603
      %v605 = vmul.f32 1.0, %v604
      %v607 = vlaneseq
      %v608 = vshrl.u32 %v607, 7
      %v609 = vsub.s32 0, %v608
      %v610 = vrot.slane %v605, %v609
      %v611 = vlaneseq
      %v612 = vshrl.u32 %v611, 7
      %v613 = vsub.s32 1, %v612
      %v614 = vrot.slane %v605, %v613
      %v617 = vmul.f32 %v599, %v610
      %v618 = vmul.f32 %v600, %v614
      %v619 = vmul.f32 %v601, %v610
      %v620 = vmul.f32 %v602, %v614
      %vm621 = vcmp.gt.f32.partialorder %v564, 0.0
      %v622 = vsel %vm621, 1, 0
      %v623 = vcvt.s32.f32 %v622
      %v624 = vadd.f32 %v623, %v563
      %v626 = vlaneseq
      %v627 = vshrl.u32 %v626, 7
      %v628 = vsub.s32 0, %v627
      %v629 = vrot.slane %v623, %v628
      %v630 = vlaneseq
      %v631 = vshrl.u32 %v630, 7
      %v632 = vsub.s32 1, %v631
      %v633 = vrot.slane %v623, %v632
      %v636 = vmul.f32 %v617, %v629
      %v637 = vmul.f32 %v618, %v633
      %v638 = vmul.f32 %v619, %v629
      %v639 = vmul.f32 %v620, %v633
      %v641 = vlaneseq
      %v642 = vshrl.u32 %v641, 7
      %v643 = vsub.s32 0, %v642
      %v644 = vrot.slane %v563, %v643
      %v645 = vlaneseq
      %v646 = vshrl.u32 %v645, 7
      %v647 = vsub.s32 1, %v646
      %v648 = vrot.slane %v563, %v647
      %v651 = vmul.f32 %v557, %v644
      %v652 = vmul.f32 %v558, %v648
      %v653 = vmul.f32 %v559, %v644
      %v654 = vmul.f32 %v560, %v648
      %v655 = vadd.f32 %v636, %v651
      %v656 = vadd.f32 %v637, %v652
      %v657 = vadd.f32 %v638, %v653
      %v658 = vadd.f32 %v639, %v654
      %v659 = vmax.f32 %v624, 1e-05
      %v660 = vrcp.pop %v659
      %v661 = vmul.f32 1.0, %v660
      %v663 = vlaneseq
      %v664 = vshrl.u32 %v663, 7
      %v665 = vsub.s32 0, %v664
      %v666 = vrot.slane %v661, %v665
      %v667 = vlaneseq
      %v668 = vshrl.u32 %v667, 7
      %v669 = vsub.s32 1, %v668
      %v670 = vrot.slane %v661, %v669
      %v673 = vmul.f32 %v655, %v666
      %v674 = vmul.f32 %v656, %v670
      %v675 = vmul.f32 %v657, %v666
      %v676 = vmul.f32 %v658, %v670
      %677 = vst [vmem:[%s500] sm:$0xff] %v673
      %678 = vst [vmem:[%s500 + $0x8] sm:$0xff] %v674
      %679 = vst [vmem:[%s500 + $0x10] sm:$0xff] %v675
      %680 = vst [vmem:[%s500 + $0x18] sm:$0xff] %v676
      %vm681 = vcmp.gt.f32.partialorder %v624, 0.0
      %v682 = vsel %vm681, 1, 0
      %v683 = vcvt.s32.f32 %v682
      %v684 = vlaneseq
      %vm685 = vcmp.ge.s32.totalorder %v684, 0
      %vm686 = vcmp.lt.s32.totalorder %v684, 256
      %vm687 = vmand %vm685, %vm686
      %688 = vst.msk [vmem:[%s509] sm:$0x3] %vm687, %v683
      %s689 = smul.u32 2, %s24
      %p690 = scmp.lt.s32.totalorder %s23, 1
      %s691 = scalar_select %p690, %s23, 1
      %p692 = scmp.lt.s32.totalorder %s689, 1
      %s693 = scalar_select %p692, %s689, 1
      %s694 = smul.addr %s691, 4
      %s695 = sadd.s32 %s693, %s694
      %s696 = smul.addr %s695, 8
      %s697 = scalar_lea.vmem %s6, %s696
      %s698 = smul.u32 2, %s24
      %p699 = scmp.lt.s32.totalorder %s23, 1
      %s700 = scalar_select %p699, %s23, 1
      %p701 = scmp.lt.s32.totalorder %s698, 1
      %s702 = scalar_select %p701, %s698, 1
      %s703 = smul.addr %s700, 2
      %s704 = sadd.s32 %s702, %s703
      %s705 = scalar_lea.vmem %s7, %s704
      // Predicated region
      $region45: #{three_scale_block_forward.11} parent=43 // pred_check
        %p706 = pneg %p219
      $region46: #{three_scale_block_forward.11} parent=43 // pred_check_branch
        %708 = sbr.rel (%p706) target = $region48
      $region47: #{three_scale_block_forward.11} parent=43 // pred_region
        %s709 = smul.u32 2, %s24
      $region48: #{three_scale_block_forward.11} parent=43 // pred_fallthru
        _
      // Predicated region
      $region49: #{three_scale_block_forward.11} parent=43 // pred_check
        %p710 = pneg %p247
      $region50: #{three_scale_block_forward.11} parent=43 // pred_check_branch
        %712 = sbr.rel (%p710) target = $region52
      $region51: #{three_scale_block_forward.11} parent=43 // pred_region
        %s713 = smul.u32 2, %s24
      $region52: #{three_scale_block_forward.11} parent=43 // pred_fallthru
        _
    $region44: #{three_scale_block_forward.11} parent=5 // pred_fallthru
      _
    %p714 = scmp.le.s32.totalorder 2, %s14
    // Predicated region
    $region53: #{three_scale_block_forward.11} parent=5 // pred_check
      %p715 = pneg %p714
    $region54: #{three_scale_block_forward.11} parent=5 // pred_check_branch
      %717 = sbr.rel (%p715) target = $region56
    $region55: #{three_scale_block_forward.11} parent=5 // pred_region
      %s718 = ssub.s32 %s14, 2
      // Predicated region
      $region57: #{three_scale_block_forward.11} parent=55 // pred_check
        %p719 = pneg %p225
      $region58: #{three_scale_block_forward.11} parent=55 // pred_check_branch
        %721 = sbr.rel (%p719) target = $region60
      $region59: #{three_scale_block_forward.11} parent=55 // pred_region
        %s722 = smul.u32 2, %s26
        %p723 = scmp.lt.s32.totalorder %s25, 1
        %s724 = scalar_select %p723, %s25, 1
        %p725 = scmp.lt.s32.totalorder %s722, 1
        %s726 = scalar_select %p725, %s722, 1
        %s727 = smul.addr %s724, 4
        %s728 = sadd.s32 %s726, %s727
        %s729 = smul.addr %s728, 8
        %s730 = scalar_lea.vmem %s6, %s729
      $region60: #{three_scale_block_forward.11} parent=55 // pred_fallthru
        _
      // Predicated region
      $region61: #{three_scale_block_forward.11} parent=55 // pred_check
        %p731 = pneg %p253
      $region62: #{three_scale_block_forward.11} parent=55 // pred_check_branch
        %733 = sbr.rel (%p731) target = $region64
      $region63: #{three_scale_block_forward.11} parent=55 // pred_region
        %s734 = smul.u32 2, %s26
        %p735 = scmp.lt.s32.totalorder %s25, 1
        %s736 = scalar_select %p735, %s25, 1
        %p737 = scmp.lt.s32.totalorder %s734, 1
        %s738 = scalar_select %p737, %s734, 1
        %s739 = smul.addr %s736, 2
        %s740 = sadd.s32 %s738, %s739
        %s741 = scalar_lea.vmem %s7, %s740
      $region64: #{three_scale_block_forward.11} parent=55 // pred_fallthru
        _
    $region56: #{three_scale_block_forward.11} parent=5 // pred_fallthru
      _
  $region6: #{three_scale_block_forward.11} parent=0 // loop_footer
    %s18 = sadd.s32 1, %s14
  $region7: #{three_scale_block_forward.11} parent=0 // loop_footer_branch
    %13 = sbr.rel target = $region3
  $region8: #{three_scale_block_forward.11} parent=0 // loop_exit
    _

</llo_original>
